<compile_context>
chip_gen: v7x
topology: tpu7x:2x2x1
jax: 0.10.0
libtpu: 0.0.40
codegen_flags: <defaults>
</compile_context>

<pallas_src>
import functools

import jax
import jax.numpy as jnp
from jax import lax
from jax.experimental import pallas as pl
from jax.experimental.pallas import tpu as pltpu

EPS = 1e-5            # PyTorch BatchNorm2d default eps
LRELU_SLOPE = 0.01    # PyTorch LeakyReLU default negative_slope
LANE = 128            # lane width / per-channel-group padding

# Sub-pixel decomposition of ConvTranspose2d(k=4, stride=2, pad=1):
#   output (2q+r, 2p+s) = sum_{a,b in {0,1}} w[.,., KY[r][a], KY[s][b]]
#                          * xpad[q + r + a, p + s + b]
# where xpad is the input zero-padded by 1 on each side.
PHASES = ((0, 0), (0, 1), (1, 0), (1, 1))   # (r, s), r-major
TKY = ((3, 1), (2, 0))                      # kernel taps per phase, a-ordered


def _round_up(v, m):
    return ((v + m - 1) // m) * m


def _act(y, act):
    """Activation used both inside Pallas kernels and in the pure-JAX reference."""
    if act == 'none':
        return y
    if act == 'relu':
        return jnp.maximum(y, 0.0)
    if act == 'lrelu':
        return jnp.where(y >= 0, y, LRELU_SLOPE * y)
    if act == 'tanh':
        return jnp.tanh(y)
    if act == 'sigmoid':
        return jax.nn.sigmoid(y)
    raise ValueError('Unsupported activation function: ' + str(act))


# ----------------------------- Pallas kernels ------------------------------

def _gemm_bn_act_kernel(a_ref, b_ref, gamma_ref, beta_ref, mask_ref, o_ref, *,
                        act, n_groups, inv_count):
    """o = act(BatchNorm(A @ B)) in one pass.

    Columns form `n_groups` groups of `g_size` physical output channels (the
    transposed-conv sub-pixel phases alias the same channel, so BN statistics
    pool across groups).  `mask` zeroes padded rows and rows that are not
    valid output positions for a given phase group; `inv_count` = 1/(number of
    real output positions per channel).  All stats / epilogue math in f32.
    """
    acc = jnp.dot(a_ref[...], b_ref[...], preferred_element_type=jnp.float32)
    mask = mask_ref[...]
    n_cols = acc.shape[1]
    g_size = n_cols // n_groups

    # per-channel mean pooled over all phase groups and valid rows
    s1 = jnp.zeros((1, g_size), jnp.float32)
    for g in range(n_groups):
        sl = slice(g * g_size, (g + 1) * g_size)
        s1 = s1 + jnp.sum(acc[:, sl] * mask[:, sl], axis=0, keepdims=True)
    mean = s1 * inv_count

    # per-channel (biased) variance, exact two-pass with masking
    s2 = jnp.zeros((1, g_size), jnp.float32)
    for g in range(n_groups):
        sl = slice(g * g_size, (g + 1) * g_size)
        d = (acc[:, sl] - mean) * mask[:, sl]
        s2 = s2 + jnp.sum(d * d, axis=0, keepdims=True)
    var = s2 * inv_count

    scale = gamma_ref[...] * lax.rsqrt(var + EPS)
    shift = beta_ref[...] - mean * scale
    for g in range(n_groups):
        sl = slice(g * g_size, (g + 1) * g_size)
        o_ref[:, sl] = _act(acc[:, sl] * scale + shift, act).astype(o_ref.dtype)


def _gemm_affine_act_kernel(a_ref, b_ref, scale_ref, shift_ref, o_ref, *, act):
    """o = act((A @ B) * scale + shift)  (final bias+tanh layer, no norm)."""
    acc = jnp.dot(a_ref[...], b_ref[...], preferred_element_type=jnp.float32)
    o_ref[...] = _act(acc * scale_ref[...] + shift_ref[...], act).astype(o_ref.dtype)


def _compiler_params():
    return pltpu.CompilerParams(
        dimension_semantics=("arbitrary",),
        vmem_limit_bytes=32 * 1024 * 1024,
    )


def gemm_bn_act(a_bf16, b_bf16, gamma, beta, mask, *, act, n_groups, count):
    """Single-block fused GEMM + BatchNorm(batch stats) + activation."""
    m, k = a_bf16.shape
    _, n = b_bf16.shape
    g_size = n // n_groups
    kernel = functools.partial(_gemm_bn_act_kernel, act=act, n_groups=n_groups,
                               inv_count=1.0 / float(count))
    return pl.pallas_call(
        kernel,
        out_shape=jax.ShapeDtypeStruct((m, n), jnp.float32),
        grid_spec=pltpu.PrefetchScalarGridSpec(
            num_scalar_prefetch=0,
            grid=(1,),
            in_specs=[
                pl.BlockSpec((m, k), lambda i: (0, 0)),
                pl.BlockSpec((k, n), lambda i: (0, 0)),
                pl.BlockSpec((1, g_size), lambda i: (0, 0)),
                pl.BlockSpec((1, g_size), lambda i: (0, 0)),
                pl.BlockSpec((m, n), lambda i: (0, 0)),
            ],
            out_specs=pl.BlockSpec((m, n), lambda i: (0, 0)),
        ),
        compiler_params=_compiler_params(),
    )(a_bf16, b_bf16, gamma, beta, mask)


def gemm_affine_act(a_bf16, b_bf16, scale, shift, *, act):
    """Single-block fused GEMM + per-column affine + activation (no norm)."""
    m, k = a_bf16.shape
    _, n = b_bf16.shape
    kernel = functools.partial(_gemm_affine_act_kernel, act=act)
    return pl.pallas_call(
        kernel,
        out_shape=jax.ShapeDtypeStruct((m, n), jnp.float32),
        grid_spec=pltpu.PrefetchScalarGridSpec(
            num_scalar_prefetch=0,
            grid=(1,),
            in_specs=[
                pl.BlockSpec((m, k), lambda i: (0, 0)),
                pl.BlockSpec((k, n), lambda i: (0, 0)),
                pl.BlockSpec((1, n), lambda i: (0, 0)),
                pl.BlockSpec((1, n), lambda i: (0, 0)),
            ],
            out_specs=pl.BlockSpec((m, n), lambda i: (0, 0)),
        ),
        compiler_params=_compiler_params(),
    )(a_bf16, b_bf16, scale, shift)


# --------------------------- layout helpers (XLA) ---------------------------

def _im2col_nhwc(x, k, stride):
    """(M, k*k*C) patches from NHWC input; column order = (di, dj, c)."""
    n, h, w, c = x.shape
    oh = (h - k) // stride + 1
    ow = (w - k) // stride + 1
    cols = []
    for di in range(k):
        for dj in range(k):
            cols.append(x[:, di:di + stride * oh:stride, dj:dj + stride * ow:stride, :])
    p = jnp.stack(cols, axis=3)                     # (n, oh, ow, k*k, c)
    return p.reshape(n * oh * ow, k * k * c), oh, ow


def conv_block_pallas(x, p, cfg):
    """Encoder Conv2dBlock: conv(4x4,s2,p1) + BatchNorm(batch stats) + act (NHWC)."""
    n, h, w, c = x.shape
    k, stride = 4, 2
    xin = jnp.pad(x, ((0, 0), (1, 1), (1, 1), (0, 0)))
    a, oh, ow = _im2col_nhwc(xin, k, stride)                    # (M, 16*c)
    o_ch = p['w'].shape[0]
    b = p['w'].transpose(2, 3, 1, 0).reshape(k * k * c, o_ch)   # [(di,dj,c), oc]

    g_cols = _round_up(o_ch, LANE)
    m_valid = n * oh * ow
    m_pad = _round_up(m_valid, 8)

    a = jnp.pad(a, ((0, m_pad - m_valid), (0, 0)))
    b = jnp.pad(b, ((0, 0), (0, g_cols - o_ch)))
    gamma = jnp.pad(p['gamma'].reshape(1, o_ch), ((0, 0), (0, g_cols - o_ch)))
    beta = jnp.pad(p['beta'].reshape(1, o_ch), ((0, 0), (0, g_cols - o_ch)))
    row_mask = (jnp.arange(m_pad) < m_valid).astype(jnp.float32)[:, None]
    mask = jnp.broadcast_to(row_mask, (m_pad, g_cols))

    y = gemm_bn_act(a.astype(jnp.bfloat16), b.astype(jnp.bfloat16),
                    gamma, beta, mask, act=cfg['act'], n_groups=1, count=m_valid)
    return y[:m_valid, :o_ch].reshape(n, oh, ow, o_ch)


def tconv_block_pallas(x, p, cfg):
    """Decoder ConvTranspose2dBlock via sub-pixel decomposition (NHWC).

    One zero-free GEMM: A = 2x2-patch im2col over the (H+1)x(W+1) padded grid,
    B packs the 4 output phases as column groups.  BN(+act) or bias+act is
    fused into the kernel; the phase un-shuffle back to (2H, 2W) is XLA.
    """
    n, h, w, c = x.shape
    xp = jnp.pad(x, ((0, 0), (1, 1), (1, 1), (0, 0)))
    a, gh, gw = _im2col_nhwc(xp, 2, 1)                          # (n*(h+1)*(w+1), 4*c)
    m_valid = n * gh * gw
    m_pad = _round_up(m_valid, 8)
    a = jnp.pad(a, ((0, m_pad - m_valid), (0, 0)))

    w_t = p['w']                                                # (C_in, O, 4, 4)
    o_ch = w_t.shape[1]

    # Per-phase weight blocks, row order (a, b, c) matching the im2col columns.
    b_blocks = []
    for (r, s) in PHASES:
        rows = []
        for ai in range(2):
            for bi in range(2):
                rows.append(w_t[:, :, TKY[r][ai], TKY[s][bi]])  # (C, O)
        b_blocks.append(jnp.concatenate(rows, axis=0))          # (4*C, O)

    if cfg['norm'] == 'batchnorm':
        g_cols = _round_up(o_ch, LANE)
        b_full = jnp.concatenate(
            [jnp.pad(bg, ((0, 0), (0, g_cols - o_ch))) for bg in b_blocks], axis=1)
        gamma = jnp.pad(p['gamma'].reshape(1, o_ch), ((0, 0), (0, g_cols - o_ch)))
        beta = jnp.pad(p['beta'].reshape(1, o_ch), ((0, 0), (0, g_cols - o_ch)))

        # Per-phase row-validity masks (which (H+1)x(W+1) patch rows are real
        # output positions for that phase), broadcast to the group width.
        qi = jnp.arange(gh)
        pi = jnp.arange(gw)
        mask_cols = []
        for (r, s) in PHASES:
            mq = (qi >= r) & (qi <= h - 1 + r)
            mp = (pi >= s) & (pi <= w - 1 + s)
            m2 = (mq[:, None] & mp[None, :]).astype(jnp.float32)      # (gh, gw)
            m_rows = jnp.broadcast_to(m2[None], (n, gh, gw)).reshape(m_valid, 1)
            mask_cols.append(jnp.broadcast_to(m_rows, (m_valid, g_cols)))
        mask = jnp.concatenate(mask_cols, axis=1)
        mask = jnp.pad(mask, ((0, m_pad - m_valid), (0, 0)))

        count = n * (2 * h) * (2 * w)
        y = gemm_bn_act(a.astype(jnp.bfloat16), b_full.astype(jnp.bfloat16),
                        gamma, beta, mask, act=cfg['act'], n_groups=4, count=count)
        col_stride = g_cols
    else:
        # Final layer: bias + activation, phases packed tightly then lane-padded.
        n_valid = 4 * o_ch
        n_pad = _round_up(n_valid, LANE)
        b_full = jnp.pad(jnp.concatenate(b_blocks, axis=1),
                         ((0, 0), (0, n_pad - n_valid)))
        scale = jnp.ones((1, n_pad), jnp.float32)
        shift = jnp.pad(jnp.tile(p['bias'], 4).reshape(1, n_valid),
                        ((0, 0), (0, n_pad - n_valid)))
        y = gemm_affine_act(a.astype(jnp.bfloat16), b_full.astype(jnp.bfloat16),
                            scale, shift, act=cfg['act'])
        col_stride = o_ch

    # Un-shuffle the 4 phases back into the (2H, 2W) spatial grid.
    yr = y[:m_valid].reshape(n, gh, gw, y.shape[1])
    blocks = []
    for g, (r, s) in enumerate(PHASES):
        c0 = g * col_stride
        blocks.append(yr[:, r:r + h, s:s + w, c0:c0 + o_ch])    # (n, h, w, o_ch)
    yb = jnp.stack(blocks, axis=3).reshape(n, h, w, 2, 2, o_ch)  # (..., r, s, o)
    return yb.transpose(0, 1, 3, 2, 4, 5).reshape(n, 2 * h, 2 * w, o_ch)


def block_pallas(x, p, cfg):
    if cfg['transposed']:
        return tconv_block_pallas(x, p, cfg)
    return conv_block_pallas(x, p, cfg)


def generator_forward(params, x_nchw, cfg):
    """forward(x, mode='enc-dec') == decode(encode(x)); NHWC internally."""
    z = jnp.transpose(x_nchw, (0, 2, 3, 1))
    zs = []
    for p, c in zip(params['enc'], cfg['enc']):
        z = block_pallas(z, p, c)
        zs.append(z)
    z = zs[-1]
    n_dec = len(cfg['dec'])
    for i, (p, c) in enumerate(zip(params['dec'], cfg['dec'])):
        z = block_pallas(z, p, c)
        if cfg['shortcut_layers'] > i:
            z = jnp.concatenate([z, zs[n_dec - 2 - i]], axis=-1)
    return jnp.transpose(z, (0, 3, 1, 2))


# ------------------------- parameter / config build -------------------------

def build_generator(key, enc_dim=16, enc_layers=3, dec_dim=16, dec_layers=3,
                    shortcut_layers=1):
    MAX_DIM = 64 * 16
    shortcut_layers = min(shortcut_layers, dec_layers - 1)
    keys = list(jax.random.split(key, 4 * (enc_layers + dec_layers)))
    kit = iter(keys)

    enc_p, enc_cfg = [], []
    n_in = 3
    for i in range(enc_layers):
        n_out = min(enc_dim * 2 ** i, MAX_DIM)
        w = jax.random.normal(next(kit), (n_out, n_in, 4, 4), jnp.float32) / jnp.sqrt(n_in * 16.0)
        gamma = 1.0 + 0.1 * jax.random.normal(next(kit), (n_out,), jnp.float32)
        beta = 0.1 * jax.random.normal(next(kit), (n_out,), jnp.float32)
        enc_p.append({'w': w, 'gamma': gamma, 'beta': beta})
        enc_cfg.append({'transposed': False, 'norm': 'batchnorm', 'act': 'lrelu'})
        n_in = n_out

    dec_p, dec_cfg = [], []
    for i in range(dec_layers):
        if i < dec_layers - 1:
            n_out = min(dec_dim * 2 ** (dec_layers - i - 1), MAX_DIM)
            w = jax.random.normal(next(kit), (n_in, n_out, 4, 4), jnp.float32) / jnp.sqrt(n_in * 16.0)
            gamma = 1.0 + 0.1 * jax.random.normal(next(kit), (n_out,), jnp.float32)
            beta = 0.1 * jax.random.normal(next(kit), (n_out,), jnp.float32)
            dec_p.append({'w': w, 'gamma': gamma, 'beta': beta})
            dec_cfg.append({'transposed': True, 'norm': 'batchnorm', 'act': 'relu'})
            n_in = n_out
            n_in = n_in + n_in // 2 if shortcut_layers > i else n_in
        else:
            w = jax.random.normal(next(kit), (n_in, 3, 4, 4), jnp.float32) / jnp.sqrt(n_in * 16.0)
            bias = 0.1 * jax.random.normal(next(kit), (3,), jnp.float32)
            dec_p.append({'w': w, 'bias': bias})
            dec_cfg.append({'transposed': True, 'norm': 'none', 'act': 'tanh'})

    params = {'enc': enc_p, 'dec': dec_p}
    cfg = {'enc': enc_cfg, 'dec': dec_cfg, 'shortcut_layers': shortcut_layers}
    return params, cfg


# ---------------------------- pure-JAX reference ----------------------------

def _ref_conv_block(x, p, cfg):
    if cfg['transposed']:
        w_conv = jnp.flip(p['w'], axis=(2, 3)).transpose(1, 0, 2, 3)
        y = lax.conv_general_dilated(
            x, w_conv, (1, 1), [(2, 2), (2, 2)], lhs_dilation=(2, 2),
            dimension_numbers=('NCHW', 'OIHW', 'NCHW'),
            precision=lax.Precision.HIGHEST)
    else:
        y = lax.conv_general_dilated(
            x, p['w'], (2, 2), [(1, 1), (1, 1)],
            dimension_numbers=('NCHW', 'OIHW', 'NCHW'),
            precision=lax.Precision.HIGHEST)
    if cfg['norm'] == 'batchnorm':
        mean = jnp.mean(y, axis=(0, 2, 3), keepdims=True)
        var = jnp.mean(jnp.square(y - mean), axis=(0, 2, 3), keepdims=True)
        y = (y - mean) * lax.rsqrt(var + EPS)
        y = y * p['gamma'].reshape(1, -1, 1, 1) + p['beta'].reshape(1, -1, 1, 1)
    else:
        y = y + p['bias'].reshape(1, -1, 1, 1)
    return _act(y, cfg['act'])


def ref_forward(params, x, cfg):
    zs = []
    z = x
    for p, c in zip(params['enc'], cfg['enc']):
        z = _ref_conv_block(z, p, c)
        zs.append(z)
    z = zs[-1]
    n_dec = len(cfg['dec'])
    for i, (p, c) in enumerate(zip(params['dec'], cfg['dec'])):
        z = _ref_conv_block(z, p, c)
        if cfg['shortcut_layers'] > i:
            z = jnp.concatenate([z, zs[n_dec - 2 - i]], axis=1)
    return z


# ----------------------------------- main -----------------------------------

if __name__ == "__main__":
    key = jax.random.PRNGKey(0)
    pkey, xkey = jax.random.split(key)

    # Small config consistent with the module: 3 enc + 3 dec blocks, base dim 16,
    # one shortcut concat, 16x16 RGB input, batch 2.
    params, cfg = build_generator(pkey, enc_dim=16, enc_layers=3,
                                  dec_dim=16, dec_layers=3, shortcut_layers=1)
    x = jax.random.normal(xkey, (2, 3, 16, 16), jnp.float32)

    fwd = jax.jit(lambda p, xx: generator_forward(p, xx, cfg))
    out = jax.block_until_ready(fwd(params, x))

    ref = jax.block_until_ready(ref_forward(params, x, cfg))

    assert out.shape == (2, 3, 16, 16), out.shape
    assert out.dtype == jnp.float32
    # bf16 MXU operands vs. the f32 (HIGHEST precision) XLA reference leave a
    # small numerical gap that compounds through 6 conv + batch-stat BN layers.
    max_err = float(jnp.max(jnp.abs(out - ref)))
    assert max_err < 1e-1, f"mismatch vs pure-JAX reference (max abs err {max_err})"

    print("KERNEL_OK")
</pallas_src>

<mosaic_0001>
module attributes {stable_mosaic.version = 11 : i64} {
  func.func @_gemm_bn_act_kernel(%arg0: i32, %arg1: memref<128x48xbf16, #tpu.memory_space<vmem>>, %arg2: memref<48x128xbf16, #tpu.memory_space<vmem>>, %arg3: memref<1x128xf32, #tpu.memory_space<vmem>>, %arg4: memref<1x128xf32, #tpu.memory_space<vmem>>, %arg5: memref<128x128xf32, #tpu.memory_space<vmem>>, %arg6: memref<128x128xf32, #tpu.memory_space<vmem>>) attributes {dimension_semantics = [#tpu.dimension_semantics<arbitrary>], iteration_bounds = array<i64: 1>, scalar_prefetch = 0 : i64, scratch_operands = 0 : i64, tpu.core_type = #tpu.core_type<tc>, window_params = [{pipeline_mode = #tpu.pipeline_mode<synchronous>, transform_indices = @transform_0, window_bounds = array<i64: 128, 48>}, {pipeline_mode = #tpu.pipeline_mode<synchronous>, transform_indices = @transform_1, window_bounds = array<i64: 48, 128>}, {pipeline_mode = #tpu.pipeline_mode<synchronous>, transform_indices = @transform_2, window_bounds = array<i64: 1, 128>}, {pipeline_mode = #tpu.pipeline_mode<synchronous>, transform_indices = @transform_3, window_bounds = array<i64: 1, 128>}, {pipeline_mode = #tpu.pipeline_mode<synchronous>, transform_indices = @transform_4, window_bounds = array<i64: 128, 128>}, {pipeline_mode = #tpu.pipeline_mode<synchronous>, transform_indices = @transform_5, window_bounds = array<i64: 128, 128>}]} {
    %c0 = arith.constant 0 : index
    %c0_0 = arith.constant 0 : index
    %0 = vector.load %arg1[%c0, %c0_0] : memref<128x48xbf16, #tpu.memory_space<vmem>>, vector<128x48xbf16>
    %c0_1 = arith.constant 0 : index
    %c0_2 = arith.constant 0 : index
    %1 = vector.load %arg2[%c0_1, %c0_2] : memref<48x128xbf16, #tpu.memory_space<vmem>>, vector<48x128xbf16>
    %cst = arith.constant dense<0.000000e+00> : vector<128x128xf32>
    %2 = tpu.matmul %0, %1, %cst {dimension_numbers = #tpu.dot_dimension_numbers<[1], [0], [0], [1], [0, 0, 1, 1], [], []>} : vector<128x48xbf16>, vector<48x128xbf16>, vector<128x128xf32> -> vector<128x128xf32>
    %c0_3 = arith.constant 0 : index
    %c0_4 = arith.constant 0 : index
    %3 = vector.load %arg5[%c0_3, %c0_4] : memref<128x128xf32, #tpu.memory_space<vmem>>, vector<128x128xf32>
    %cst_5 = arith.constant 0.000000e+00 : f32
    %4 = vector.broadcast %cst_5 : f32 to vector<1x128xf32>
    %5 = arith.mulf %2, %3 : vector<128x128xf32>
    %cst_6 = arith.constant dense<0.000000e+00> : vector<128xf32>
    %6 = vector.multi_reduction <add>, %5, %cst_6 [0] : vector<128x128xf32> to vector<128xf32>
    %7 = vector.shape_cast %6 : vector<128xf32> to vector<1x128xf32>
    %8 = arith.addf %4, %7 : vector<1x128xf32>
    %cst_7 = arith.constant 7.812500e-03 : f32
    %9 = vector.broadcast %cst_7 : f32 to vector<1x128xf32>
    %10 = arith.mulf %8, %9 : vector<1x128xf32>
    %cst_8 = arith.constant 0.000000e+00 : f32
    %11 = vector.broadcast %cst_8 : f32 to vector<1x128xf32>
    %12 = vector.broadcast %10 : vector<1x128xf32> to vector<128x128xf32>
    %13 = arith.subf %2, %12 : vector<128x128xf32>
    %14 = arith.mulf %13, %3 : vector<128x128xf32>
    %15 = arith.mulf %14, %14 : vector<128x128xf32>
    %cst_9 = arith.constant dense<0.000000e+00> : vector<128xf32>
    %16 = vector.multi_reduction <add>, %15, %cst_9 [0] : vector<128x128xf32> to vector<128xf32>
    %17 = vector.shape_cast %16 : vector<128xf32> to vector<1x128xf32>
    %18 = arith.addf %11, %17 : vector<1x128xf32>
    %cst_10 = arith.constant 7.812500e-03 : f32
    %19 = vector.broadcast %cst_10 : f32 to vector<1x128xf32>
    %20 = arith.mulf %18, %19 : vector<1x128xf32>
    %c0_11 = arith.constant 0 : index
    %c0_12 = arith.constant 0 : index
    %21 = vector.load %arg3[%c0_11, %c0_12] : memref<1x128xf32, #tpu.memory_space<vmem>>, vector<1x128xf32>
    %cst_13 = arith.constant 9.99999974E-6 : f32
    %22 = vector.broadcast %cst_13 : f32 to vector<1x128xf32>
    %23 = arith.addf %20, %22 : vector<1x128xf32>
    %24 = math.rsqrt %23 : vector<1x128xf32>
    %25 = arith.mulf %21, %24 : vector<1x128xf32>
    %c0_14 = arith.constant 0 : index
    %c0_15 = arith.constant 0 : index
    %26 = vector.load %arg4[%c0_14, %c0_15] : memref<1x128xf32, #tpu.memory_space<vmem>>, vector<1x128xf32>
    %27 = arith.mulf %10, %25 : vector<1x128xf32>
    %28 = arith.subf %26, %27 : vector<1x128xf32>
    %29 = vector.broadcast %25 : vector<1x128xf32> to vector<128x128xf32>
    %30 = arith.mulf %2, %29 : vector<128x128xf32>
    %31 = vector.broadcast %28 : vector<1x128xf32> to vector<128x128xf32>
    %32 = arith.addf %30, %31 : vector<128x128xf32>
    %cst_16 = arith.constant 0.000000e+00 : f32
    %33 = vector.broadcast %cst_16 : f32 to vector<128x128xf32>
    %34 = arith.cmpf oge, %32, %33 : vector<128x128xf32>
    %cst_17 = arith.constant 0.00999999977 : f32
    %35 = vector.broadcast %cst_17 : f32 to vector<128x128xf32>
    %36 = arith.mulf %35, %32 : vector<128x128xf32>
    %37 = arith.select %34, %32, %36 : vector<128x128xi1>, vector<128x128xf32>
    %c0_18 = arith.constant 0 : index
    %c0_19 = arith.constant 0 : index
    %38 = vector.load %arg6[%c0_18, %c0_19] : memref<128x128xf32, #tpu.memory_space<vmem>>, vector<128x128xf32>
    tpu.vector_store %arg6[%c0_18, %c0_19], %37 {strides = array<i32>} : memref<128x128xf32, #tpu.memory_space<vmem>>, vector<128x128xf32>,
    return
  }
  func.func @transform_0(%arg0: i32) -> (i32, i32) {
    %c0_i32 = arith.constant 0 : i32
    %c0_i32_0 = arith.constant 0 : i32
    %c0_i32_1 = arith.constant 0 : i32
    return %c0_i32, %c0_i32_0 : i32, i32
  }
  func.func @transform_1(%arg0: i32) -> (i32, i32) {
    %c0_i32 = arith.constant 0 : i32
    %c0_i32_0 = arith.constant 0 : i32
    %c0_i32_1 = arith.constant 0 : i32
    return %c0_i32, %c0_i32_0 : i32, i32
  }
  func.func @transform_2(%arg0: i32) -> (i32, i32) {
    %c0_i32 = arith.constant 0 : i32
    %c0_i32_0 = arith.constant 0 : i32
    %c0_i32_1 = arith.constant 0 : i32
    return %c0_i32, %c0_i32_0 : i32, i32
  }
  func.func @transform_3(%arg0: i32) -> (i32, i32) {
    %c0_i32 = arith.constant 0 : i32
    %c0_i32_0 = arith.constant 0 : i32
    %c0_i32_1 = arith.constant 0 : i32
    return %c0_i32, %c0_i32_0 : i32, i32
  }
  func.func @transform_4(%arg0: i32) -> (i32, i32) {
    %c0_i32 = arith.constant 0 : i32
    %c0_i32_0 = arith.constant 0 : i32
    %c0_i32_1 = arith.constant 0 : i32
    return %c0_i32, %c0_i32_0 : i32, i32
  }
  func.func @transform_5(%arg0: i32) -> (i32, i32) {
    %c0_i32 = arith.constant 0 : i32
    %c0_i32_0 = arith.constant 0 : i32
    %c0_i32_1 = arith.constant 0 : i32
    return %c0_i32, %c0_i32_0 : i32, i32
  }
}

module attributes {stable_mosaic.version = 11 : i64} {
  func.func @_gemm_bn_act_kernel(%arg0: i32, %arg1: memref<32x256xbf16, #tpu.memory_space<vmem>>, %arg2: memref<256x128xbf16, #tpu.memory_space<vmem>>, %arg3: memref<1x128xf32, #tpu.memory_space<vmem>>, %arg4: memref<1x128xf32, #tpu.memory_space<vmem>>, %arg5: memref<32x128xf32, #tpu.memory_space<vmem>>, %arg6: memref<32x128xf32, #tpu.memory_space<vmem>>) attributes {dimension_semantics = [#tpu.dimension_semantics<arbitrary>], iteration_bounds = array<i64: 1>, scalar_prefetch = 0 : i64, scratch_operands = 0 : i64, tpu.core_type = #tpu.core_type<tc>, window_params = [{pipeline_mode = #tpu.pipeline_mode<synchronous>, transform_indices = @transform_0, window_bounds = array<i64: 32, 256>}, {pipeline_mode = #tpu.pipeline_mode<synchronous>, transform_indices = @transform_1, window_bounds = array<i64: 256, 128>}, {pipeline_mode = #tpu.pipeline_mode<synchronous>, transform_indices = @transform_2, window_bounds = array<i64: 1, 128>}, {pipeline_mode = #tpu.pipeline_mode<synchronous>, transform_indices = @transform_3, window_bounds = array<i64: 1, 128>}, {pipeline_mode = #tpu.pipeline_mode<synchronous>, transform_indices = @transform_4, window_bounds = array<i64: 32, 128>}, {pipeline_mode = #tpu.pipeline_mode<synchronous>, transform_indices = @transform_5, window_bounds = array<i64: 32, 128>}]} {
    %c0 = arith.constant 0 : index
    %c0_0 = arith.constant 0 : index
    %0 = vector.load %arg1[%c0, %c0_0] : memref<32x256xbf16, #tpu.memory_space<vmem>>, vector<32x256xbf16>
    %c0_1 = arith.constant 0 : index
    %c0_2 = arith.constant 0 : index
    %1 = vector.load %arg2[%c0_1, %c0_2] : memref<256x128xbf16, #tpu.memory_space<vmem>>, vector<256x128xbf16>
    %cst = arith.constant dense<0.000000e+00> : vector<32x128xf32>
    %2 = tpu.matmul %0, %1, %cst {dimension_numbers = #tpu.dot_dimension_numbers<[1], [0], [0], [1], [0, 0, 1, 1], [], []>} : vector<32x256xbf16>, vector<256x128xbf16>, vector<32x128xf32> -> vector<32x128xf32>
    %c0_3 = arith.constant 0 : index
    %c0_4 = arith.constant 0 : index
    %3 = vector.load %arg5[%c0_3, %c0_4] : memref<32x128xf32, #tpu.memory_space<vmem>>, vector<32x128xf32>
    %cst_5 = arith.constant 0.000000e+00 : f32
    %4 = vector.broadcast %cst_5 : f32 to vector<1x128xf32>
    %5 = arith.mulf %2, %3 : vector<32x128xf32>
    %cst_6 = arith.constant dense<0.000000e+00> : vector<128xf32>
    %6 = vector.multi_reduction <add>, %5, %cst_6 [0] : vector<32x128xf32> to vector<128xf32>
    %7 = vector.shape_cast %6 : vector<128xf32> to vector<1x128xf32>
    %8 = arith.addf %4, %7 : vector<1x128xf32>
    %cst_7 = arith.constant 3.125000e-02 : f32
    %9 = vector.broadcast %cst_7 : f32 to vector<1x128xf32>
    %10 = arith.mulf %8, %9 : vector<1x128xf32>
    %cst_8 = arith.constant 0.000000e+00 : f32
    %11 = vector.broadcast %cst_8 : f32 to vector<1x128xf32>
    %12 = vector.broadcast %10 : vector<1x128xf32> to vector<32x128xf32>
    %13 = arith.subf %2, %12 : vector<32x128xf32>
    %14 = arith.mulf %13, %3 : vector<32x128xf32>
    %15 = arith.mulf %14, %14 : vector<32x128xf32>
    %cst_9 = arith.constant dense<0.000000e+00> : vector<128xf32>
    %16 = vector.multi_reduction <add>, %15, %cst_9 [0] : vector<32x128xf32> to vector<128xf32>
    %17 = vector.shape_cast %16 : vector<128xf32> to vector<1x128xf32>
    %18 = arith.addf %11, %17 : vector<1x128xf32>
    %cst_10 = arith.constant 3.125000e-02 : f32
    %19 = vector.broadcast %cst_10 : f32 to vector<1x128xf32>
    %20 = arith.mulf %18, %19 : vector<1x128xf32>
    %c0_11 = arith.constant 0 : index
    %c0_12 = arith.constant 0 : index
    %21 = vector.load %arg3[%c0_11, %c0_12] : memref<1x128xf32, #tpu.memory_space<vmem>>, vector<1x128xf32>
    %cst_13 = arith.constant 9.99999974E-6 : f32
    %22 = vector.broadcast %cst_13 : f32 to vector<1x128xf32>
    %23 = arith.addf %20, %22 : vector<1x128xf32>
    %24 = math.rsqrt %23 : vector<1x128xf32>
    %25 = arith.mulf %21, %24 : vector<1x128xf32>
    %c0_14 = arith.constant 0 : index
    %c0_15 = arith.constant 0 : index
    %26 = vector.load %arg4[%c0_14, %c0_15] : memref<1x128xf32, #tpu.memory_space<vmem>>, vector<1x128xf32>
    %27 = arith.mulf %10, %25 : vector<1x128xf32>
    %28 = arith.subf %26, %27 : vector<1x128xf32>
    %29 = vector.broadcast %25 : vector<1x128xf32> to vector<32x128xf32>
    %30 = arith.mulf %2, %29 : vector<32x128xf32>
    %31 = vector.broadcast %28 : vector<1x128xf32> to vector<32x128xf32>
    %32 = arith.addf %30, %31 : vector<32x128xf32>
    %cst_16 = arith.constant 0.000000e+00 : f32
    %33 = vector.broadcast %cst_16 : f32 to vector<32x128xf32>
    %34 = arith.cmpf oge, %32, %33 : vector<32x128xf32>
    %cst_17 = arith.constant 0.00999999977 : f32
    %35 = vector.broadcast %cst_17 : f32 to vector<32x128xf32>
    %36 = arith.mulf %35, %32 : vector<32x128xf32>
    %37 = arith.select %34, %32, %36 : vector<32x128xi1>, vector<32x128xf32>
    %c0_18 = arith.constant 0 : index
    %c0_19 = arith.constant 0 : index
    %38 = vector.load %arg6[%c0_18, %c0_19] : memref<32x128xf32, #tpu.memory_space<vmem>>, vector<32x128xf32>
    tpu.vector_store %arg6[%c0_18, %c0_19], %37 {strides = array<i32>} : memref<32x128xf32, #tpu.memory_space<vmem>>, vector<32x128xf32>,
    return
  }
  func.func @transform_0(%arg0: i32) -> (i32, i32) {
    %c0_i32 = arith.constant 0 : i32
    %c0_i32_0 = arith.constant 0 : i32
    %c0_i32_1 = arith.constant 0 : i32
    return %c0_i32, %c0_i32_0 : i32, i32
  }
  func.func @transform_1(%arg0: i32) -> (i32, i32) {
    %c0_i32 = arith.constant 0 : i32
    %c0_i32_0 = arith.constant 0 : i32
    %c0_i32_1 = arith.constant 0 : i32
    return %c0_i32, %c0_i32_0 : i32, i32
  }
  func.func @transform_2(%arg0: i32) -> (i32, i32) {
    %c0_i32 = arith.constant 0 : i32
    %c0_i32_0 = arith.constant 0 : i32
    %c0_i32_1 = arith.constant 0 : i32
    return %c0_i32, %c0_i32_0 : i32, i32
  }
  func.func @transform_3(%arg0: i32) -> (i32, i32) {
    %c0_i32 = arith.constant 0 : i32
    %c0_i32_0 = arith.constant 0 : i32
    %c0_i32_1 = arith.constant 0 : i32
    return %c0_i32, %c0_i32_0 : i32, i32
  }
  func.func @transform_4(%arg0: i32) -> (i32, i32) {
    %c0_i32 = arith.constant 0 : i32
    %c0_i32_0 = arith.constant 0 : i32
    %c0_i32_1 = arith.constant 0 : i32
    return %c0_i32, %c0_i32_0 : i32, i32
  }
  func.func @transform_5(%arg0: i32) -> (i32, i32) {
    %c0_i32 = arith.constant 0 : i32
    %c0_i32_0 = arith.constant 0 : i32
    %c0_i32_1 = arith.constant 0 : i32
    return %c0_i32, %c0_i32_0 : i32, i32
  }
}

module attributes {stable_mosaic.version = 11 : i64} {
  func.func @_gemm_bn_act_kernel(%arg0: i32, %arg1: memref<8x512xbf16, #tpu.memory_space<vmem>>, %arg2: memref<512x128xbf16, #tpu.memory_space<vmem>>, %arg3: memref<1x128xf32, #tpu.memory_space<vmem>>, %arg4: memref<1x128xf32, #tpu.memory_space<vmem>>, %arg5: memref<8x128xf32, #tpu.memory_space<vmem>>, %arg6: memref<8x128xf32, #tpu.memory_space<vmem>>) attributes {dimension_semantics = [#tpu.dimension_semantics<arbitrary>], iteration_bounds = array<i64: 1>, scalar_prefetch = 0 : i64, scratch_operands = 0 : i64, tpu.core_type = #tpu.core_type<tc>, window_params = [{pipeline_mode = #tpu.pipeline_mode<synchronous>, transform_indices = @transform_0, window_bounds = array<i64: 8, 512>}, {pipeline_mode = #tpu.pipeline_mode<synchronous>, transform_indices = @transform_1, window_bounds = array<i64: 512, 128>}, {pipeline_mode = #tpu.pipeline_mode<synchronous>, transform_indices = @transform_2, window_bounds = array<i64: 1, 128>}, {pipeline_mode = #tpu.pipeline_mode<synchronous>, transform_indices = @transform_3, window_bounds = array<i64: 1, 128>}, {pipeline_mode = #tpu.pipeline_mode<synchronous>, transform_indices = @transform_4, window_bounds = array<i64: 8, 128>}, {pipeline_mode = #tpu.pipeline_mode<synchronous>, transform_indices = @transform_5, window_bounds = array<i64: 8, 128>}]} {
    %c0 = arith.constant 0 : index
    %c0_0 = arith.constant 0 : index
    %0 = vector.load %arg1[%c0, %c0_0] : memref<8x512xbf16, #tpu.memory_space<vmem>>, vector<8x512xbf16>
    %c0_1 = arith.constant 0 : index
    %c0_2 = arith.constant 0 : index
    %1 = vector.load %arg2[%c0_1, %c0_2] : memref<512x128xbf16, #tpu.memory_space<vmem>>, vector<512x128xbf16>
    %cst = arith.constant dense<0.000000e+00> : vector<8x128xf32>
    %2 = tpu.matmul %0, %1, %cst {dimension_numbers = #tpu.dot_dimension_numbers<[1], [0], [0], [1], [0, 0, 1, 1], [], []>} : vector<8x512xbf16>, vector<512x128xbf16>, vector<8x128xf32> -> vector<8x128xf32>
    %c0_3 = arith.constant 0 : index
    %c0_4 = arith.constant 0 : index
    %3 = vector.load %arg5[%c0_3, %c0_4] : memref<8x128xf32, #tpu.memory_space<vmem>>, vector<8x128xf32>
    %cst_5 = arith.constant 0.000000e+00 : f32
    %4 = vector.broadcast %cst_5 : f32 to vector<1x128xf32>
    %5 = arith.mulf %2, %3 : vector<8x128xf32>
    %cst_6 = arith.constant dense<0.000000e+00> : vector<128xf32>
    %6 = vector.multi_reduction <add>, %5, %cst_6 [0] : vector<8x128xf32> to vector<128xf32>
    %7 = vector.shape_cast %6 : vector<128xf32> to vector<1x128xf32>
    %8 = arith.addf %4, %7 : vector<1x128xf32>
    %cst_7 = arith.constant 1.250000e-01 : f32
    %9 = vector.broadcast %cst_7 : f32 to vector<1x128xf32>
    %10 = arith.mulf %8, %9 : vector<1x128xf32>
    %cst_8 = arith.constant 0.000000e+00 : f32
    %11 = vector.broadcast %cst_8 : f32 to vector<1x128xf32>
    %12 = vector.broadcast %10 : vector<1x128xf32> to vector<8x128xf32>
    %13 = arith.subf %2, %12 : vector<8x128xf32>
    %14 = arith.mulf %13, %3 : vector<8x128xf32>
    %15 = arith.mulf %14, %14 : vector<8x128xf32>
    %cst_9 = arith.constant dense<0.000000e+00> : vector<128xf32>
    %16 = vector.multi_reduction <add>, %15, %cst_9 [0] : vector<8x128xf32> to vector<128xf32>
    %17 = vector.shape_cast %16 : vector<128xf32> to vector<1x128xf32>
    %18 = arith.addf %11, %17 : vector<1x128xf32>
    %cst_10 = arith.constant 1.250000e-01 : f32
    %19 = vector.broadcast %cst_10 : f32 to vector<1x128xf32>
    %20 = arith.mulf %18, %19 : vector<1x128xf32>
    %c0_11 = arith.constant 0 : index
    %c0_12 = arith.constant 0 : index
    %21 = vector.load %arg3[%c0_11, %c0_12] : memref<1x128xf32, #tpu.memory_space<vmem>>, vector<1x128xf32>
    %cst_13 = arith.constant 9.99999974E-6 : f32
    %22 = vector.broadcast %cst_13 : f32 to vector<1x128xf32>
    %23 = arith.addf %20, %22 : vector<1x128xf32>
    %24 = math.rsqrt %23 : vector<1x128xf32>
    %25 = arith.mulf %21, %24 : vector<1x128xf32>
    %c0_14 = arith.constant 0 : index
    %c0_15 = arith.constant 0 : index
    %26 = vector.load %arg4[%c0_14, %c0_15] : memref<1x128xf32, #tpu.memory_space<vmem>>, vector<1x128xf32>
    %27 = arith.mulf %10, %25 : vector<1x128xf32>
    %28 = arith.subf %26, %27 : vector<1x128xf32>
    %29 = vector.broadcast %25 : vector<1x128xf32> to vector<8x128xf32>
    %30 = arith.mulf %2, %29 : vector<8x128xf32>
    %31 = vector.broadcast %28 : vector<1x128xf32> to vector<8x128xf32>
    %32 = arith.addf %30, %31 : vector<8x128xf32>
    %cst_16 = arith.constant 0.000000e+00 : f32
    %33 = vector.broadcast %cst_16 : f32 to vector<8x128xf32>
    %34 = arith.cmpf oge, %32, %33 : vector<8x128xf32>
    %cst_17 = arith.constant 0.00999999977 : f32
    %35 = vector.broadcast %cst_17 : f32 to vector<8x128xf32>
    %36 = arith.mulf %35, %32 : vector<8x128xf32>
    %37 = arith.select %34, %32, %36 : vector<8x128xi1>, vector<8x128xf32>
    %c0_18 = arith.constant 0 : index
    %c0_19 = arith.constant 0 : index
    %38 = vector.load %arg6[%c0_18, %c0_19] : memref<8x128xf32, #tpu.memory_space<vmem>>, vector<8x128xf32>
    tpu.vector_store %arg6[%c0_18, %c0_19], %37 {strides = array<i32>} : memref<8x128xf32, #tpu.memory_space<vmem>>, vector<8x128xf32>,
    return
  }
  func.func @transform_0(%arg0: i32) -> (i32, i32) {
    %c0_i32 = arith.constant 0 : i32
    %c0_i32_0 = arith.constant 0 : i32
    %c0_i32_1 = arith.constant 0 : i32
    return %c0_i32, %c0_i32_0 : i32, i32
  }
  func.func @transform_1(%arg0: i32) -> (i32, i32) {
    %c0_i32 = arith.constant 0 : i32
    %c0_i32_0 = arith.constant 0 : i32
    %c0_i32_1 = arith.constant 0 : i32
    return %c0_i32, %c0_i32_0 : i32, i32
  }
  func.func @transform_2(%arg0: i32) -> (i32, i32) {
    %c0_i32 = arith.constant 0 : i32
    %c0_i32_0 = arith.constant 0 : i32
    %c0_i32_1 = arith.constant 0 : i32
    return %c0_i32, %c0_i32_0 : i32, i32
  }
  func.func @transform_3(%arg0: i32) -> (i32, i32) {
    %c0_i32 = arith.constant 0 : i32
    %c0_i32_0 = arith.constant 0 : i32
    %c0_i32_1 = arith.constant 0 : i32
    return %c0_i32, %c0_i32_0 : i32, i32
  }
  func.func @transform_4(%arg0: i32) -> (i32, i32) {
    %c0_i32 = arith.constant 0 : i32
    %c0_i32_0 = arith.constant 0 : i32
    %c0_i32_1 = arith.constant 0 : i32
    return %c0_i32, %c0_i32_0 : i32, i32
  }
  func.func @transform_5(%arg0: i32) -> (i32, i32) {
    %c0_i32 = arith.constant 0 : i32
    %c0_i32_0 = arith.constant 0 : i32
    %c0_i32_1 = arith.constant 0 : i32
    return %c0_i32, %c0_i32_0 : i32, i32
  }
}

module attributes {stable_mosaic.version = 11 : i64} {
  func.func @_gemm_bn_act_kernel(%arg0: i32, %arg1: memref<24x256xbf16, #tpu.memory_space<vmem>>, %arg2: memref<256x512xbf16, #tpu.memory_space<vmem>>, %arg3: memref<1x128xf32, #tpu.memory_space<vmem>>, %arg4: memref<1x128xf32, #tpu.memory_space<vmem>>, %arg5: memref<24x512xf32, #tpu.memory_space<vmem>>, %arg6: memref<24x512xf32, #tpu.memory_space<vmem>>) attributes {dimension_semantics = [#tpu.dimension_semantics<arbitrary>], iteration_bounds = array<i64: 1>, scalar_prefetch = 0 : i64, scratch_operands = 0 : i64, tpu.core_type = #tpu.core_type<tc>, window_params = [{pipeline_mode = #tpu.pipeline_mode<synchronous>, transform_indices = @transform_0, window_bounds = array<i64: 24, 256>}, {pipeline_mode = #tpu.pipeline_mode<synchronous>, transform_indices = @transform_1, window_bounds = array<i64: 256, 512>}, {pipeline_mode = #tpu.pipeline_mode<synchronous>, transform_indices = @transform_2, window_bounds = array<i64: 1, 128>}, {pipeline_mode = #tpu.pipeline_mode<synchronous>, transform_indices = @transform_3, window_bounds = array<i64: 1, 128>}, {pipeline_mode = #tpu.pipeline_mode<synchronous>, transform_indices = @transform_4, window_bounds = array<i64: 24, 512>}, {pipeline_mode = #tpu.pipeline_mode<synchronous>, transform_indices = @transform_5, window_bounds = array<i64: 24, 512>}]} {
    %c0 = arith.constant 0 : index
    %c0_0 = arith.constant 0 : index
    %0 = vector.load %arg1[%c0, %c0_0] : memref<24x256xbf16, #tpu.memory_space<vmem>>, vector<24x256xbf16>
    %c0_1 = arith.constant 0 : index
    %c0_2 = arith.constant 0 : index
    %1 = vector.load %arg2[%c0_1, %c0_2] : memref<256x512xbf16, #tpu.memory_space<vmem>>, vector<256x512xbf16>
    %cst = arith.constant dense<0.000000e+00> : vector<24x512xf32>
    %2 = tpu.matmul %0, %1, %cst {dimension_numbers = #tpu.dot_dimension_numbers<[1], [0], [0], [1], [0, 0, 1, 1], [], []>} : vector<24x256xbf16>, vector<256x512xbf16>, vector<24x512xf32> -> vector<24x512xf32>
    %c0_3 = arith.constant 0 : index
    %c0_4 = arith.constant 0 : index
    %3 = vector.load %arg5[%c0_3, %c0_4] : memref<24x512xf32, #tpu.memory_space<vmem>>, vector<24x512xf32>
    %cst_5 = arith.constant 0.000000e+00 : f32
    %4 = vector.broadcast %cst_5 : f32 to vector<1x128xf32>
    %5 = vector.extract_strided_slice %2 {offsets = [0, 0], sizes = [24, 128], strides = [1, 1]} : vector<24x512xf32> to vector<24x128xf32>
    %6 = vector.extract_strided_slice %3 {offsets = [0, 0], sizes = [24, 128], strides = [1, 1]} : vector<24x512xf32> to vector<24x128xf32>
    %7 = arith.mulf %5, %6 : vector<24x128xf32>
    %cst_6 = arith.constant dense<0.000000e+00> : vector<128xf32>
    %8 = vector.multi_reduction <add>, %7, %cst_6 [0] : vector<24x128xf32> to vector<128xf32>
    %9 = vector.shape_cast %8 : vector<128xf32> to vector<1x128xf32>
    %10 = arith.addf %4, %9 : vector<1x128xf32>
    %11 = vector.extract_strided_slice %2 {offsets = [0, 128], sizes = [24, 128], strides = [1, 1]} : vector<24x512xf32> to vector<24x128xf32>
    %12 = vector.extract_strided_slice %3 {offsets = [0, 128], sizes = [24, 128], strides = [1, 1]} : vector<24x512xf32> to vector<24x128xf32>
    %13 = arith.mulf %11, %12 : vector<24x128xf32>
    %cst_7 = arith.constant dense<0.000000e+00> : vector<128xf32>
    %14 = vector.multi_reduction <add>, %13, %cst_7 [0] : vector<24x128xf32> to vector<128xf32>
    %15 = vector.shape_cast %14 : vector<128xf32> to vector<1x128xf32>
    %16 = arith.addf %10, %15 : vector<1x128xf32>
    %17 = vector.extract_strided_slice %2 {offsets = [0, 256], sizes = [24, 128], strides = [1, 1]} : vector<24x512xf32> to vector<24x128xf32>
    %18 = vector.extract_strided_slice %3 {offsets = [0, 256], sizes = [24, 128], strides = [1, 1]} : vector<24x512xf32> to vector<24x128xf32>
    %19 = arith.mulf %17, %18 : vector<24x128xf32>
    %cst_8 = arith.constant dense<0.000000e+00> : vector<128xf32>
    %20 = vector.multi_reduction <add>, %19, %cst_8 [0] : vector<24x128xf32> to vector<128xf32>
    %21 = vector.shape_cast %20 : vector<128xf32> to vector<1x128xf32>
    %22 = arith.addf %16, %21 : vector<1x128xf32>
    %23 = vector.extract_strided_slice %2 {offsets = [0, 384], sizes = [24, 128], strides = [1, 1]} : vector<24x512xf32> to vector<24x128xf32>
    %24 = vector.extract_strided_slice %3 {offsets = [0, 384], sizes = [24, 128], strides = [1, 1]} : vector<24x512xf32> to vector<24x128xf32>
    %25 = arith.mulf %23, %24 : vector<24x128xf32>
    %cst_9 = arith.constant dense<0.000000e+00> : vector<128xf32>
    %26 = vector.multi_reduction <add>, %25, %cst_9 [0] : vector<24x128xf32> to vector<128xf32>
    %27 = vector.shape_cast %26 : vector<128xf32> to vector<1x128xf32>
    %28 = arith.addf %22, %27 : vector<1x128xf32>
    %cst_10 = arith.constant 3.125000e-02 : f32
    %29 = vector.broadcast %cst_10 : f32 to vector<1x128xf32>
    %30 = arith.mulf %28, %29 : vector<1x128xf32>
    %cst_11 = arith.constant 0.000000e+00 : f32
    %31 = vector.broadcast %cst_11 : f32 to vector<1x128xf32>
    %32 = vector.extract_strided_slice %2 {offsets = [0, 0], sizes = [24, 128], strides = [1, 1]} : vector<24x512xf32> to vector<24x128xf32>
    %33 = vector.broadcast %30 : vector<1x128xf32> to vector<24x128xf32>
    %34 = arith.subf %32, %33 : vector<24x128xf32>
    %35 = vector.extract_strided_slice %3 {offsets = [0, 0], sizes = [24, 128], strides = [1, 1]} : vector<24x512xf32> to vector<24x128xf32>
    %36 = arith.mulf %34, %35 : vector<24x128xf32>
    %37 = arith.mulf %36, %36 : vector<24x128xf32>
    %cst_12 = arith.constant dense<0.000000e+00> : vector<128xf32>
    %38 = vector.multi_reduction <add>, %37, %cst_12 [0] : vector<24x128xf32> to vector<128xf32>
    %39 = vector.shape_cast %38 : vector<128xf32> to vector<1x128xf32>
    %40 = arith.addf %31, %39 : vector<1x128xf32>
    %41 = vector.extract_strided_slice %2 {offsets = [0, 128], sizes = [24, 128], strides = [1, 1]} : vector<24x512xf32> to vector<24x128xf32>
    %42 = vector.broadcast %30 : vector<1x128xf32> to vector<24x128xf32>
    %43 = arith.subf %41, %42 : vector<24x128xf32>
    %44 = vector.extract_strided_slice %3 {offsets = [0, 128], sizes = [24, 128], strides = [1, 1]} : vector<24x512xf32> to vector<24x128xf32>
    %45 = arith.mulf %43, %44 : vector<24x128xf32>
    %46 = arith.mulf %45, %45 : vector<24x128xf32>
    %cst_13 = arith.constant dense<0.000000e+00> : vector<128xf32>
    %47 = vector.multi_reduction <add>, %46, %cst_13 [0] : vector<24x128xf32> to vector<128xf32>
    %48 = vector.shape_cast %47 : vector<128xf32> to vector<1x128xf32>
    %49 = arith.addf %40, %48 : vector<1x128xf32>
    %50 = vector.extract_strided_slice %2 {offsets = [0, 256], sizes = [24, 128], strides = [1, 1]} : vector<24x512xf32> to vector<24x128xf32>
    %51 = vector.broadcast %30 : vector<1x128xf32> to vector<24x128xf32>
    %52 = arith.subf %50, %51 : vector<24x128xf32>
    %53 = vector.extract_strided_slice %3 {offsets = [0, 256], sizes = [24, 128], strides = [1, 1]} : vector<24x512xf32> to vector<24x128xf32>
    %54 = arith.mulf %52, %53 : vector<24x128xf32>
    %55 = arith.mulf %54, %54 : vector<24x128xf32>
    %cst_14 = arith.constant dense<0.000000e+00> : vector<128xf32>
    %56 = vector.multi_reduction <add>, %55, %cst_14 [0] : vector<24x128xf32> to vector<128xf32>
    %57 = vector.shape_cast %56 : vector<128xf32> to vector<1x128xf32>
    %58 = arith.addf %49, %57 : vector<1x128xf32>
    %59 = vector.extract_strided_slice %2 {offsets = [0, 384], sizes = [24, 128], strides = [1, 1]} : vector<24x512xf32> to vector<24x128xf32>
    %60 = vector.broadcast %30 : vector<1x128xf32> to vector<24x128xf32>
    %61 = arith.subf %59, %60 : vector<24x128xf32>
    %62 = vector.extract_strided_slice %3 {offsets = [0, 384], sizes = [24, 128], strides = [1, 1]} : vector<24x512xf32> to vector<24x128xf32>
    %63 = arith.mulf %61, %62 : vector<24x128xf32>
    %64 = arith.mulf %63, %63 : vector<24x128xf32>
    %cst_15 = arith.constant dense<0.000000e+00> : vector<128xf32>
    %65 = vector.multi_reduction <add>, %64, %cst_15 [0] : vector<24x128xf32> to vector<128xf32>
    %66 = vector.shape_cast %65 : vector<128xf32> to vector<1x128xf32>
    %67 = arith.addf %58, %66 : vector<1x128xf32>
    %cst_16 = arith.constant 3.125000e-02 : f32
    %68 = vector.broadcast %cst_16 : f32 to vector<1x128xf32>
    %69 = arith.mulf %67, %68 : vector<1x128xf32>
    %c0_17 = arith.constant 0 : index
    %c0_18 = arith.constant 0 : index
    %70 = vector.load %arg3[%c0_17, %c0_18] : memref<1x128xf32, #tpu.memory_space<vmem>>, vector<1x128xf32>
    %cst_19 = arith.constant 9.99999974E-6 : f32
    %71 = vector.broadcast %cst_19 : f32 to vector<1x128xf32>
    %72 = arith.addf %69, %71 : vector<1x128xf32>
    %73 = math.rsqrt %72 : vector<1x128xf32>
    %74 = arith.mulf %70, %73 : vector<1x128xf32>
    %c0_20 = arith.constant 0 : index
    %c0_21 = arith.constant 0 : index
    %75 = vector.load %arg4[%c0_20, %c0_21] : memref<1x128xf32, #tpu.memory_space<vmem>>, vector<1x128xf32>
    %76 = arith.mulf %30, %74 : vector<1x128xf32>
    %77 = arith.subf %75, %76 : vector<1x128xf32>
    %78 = vector.extract_strided_slice %2 {offsets = [0, 0], sizes = [24, 128], strides = [1, 1]} : vector<24x512xf32> to vector<24x128xf32>
    %79 = vector.broadcast %74 : vector<1x128xf32> to vector<24x128xf32>
    %80 = arith.mulf %78, %79 : vector<24x128xf32>
    %81 = vector.broadcast %77 : vector<1x128xf32> to vector<24x128xf32>
    %82 = arith.addf %80, %81 : vector<24x128xf32>
    %cst_22 = arith.constant 0.000000e+00 : f32
    %83 = vector.broadcast %cst_22 : f32 to vector<24x128xf32>
    %84 = arith.maximumf %82, %83 : vector<24x128xf32>
    %c0_23 = arith.constant 0 : index
    %c0_24 = arith.constant 0 : index
    %85 = vector.load %arg6[%c0_23, %c0_24] : memref<24x512xf32, #tpu.memory_space<vmem>>, vector<24x128xf32>
    tpu.vector_store %arg6[%c0_23, %c0_24], %84 {strides = array<i32>} : memref<24x512xf32, #tpu.memory_space<vmem>>, vector<24x128xf32>,
    %86 = vector.extract_strided_slice %2 {offsets = [0, 128], sizes = [24, 128], strides = [1, 1]} : vector<24x512xf32> to vector<24x128xf32>
    %87 = vector.broadcast %74 : vector<1x128xf32> to vector<24x128xf32>
    %88 = arith.mulf %86, %87 : vector<24x128xf32>
    %89 = vector.broadcast %77 : vector<1x128xf32> to vector<24x128xf32>
    %90 = arith.addf %88, %89 : vector<24x128xf32>
    %cst_25 = arith.constant 0.000000e+00 : f32
    %91 = vector.broadcast %cst_25 : f32 to vector<24x128xf32>
    %92 = arith.maximumf %90, %91 : vector<24x128xf32>
    %c0_26 = arith.constant 0 : index
    %c128 = arith.constant 128 : index
    %93 = vector.load %arg6[%c0_26, %c128] : memref<24x512xf32, #tpu.memory_space<vmem>>, vector<24x128xf32>
    tpu.vector_store %arg6[%c0_26, %c128], %92 {strides = array<i32>} : memref<24x512xf32, #tpu.memory_space<vmem>>, vector<24x128xf32>,
    %94 = vector.extract_strided_slice %2 {offsets = [0, 256], sizes = [24, 128], strides = [1, 1]} : vector<24x512xf32> to vector<24x128xf32>
    %95 = vector.broadcast %74 : vector<1x128xf32> to vector<24x128xf32>
    %96 = arith.mulf %94, %95 : vector<24x128xf32>
    %97 = vector.broadcast %77 : vector<1x128xf32> to vector<24x128xf32>
    %98 = arith.addf %96, %97 : vector<24x128xf32>
    %cst_27 = arith.constant 0.000000e+00 : f32
    %99 = vector.broadcast %cst_27 : f32 to vector<24x128xf32>
    %100 = arith.maximumf %98, %99 : vector<24x128xf32>
    %c0_28 = arith.constant 0 : index
    %c256 = arith.constant 256 : index
    %101 = vector.load %arg6[%c0_28, %c256] : memref<24x512xf32, #tpu.memory_space<vmem>>, vector<24x128xf32>
    tpu.vector_store %arg6[%c0_28, %c256], %100 {strides = array<i32>} : memref<24x512xf32, #tpu.memory_space<vmem>>, vector<24x128xf32>,
    %102 = vector.extract_strided_slice %2 {offsets = [0, 384], sizes = [24, 128], strides = [1, 1]} : vector<24x512xf32> to vector<24x128xf32>
    %103 = vector.broadcast %74 : vector<1x128xf32> to vector<24x128xf32>
    %104 = arith.mulf %102, %103 : vector<24x128xf32>
    %105 = vector.broadcast %77 : vector<1x128xf32> to vector<24x128xf32>
    %106 = arith.addf %104, %105 : vector<24x128xf32>
    %cst_29 = arith.constant 0.000000e+00 : f32
    %107 = vector.broadcast %cst_29 : f32 to vector<24x128xf32>
    %108 = arith.maximumf %106, %107 : vector<24x128xf32>
    %c0_30 = arith.constant 0 : index
    %c384 = arith.constant 384 : index
    %109 = vector.load %arg6[%c0_30, %c384] : memref<24x512xf32, #tpu.memory_space<vmem>>, vector<24x128xf32>
    tpu.vector_store %arg6[%c0_30, %c384], %108 {strides = array<i32>} : memref<24x512xf32, #tpu.memory_space<vmem>>, vector<24x128xf32>,
    return
  }
  func.func @transform_0(%arg0: i32) -> (i32, i32) {
    %c0_i32 = arith.constant 0 : i32
    %c0_i32_0 = arith.constant 0 : i32
    %c0_i32_1 = arith.constant 0 : i32
    return %c0_i32, %c0_i32_0 : i32, i32
  }
  func.func @transform_1(%arg0: i32) -> (i32, i32) {
    %c0_i32 = arith.constant 0 : i32
    %c0_i32_0 = arith.constant 0 : i32
    %c0_i32_1 = arith.constant 0 : i32
    return %c0_i32, %c0_i32_0 : i32, i32
  }
  func.func @transform_2(%arg0: i32) -> (i32, i32) {
    %c0_i32 = arith.constant 0 : i32
    %c0_i32_0 = arith.constant 0 : i32
    %c0_i32_1 = arith.constant 0 : i32
    return %c0_i32, %c0_i32_0 : i32, i32
  }
  func.func @transform_3(%arg0: i32) -> (i32, i32) {
    %c0_i32 = arith.constant 0 : i32
    %c0_i32_0 = arith.constant 0 : i32
    %c0_i32_1 = arith.constant 0 : i32
    return %c0_i32, %c0_i32_0 : i32, i32
  }
  func.func @transform_4(%arg0: i32) -> (i32, i32) {
    %c0_i32 = arith.constant 0 : i32
    %c0_i32_0 = arith.constant 0 : i32
    %c0_i32_1 = arith.constant 0 : i32
    return %c0_i32, %c0_i32_0 : i32, i32
  }
  func.func @transform_5(%arg0: i32) -> (i32, i32) {
    %c0_i32 = arith.constant 0 : i32
    %c0_i32_0 = arith.constant 0 : i32
    %c0_i32_1 = arith.constant 0 : i32
    return %c0_i32, %c0_i32_0 : i32, i32
  }
}

module attributes {stable_mosaic.version = 11 : i64} {
  func.func @_gemm_bn_act_kernel(%arg0: i32, %arg1: memref<56x384xbf16, #tpu.memory_space<vmem>>, %arg2: memref<384x512xbf16, #tpu.memory_space<vmem>>, %arg3: memref<1x128xf32, #tpu.memory_space<vmem>>, %arg4: memref<1x128xf32, #tpu.memory_space<vmem>>, %arg5: memref<56x512xf32, #tpu.memory_space<vmem>>, %arg6: memref<56x512xf32, #tpu.memory_space<vmem>>) attributes {dimension_semantics = [#tpu.dimension_semantics<arbitrary>], iteration_bounds = array<i64: 1>, scalar_prefetch = 0 : i64, scratch_operands = 0 : i64, tpu.core_type = #tpu.core_type<tc>, window_params = [{pipeline_mode = #tpu.pipeline_mode<synchronous>, transform_indices = @transform_0, window_bounds = array<i64: 56, 384>}, {pipeline_mode = #tpu.pipeline_mode<synchronous>, transform_indices = @transform_1, window_bounds = array<i64: 384, 512>}, {pipeline_mode = #tpu.pipeline_mode<synchronous>, transform_indices = @transform_2, window_bounds = array<i64: 1, 128>}, {pipeline_mode = #tpu.pipeline_mode<synchronous>, transform_indices = @transform_3, window_bounds = array<i64: 1, 128>}, {pipeline_mode = #tpu.pipeline_mode<synchronous>, transform_indices = @transform_4, window_bounds = array<i64: 56, 512>}, {pipeline_mode = #tpu.pipeline_mode<synchronous>, transform_indices = @transform_5, window_bounds = array<i64: 56, 512>}]} {
    %c0 = arith.constant 0 : index
    %c0_0 = arith.constant 0 : index
    %0 = vector.load %arg1[%c0, %c0_0] : memref<56x384xbf16, #tpu.memory_space<vmem>>, vector<56x384xbf16>
    %c0_1 = arith.constant 0 : index
    %c0_2 = arith.constant 0 : index
    %1 = vector.load %arg2[%c0_1, %c0_2] : memref<384x512xbf16, #tpu.memory_space<vmem>>, vector<384x512xbf16>
    %cst = arith.constant dense<0.000000e+00> : vector<56x512xf32>
    %2 = tpu.matmul %0, %1, %cst {dimension_numbers = #tpu.dot_dimension_numbers<[1], [0], [0], [1], [0, 0, 1, 1], [], []>} : vector<56x384xbf16>, vector<384x512xbf16>, vector<56x512xf32> -> vector<56x512xf32>
    %c0_3 = arith.constant 0 : index
    %c0_4 = arith.constant 0 : index
    %3 = vector.load %arg5[%c0_3, %c0_4] : memref<56x512xf32, #tpu.memory_space<vmem>>, vector<56x512xf32>
    %cst_5 = arith.constant 0.000000e+00 : f32
    %4 = vector.broadcast %cst_5 : f32 to vector<1x128xf32>
    %5 = vector.extract_strided_slice %2 {offsets = [0, 0], sizes = [56, 128], strides = [1, 1]} : vector<56x512xf32> to vector<56x128xf32>
    %6 = vector.extract_strided_slice %3 {offsets = [0, 0], sizes = [56, 128], strides = [1, 1]} : vector<56x512xf32> to vector<56x128xf32>
    %7 = arith.mulf %5, %6 : vector<56x128xf32>
    %cst_6 = arith.constant dense<0.000000e+00> : vector<128xf32>
    %8 = vector.multi_reduction <add>, %7, %cst_6 [0] : vector<56x128xf32> to vector<128xf32>
    %9 = vector.shape_cast %8 : vector<128xf32> to vector<1x128xf32>
    %10 = arith.addf %4, %9 : vector<1x128xf32>
    %11 = vector.extract_strided_slice %2 {offsets = [0, 128], sizes = [56, 128], strides = [1, 1]} : vector<56x512xf32> to vector<56x128xf32>
    %12 = vector.extract_strided_slice %3 {offsets = [0, 128], sizes = [56, 128], strides = [1, 1]} : vector<56x512xf32> to vector<56x128xf32>
    %13 = arith.mulf %11, %12 : vector<56x128xf32>
    %cst_7 = arith.constant dense<0.000000e+00> : vector<128xf32>
    %14 = vector.multi_reduction <add>, %13, %cst_7 [0] : vector<56x128xf32> to vector<128xf32>
    %15 = vector.shape_cast %14 : vector<128xf32> to vector<1x128xf32>
    %16 = arith.addf %10, %15 : vector<1x128xf32>
    %17 = vector.extract_strided_slice %2 {offsets = [0, 256], sizes = [56, 128], strides = [1, 1]} : vector<56x512xf32> to vector<56x128xf32>
    %18 = vector.extract_strided_slice %3 {offsets = [0, 256], sizes = [56, 128], strides = [1, 1]} : vector<56x512xf32> to vector<56x128xf32>
    %19 = arith.mulf %17, %18 : vector<56x128xf32>
    %cst_8 = arith.constant dense<0.000000e+00> : vector<128xf32>
    %20 = vector.multi_reduction <add>, %19, %cst_8 [0] : vector<56x128xf32> to vector<128xf32>
    %21 = vector.shape_cast %20 : vector<128xf32> to vector<1x128xf32>
    %22 = arith.addf %16, %21 : vector<1x128xf32>
    %23 = vector.extract_strided_slice %2 {offsets = [0, 384], sizes = [56, 128], strides = [1, 1]} : vector<56x512xf32> to vector<56x128xf32>
    %24 = vector.extract_strided_slice %3 {offsets = [0, 384], sizes = [56, 128], strides = [1, 1]} : vector<56x512xf32> to vector<56x128xf32>
    %25 = arith.mulf %23, %24 : vector<56x128xf32>
    %cst_9 = arith.constant dense<0.000000e+00> : vector<128xf32>
    %26 = vector.multi_reduction <add>, %25, %cst_9 [0] : vector<56x128xf32> to vector<128xf32>
    %27 = vector.shape_cast %26 : vector<128xf32> to vector<1x128xf32>
    %28 = arith.addf %22, %27 : vector<1x128xf32>
    %cst_10 = arith.constant 7.812500e-03 : f32
    %29 = vector.broadcast %cst_10 : f32 to vector<1x128xf32>
    %30 = arith.mulf %28, %29 : vector<1x128xf32>
    %cst_11 = arith.constant 0.000000e+00 : f32
    %31 = vector.broadcast %cst_11 : f32 to vector<1x128xf32>
    %32 = vector.extract_strided_slice %2 {offsets = [0, 0], sizes = [56, 128], strides = [1, 1]} : vector<56x512xf32> to vector<56x128xf32>
    %33 = vector.broadcast %30 : vector<1x128xf32> to vector<56x128xf32>
    %34 = arith.subf %32, %33 : vector<56x128xf32>
    %35 = vector.extract_strided_slice %3 {offsets = [0, 0], sizes = [56, 128], strides = [1, 1]} : vector<56x512xf32> to vector<56x128xf32>
    %36 = arith.mulf %34, %35 : vector<56x128xf32>
    %37 = arith.mulf %36, %36 : vector<56x128xf32>
    %cst_12 = arith.constant dense<0.000000e+00> : vector<128xf32>
    %38 = vector.multi_reduction <add>, %37, %cst_12 [0] : vector<56x128xf32> to vector<128xf32>
    %39 = vector.shape_cast %38 : vector<128xf32> to vector<1x128xf32>
    %40 = arith.addf %31, %39 : vector<1x128xf32>
    %41 = vector.extract_strided_slice %2 {offsets = [0, 128], sizes = [56, 128], strides = [1, 1]} : vector<56x512xf32> to vector<56x128xf32>
    %42 = vector.broadcast %30 : vector<1x128xf32> to vector<56x128xf32>
    %43 = arith.subf %41, %42 : vector<56x128xf32>
    %44 = vector.extract_strided_slice %3 {offsets = [0, 128], sizes = [56, 128], strides = [1, 1]} : vector<56x512xf32> to vector<56x128xf32>
    %45 = arith.mulf %43, %44 : vector<56x128xf32>
    %46 = arith.mulf %45, %45 : vector<56x128xf32>
    %cst_13 = arith.constant dense<0.000000e+00> : vector<128xf32>
    %47 = vector.multi_reduction <add>, %46, %cst_13 [0] : vector<56x128xf32> to vector<128xf32>
    %48 = vector.shape_cast %47 : vector<128xf32> to vector<1x128xf32>
    %49 = arith.addf %40, %48 : vector<1x128xf32>
    %50 = vector.extract_strided_slice %2 {offsets = [0, 256], sizes = [56, 128], strides = [1, 1]} : vector<56x512xf32> to vector<56x128xf32>
    %51 = vector.broadcast %30 : vector<1x128xf32> to vector<56x128xf32>
    %52 = arith.subf %50, %51 : vector<56x128xf32>
    %53 = vector.extract_strided_slice %3 {offsets = [0, 256], sizes = [56, 128], strides = [1, 1]} : vector<56x512xf32> to vector<56x128xf32>
    %54 = arith.mulf %52, %53 : vector<56x128xf32>
    %55 = arith.mulf %54, %54 : vector<56x128xf32>
    %cst_14 = arith.constant dense<0.000000e+00> : vector<128xf32>
    %56 = vector.multi_reduction <add>, %55, %cst_14 [0] : vector<56x128xf32> to vector<128xf32>
    %57 = vector.shape_cast %56 : vector<128xf32> to vector<1x128xf32>
    %58 = arith.addf %49, %57 : vector<1x128xf32>
    %59 = vector.extract_strided_slice %2 {offsets = [0, 384], sizes = [56, 128], strides = [1, 1]} : vector<56x512xf32> to vector<56x128xf32>
    %60 = vector.broadcast %30 : vector<1x128xf32> to vector<56x128xf32>
    %61 = arith.subf %59, %60 : vector<56x128xf32>
    %62 = vector.extract_strided_slice %3 {offsets = [0, 384], sizes = [56, 128], strides = [1, 1]} : vector<56x512xf32> to vector<56x128xf32>
    %63 = arith.mulf %61, %62 : vector<56x128xf32>
    %64 = arith.mulf %63, %63 : vector<56x128xf32>
    %cst_15 = arith.constant dense<0.000000e+00> : vector<128xf32>
    %65 = vector.multi_reduction <add>, %64, %cst_15 [0] : vector<56x128xf32> to vector<128xf32>
    %66 = vector.shape_cast %65 : vector<128xf32> to vector<1x128xf32>
    %67 = arith.addf %58, %66 : vector<1x128xf32>
    %cst_16 = arith.constant 7.812500e-03 : f32
    %68 = vector.broadcast %cst_16 : f32 to vector<1x128xf32>
    %69 = arith.mulf %67, %68 : vector<1x128xf32>
    %c0_17 = arith.constant 0 : index
    %c0_18 = arith.constant 0 : index
    %70 = vector.load %arg3[%c0_17, %c0_18] : memref<1x128xf32, #tpu.memory_space<vmem>>, vector<1x128xf32>
    %cst_19 = arith.constant 9.99999974E-6 : f32
    %71 = vector.broadcast %cst_19 : f32 to vector<1x128xf32>
    %72 = arith.addf %69, %71 : vector<1x128xf32>
    %73 = math.rsqrt %72 : vector<1x128xf32>
    %74 = arith.mulf %70, %73 : vector<1x128xf32>
    %c0_20 = arith.constant 0 : index
    %c0_21 = arith.constant 0 : index
    %75 = vector.load %arg4[%c0_20, %c0_21] : memref<1x128xf32, #tpu.memory_space<vmem>>, vector<1x128xf32>
    %76 = arith.mulf %30, %74 : vector<1x128xf32>
    %77 = arith.subf %75, %76 : vector<1x128xf32>
    %78 = vector.extract_strided_slice %2 {offsets = [0, 0], sizes = [56, 128], strides = [1, 1]} : vector<56x512xf32> to vector<56x128xf32>
    %79 = vector.broadcast %74 : vector<1x128xf32> to vector<56x128xf32>
    %80 = arith.mulf %78, %79 : vector<56x128xf32>
    %81 = vector.broadcast %77 : vector<1x128xf32> to vector<56x128xf32>
    %82 = arith.addf %80, %81 : vector<56x128xf32>
    %cst_22 = arith.constant 0.000000e+00 : f32
    %83 = vector.broadcast %cst_22 : f32 to vector<56x128xf32>
    %84 = arith.maximumf %82, %83 : vector<56x128xf32>
    %c0_23 = arith.constant 0 : index
    %c0_24 = arith.constant 0 : index
    %85 = vector.load %arg6[%c0_23, %c0_24] : memref<56x512xf32, #tpu.memory_space<vmem>>, vector<56x128xf32>
    tpu.vector_store %arg6[%c0_23, %c0_24], %84 {strides = array<i32>} : memref<56x512xf32, #tpu.memory_space<vmem>>, vector<56x128xf32>,
    %86 = vector.extract_strided_slice %2 {offsets = [0, 128], sizes = [56, 128], strides = [1, 1]} : vector<56x512xf32> to vector<56x128xf32>
    %87 = vector.broadcast %74 : vector<1x128xf32> to vector<56x128xf32>
    %88 = arith.mulf %86, %87 : vector<56x128xf32>
    %89 = vector.broadcast %77 : vector<1x128xf32> to vector<56x128xf32>
    %90 = arith.addf %88, %89 : vector<56x128xf32>
    %cst_25 = arith.constant 0.000000e+00 : f32
    %91 = vector.broadcast %cst_25 : f32 to vector<56x128xf32>
    %92 = arith.maximumf %90, %91 : vector<56x128xf32>
    %c0_26 = arith.constant 0 : index
    %c128 = arith.constant 128 : index
    %93 = vector.load %arg6[%c0_26, %c128] : memref<56x512xf32, #tpu.memory_space<vmem>>, vector<56x128xf32>
    tpu.vector_store %arg6[%c0_26, %c128], %92 {strides = array<i32>} : memref<56x512xf32, #tpu.memory_space<vmem>>, vector<56x128xf32>,
    %94 = vector.extract_strided_slice %2 {offsets = [0, 256], sizes = [56, 128], strides = [1, 1]} : vector<56x512xf32> to vector<56x128xf32>
    %95 = vector.broadcast %74 : vector<1x128xf32> to vector<56x128xf32>
    %96 = arith.mulf %94, %95 : vector<56x128xf32>
    %97 = vector.broadcast %77 : vector<1x128xf32> to vector<56x128xf32>
    %98 = arith.addf %96, %97 : vector<56x128xf32>
    %cst_27 = arith.constant 0.000000e+00 : f32
    %99 = vector.broadcast %cst_27 : f32 to vector<56x128xf32>
    %100 = arith.maximumf %98, %99 : vector<56x128xf32>
    %c0_28 = arith.constant 0 : index
    %c256 = arith.constant 256 : index
    %101 = vector.load %arg6[%c0_28, %c256] : memref<56x512xf32, #tpu.memory_space<vmem>>, vector<56x128xf32>
    tpu.vector_store %arg6[%c0_28, %c256], %100 {strides = array<i32>} : memref<56x512xf32, #tpu.memory_space<vmem>>, vector<56x128xf32>,
    %102 = vector.extract_strided_slice %2 {offsets = [0, 384], sizes = [56, 128], strides = [1, 1]} : vector<56x512xf32> to vector<56x128xf32>
    %103 = vector.broadcast %74 : vector<1x128xf32> to vector<56x128xf32>
    %104 = arith.mulf %102, %103 : vector<56x128xf32>
    %105 = vector.broadcast %77 : vector<1x128xf32> to vector<56x128xf32>
    %106 = arith.addf %104, %105 : vector<56x128xf32>
    %cst_29 = arith.constant 0.000000e+00 : f32
    %107 = vector.broadcast %cst_29 : f32 to vector<56x128xf32>
    %108 = arith.maximumf %106, %107 : vector<56x128xf32>
    %c0_30 = arith.constant 0 : index
    %c384 = arith.constant 384 : index
    %109 = vector.load %arg6[%c0_30, %c384] : memref<56x512xf32, #tpu.memory_space<vmem>>, vector<56x128xf32>
    tpu.vector_store %arg6[%c0_30, %c384], %108 {strides = array<i32>} : memref<56x512xf32, #tpu.memory_space<vmem>>, vector<56x128xf32>,
    return
  }
  func.func @transform_0(%arg0: i32) -> (i32, i32) {
    %c0_i32 = arith.constant 0 : i32
    %c0_i32_0 = arith.constant 0 : i32
    %c0_i32_1 = arith.constant 0 : i32
    return %c0_i32, %c0_i32_0 : i32, i32
  }
  func.func @transform_1(%arg0: i32) -> (i32, i32) {
    %c0_i32 = arith.constant 0 : i32
    %c0_i32_0 = arith.constant 0 : i32
    %c0_i32_1 = arith.constant 0 : i32
    return %c0_i32, %c0_i32_0 : i32, i32
  }
  func.func @transform_2(%arg0: i32) -> (i32, i32) {
    %c0_i32 = arith.constant 0 : i32
    %c0_i32_0 = arith.constant 0 : i32
    %c0_i32_1 = arith.constant 0 : i32
    return %c0_i32, %c0_i32_0 : i32, i32
  }
  func.func @transform_3(%arg0: i32) -> (i32, i32) {
    %c0_i32 = arith.constant 0 : i32
    %c0_i32_0 = arith.constant 0 : i32
    %c0_i32_1 = arith.constant 0 : i32
    return %c0_i32, %c0_i32_0 : i32, i32
  }
  func.func @transform_4(%arg0: i32) -> (i32, i32) {
    %c0_i32 = arith.constant 0 : i32
    %c0_i32_0 = arith.constant 0 : i32
    %c0_i32_1 = arith.constant 0 : i32
    return %c0_i32, %c0_i32_0 : i32, i32
  }
  func.func @transform_5(%arg0: i32) -> (i32, i32) {
    %c0_i32 = arith.constant 0 : i32
    %c0_i32_0 = arith.constant 0 : i32
    %c0_i32_1 = arith.constant 0 : i32
    return %c0_i32, %c0_i32_0 : i32, i32
  }
}

module attributes {stable_mosaic.version = 11 : i64} {
  func.func @_gemm_affine_act_kernel(%arg0: i32, %arg1: memref<168x128xbf16, #tpu.memory_space<vmem>>, %arg2: memref<128x128xbf16, #tpu.memory_space<vmem>>, %arg3: memref<1x128xf32, #tpu.memory_space<vmem>>, %arg4: memref<1x128xf32, #tpu.memory_space<vmem>>, %arg5: memref<168x128xf32, #tpu.memory_space<vmem>>) attributes {dimension_semantics = [#tpu.dimension_semantics<arbitrary>], iteration_bounds = array<i64: 1>, scalar_prefetch = 0 : i64, scratch_operands = 0 : i64, tpu.core_type = #tpu.core_type<tc>, window_params = [{pipeline_mode = #tpu.pipeline_mode<synchronous>, transform_indices = @transform_0, window_bounds = array<i64: 168, 128>}, {pipeline_mode = #tpu.pipeline_mode<synchronous>, transform_indices = @transform_1, window_bounds = array<i64: 128, 128>}, {pipeline_mode = #tpu.pipeline_mode<synchronous>, transform_indices = @transform_2, window_bounds = array<i64: 1, 128>}, {pipeline_mode = #tpu.pipeline_mode<synchronous>, transform_indices = @transform_3, window_bounds = array<i64: 1, 128>}, {pipeline_mode = #tpu.pipeline_mode<synchronous>, transform_indices = @transform_4, window_bounds = array<i64: 168, 128>}]} {
    %c0 = arith.constant 0 : index
    %c0_0 = arith.constant 0 : index
    %0 = vector.load %arg1[%c0, %c0_0] : memref<168x128xbf16, #tpu.memory_space<vmem>>, vector<168x128xbf16>
    %c0_1 = arith.constant 0 : index
    %c0_2 = arith.constant 0 : index
    %1 = vector.load %arg2[%c0_1, %c0_2] : memref<128x128xbf16, #tpu.memory_space<vmem>>, vector<128x128xbf16>
    %cst = arith.constant dense<0.000000e+00> : vector<168x128xf32>
    %2 = tpu.matmul %0, %1, %cst {dimension_numbers = #tpu.dot_dimension_numbers<[1], [0], [0], [1], [0, 0, 1, 1], [], []>} : vector<168x128xbf16>, vector<128x128xbf16>, vector<168x128xf32> -> vector<168x128xf32>
    %c0_3 = arith.constant 0 : index
    %c0_4 = arith.constant 0 : index
    %3 = vector.load %arg3[%c0_3, %c0_4] : memref<1x128xf32, #tpu.memory_space<vmem>>, vector<1x128xf32>
    %4 = vector.broadcast %3 : vector<1x128xf32> to vector<168x128xf32>
    %5 = arith.mulf %2, %4 : vector<168x128xf32>
    %c0_5 = arith.constant 0 : index
    %c0_6 = arith.constant 0 : index
    %6 = vector.load %arg4[%c0_5, %c0_6] : memref<1x128xf32, #tpu.memory_space<vmem>>, vector<1x128xf32>
    %7 = vector.broadcast %6 : vector<1x128xf32> to vector<168x128xf32>
    %8 = arith.addf %5, %7 : vector<168x128xf32>
    %9 = math.tanh %8 : vector<168x128xf32>
    %c0_7 = arith.constant 0 : index
    %c0_8 = arith.constant 0 : index
    %10 = vector.load %arg5[%c0_7, %c0_8] : memref<168x128xf32, #tpu.memory_space<vmem>>, vector<168x128xf32>
    tpu.vector_store %arg5[%c0_7, %c0_8], %9 {strides = array<i32>} : memref<168x128xf32, #tpu.memory_space<vmem>>, vector<168x128xf32>,
    return
  }
  func.func @transform_0(%arg0: i32) -> (i32, i32) {
    %c0_i32 = arith.constant 0 : i32
    %c0_i32_0 = arith.constant 0 : i32
    %c0_i32_1 = arith.constant 0 : i32
    return %c0_i32, %c0_i32_0 : i32, i32
  }
  func.func @transform_1(%arg0: i32) -> (i32, i32) {
    %c0_i32 = arith.constant 0 : i32
    %c0_i32_0 = arith.constant 0 : i32
    %c0_i32_1 = arith.constant 0 : i32
    return %c0_i32, %c0_i32_0 : i32, i32
  }
  func.func @transform_2(%arg0: i32) -> (i32, i32) {
    %c0_i32 = arith.constant 0 : i32
    %c0_i32_0 = arith.constant 0 : i32
    %c0_i32_1 = arith.constant 0 : i32
    return %c0_i32, %c0_i32_0 : i32, i32
  }
  func.func @transform_3(%arg0: i32) -> (i32, i32) {
    %c0_i32 = arith.constant 0 : i32
    %c0_i32_0 = arith.constant 0 : i32
    %c0_i32_1 = arith.constant 0 : i32
    return %c0_i32, %c0_i32_0 : i32, i32
  }
  func.func @transform_4(%arg0: i32) -> (i32, i32) {
    %c0_i32 = arith.constant 0 : i32
    %c0_i32_0 = arith.constant 0 : i32
    %c0_i32_1 = arith.constant 0 : i32
    return %c0_i32, %c0_i32_0 : i32, i32
  }
}

</mosaic_0001>

<llo_original>
// kernel: _lambda_.6
$region0: #{_lambda_.6}
  #allocation0 [shape = 'u32[]', space=smem, size = 0x4, offset = 0x4, fixed_abs, tag = 'smem constant byte address 0x4 - core index']
  #allocation1 [shape = 'u32[144,128]{1,0:T(1,128)}', space=vmem, size = 0x12000, scoped, tag = 'internal scratch']
  %s0 = inlined_call_operand.vmem [shape: bf16[128,48], index: 0, kind: input, shape index: {}]
  %s1 = inlined_call_operand.vmem [shape: bf16[48,128], index: 1, kind: input, shape index: {}]
  %s2 = inlined_call_operand.vmem [shape: f32[1,128], index: 2, kind: input, shape index: {}]
  %s3 = inlined_call_operand.vmem [shape: f32[1,128], index: 3, kind: input, shape index: {}]
  %s4 = inlined_call_operand.vmem [shape: f32[128,128], index: 4, kind: input, shape index: {}]
  %s5 = inlined_call_operand.vmem [shape: f32[128,128], index: 5, kind: output, shape index: {}]
  %s6 = sld [smem:[#allocation0]]
  $region30: #{_lambda_.6} parent=0
    _
  %s8 = ssub.s32 1, %s6
  %s9 = scalar_select 0, %s8, %s6
  // Predicated region
  $region2: #{_lambda_.6} parent=0 // pred_check
    _
  $region3: #{_lambda_.6} parent=0 // pred_check_branch
    %11 = sbr.rel (0) target = $region5
  $region4: #{_lambda_.6} parent=0 // pred_region
    _
  $region5: #{_lambda_.6} parent=0 // pred_fallthru
    _
  // Predicated region
  $region6: #{_lambda_.6} parent=0 // pred_check
    _
  $region7: #{_lambda_.6} parent=0 // pred_check_branch
    %13 = sbr.rel (0) target = $region9
  $region8: #{_lambda_.6} parent=0 // pred_region
    _
  $region9: #{_lambda_.6} parent=0 // pred_fallthru
    _
  // Predicated region
  $region10: #{_lambda_.6} parent=0 // pred_check
    _
  $region11: #{_lambda_.6} parent=0 // pred_check_branch
    %15 = sbr.rel (0) target = $region13
  $region12: #{_lambda_.6} parent=0 // pred_region
    _
  $region13: #{_lambda_.6} parent=0 // pred_fallthru
    _
  // Predicated region
  $region14: #{_lambda_.6} parent=0 // pred_check
    _
  $region15: #{_lambda_.6} parent=0 // pred_check_branch
    %17 = sbr.rel (0) target = $region17
  $region16: #{_lambda_.6} parent=0 // pred_region
    _
  $region17: #{_lambda_.6} parent=0 // pred_fallthru
    _
  // Predicated region
  $region18: #{_lambda_.6} parent=0 // pred_check
    _
  $region19: #{_lambda_.6} parent=0 // pred_check_branch
    %19 = sbr.rel (0) target = $region21
  $region20: #{_lambda_.6} parent=0 // pred_region
    _
  $region21: #{_lambda_.6} parent=0 // pred_fallthru
    _
  %v21 = vld [vmem:[%s0] sm:$0xf]
  %v22 = vld [vmem:[%s0 + $0x4] sm:$0xf]
  %v23 = vld [vmem:[%s0 + $0x8] sm:$0xf]
  %v24 = vld [vmem:[%s0 + $0xc] sm:$0xf]
  %v25 = vld [vmem:[%s0 + $0x10] sm:$0xf]
  %v26 = vld [vmem:[%s0 + $0x14] sm:$0xf]
  %v27 = vld [vmem:[%s0 + $0x18] sm:$0xf]
  %v28 = vld [vmem:[%s0 + $0x1c] sm:$0xf]
  %v29 = vld [vmem:[%s0 + $0x20] sm:$0xf]
  %v30 = vld [vmem:[%s0 + $0x24] sm:$0xf]
  %v31 = vld [vmem:[%s0 + $0x28] sm:$0xf]
  %v32 = vld [vmem:[%s0 + $0x2c] sm:$0xf]
  %v33 = vld [vmem:[%s0 + $0x30] sm:$0xf]
  %v34 = vld [vmem:[%s0 + $0x34] sm:$0xf]
  %v35 = vld [vmem:[%s0 + $0x38] sm:$0xf]
  %v36 = vld [vmem:[%s0 + $0x3c] sm:$0xf]
  %v37 = vld [vmem:[%s1] sm:$0xf]
  %v38 = vld [vmem:[%s1 + $0x4] sm:$0xf]
  %v39 = vld [vmem:[%s1 + $0x8] sm:$0xf]
  %v40 = vld [vmem:[%s1 + $0xc] sm:$0xf]
  %v41 = vld [vmem:[%s1 + $0x10] sm:$0xf]
  %v42 = vld [vmem:[%s1 + $0x14] sm:$0xf]
  %v59 = vunpack.c.l.b16 %v21
  %v60 = vunpack.c.l.b16 %v22
  %v61 = vunpack.c.l.b16 %v23
  %v62 = vunpack.c.l.b16 %v24
  %v63 = vunpack.c.l.b16 %v25
  %v64 = vunpack.c.l.b16 %v26
  %v65 = vunpack.c.l.b16 %v27
  %v66 = vunpack.c.l.b16 %v28
  %v67 = vunpack.c.l.b16 %v29
  %v68 = vunpack.c.l.b16 %v30
  %v69 = vunpack.c.l.b16 %v31
  %v70 = vunpack.c.l.b16 %v32
  %v71 = vunpack.c.l.b16 %v33
  %v72 = vunpack.c.l.b16 %v34
  %v73 = vunpack.c.l.b16 %v35
  %v74 = vunpack.c.l.b16 %v36
  %v75 = vpack.c.b16 %v60, %v59
  %v76 = vpack.c.b16 %v62, %v61
  %v77 = vpack.c.b16 %v64, %v63
  %v78 = vpack.c.b16 %v66, %v65
  %v79 = vpack.c.b16 %v68, %v67
  %v80 = vpack.c.b16 %v70, %v69
  %v81 = vpack.c.b16 %v72, %v71
  %v82 = vpack.c.b16 %v74, %v73
  %v89 = vunpack.c.l.b16 %v37
  %v90 = vunpack.c.l.b16 %v38
  %v91 = vunpack.c.l.b16 %v39
  %v92 = vunpack.c.l.b16 %v40
  %v93 = vunpack.c.l.b16 %v41
  %v94 = vunpack.c.l.b16 %v42
  %v95 = vpack.c.b16 %v90, %v89
  %v96 = vpack.c.b16 %v92, %v91
  %v97 = vpack.c.b16 %v94, %v93
  %vm101 = vcmask 392192
  %v103 = vsel %vm101, %v75, 0
  %v106 = vsel %vm101, %v76, 0
  %v109 = vsel %vm101, %v77, 0
  %v112 = vsel %vm101, %v78, 0
  %v115 = vsel %vm101, %v79, 0
  %v118 = vsel %vm101, %v80, 0
  %v121 = vsel %vm101, %v81, 0
  %v124 = vsel %vm101, %v82, 0
  %126 = vmatprep.subr.bf16.mxu0 0
  %127 = vmatpush1.bf16.msra.mxu0 %v95
  %128 = vmatprep.subr.bf16.mxu0 0
  %129 = vmatpush1.bf16.msra.mxu0 %v96
  %130 = vmatprep.subr.bf16.mxu0 0
  %131 = vmatpush1.bf16.msra.mxu0 %v97
  %132 = vmatprep.subr.bf16.mxu0 0
  %133 = vmatpush1.bf16.msra.mxu0 0
  %134 = vmatprep.subr.bf16.mxu0 0
  %135 = vmatpush1.bf16.msra.mxu0 0
  %136 = vmatprep.subr.bf16.mxu0 0
  %137 = vmatpush1.bf16.msra.mxu0 0
  %138 = vmatprep.subr.bf16.mxu0 0
  %139 = vmatpush1.bf16.msra.mxu0 0
  %140 = vmatprep.subr.bf16.mxu0 0
  %141 = vmatpush1.bf16.msra.mxu0 0
  %142 = vmatprep.subr.bf16.mxu0 0
  %143 = vmatpush1.bf16.msra.mxu0 0
  %144 = vmatprep.subr.bf16.mxu0 0
  %145 = vmatpush1.bf16.msra.mxu0 0
  %146 = vmatprep.subr.bf16.mxu0 0
  %147 = vmatpush1.bf16.msra.mxu0 0
  %148 = vmatprep.subr.bf16.mxu0 0
  %149 = vmatpush1.bf16.msra.mxu0 0
  %150 = vmatprep.subr.bf16.mxu0 0
  %151 = vmatpush1.bf16.msra.mxu0 0
  %152 = vmatprep.subr.bf16.mxu0 0
  %153 = vmatpush1.bf16.msra.mxu0 0
  %154 = vmatprep.subr.bf16.mxu0 0
  %155 = vmatpush1.bf16.msra.mxu0 0
  %156 = vmatprep.subr.bf16.mxu0 0
  %157 = vmatpush1.bf16.msra.mxu0 0
  %158 = vmatprep.mubr.bf16.mxu0 0
  %159 = vmatmul.mubr.bf16.gmra.mrb[0].mxu0 %v103
  %v160 = vpop.f32.mrb[0].mxu0
  %v161 = vadd.f32 0.0, %v160
  %v162 = vpop.f32.mrb[0].mxu0
  %v163 = vpop.f32.mrb[0].mxu0
  %v164 = vadd.f32 0.0, %v163
  %v165 = vpop.f32.mrb[0].mxu0
  %166 = vmatprep.mubr.bf16.mxu0 0
  %167 = vmatmul.mubr.bf16.gmra.mrb[0].mxu0 %v106
  %v168 = vpop.f32.mrb[0].mxu0
  %v169 = vadd.f32 0.0, %v168
  %v170 = vpop.f32.mrb[0].mxu0
  %v171 = vpop.f32.mrb[0].mxu0
  %v172 = vadd.f32 0.0, %v171
  %v173 = vpop.f32.mrb[0].mxu0
  %174 = vmatprep.mubr.bf16.mxu0 0
  %175 = vmatmul.mubr.bf16.gmra.mrb[0].mxu0 %v109
  %v176 = vpop.f32.mrb[0].mxu0
  %v177 = vadd.f32 0.0, %v176
  %v178 = vpop.f32.mrb[0].mxu0
  %v179 = vpop.f32.mrb[0].mxu0
  %v180 = vadd.f32 0.0, %v179
  %v181 = vpop.f32.mrb[0].mxu0
  %182 = vmatprep.mubr.bf16.mxu0 0
  %183 = vmatmul.mubr.bf16.gmra.mrb[0].mxu0 %v112
  %v184 = vpop.f32.mrb[0].mxu0
  %v185 = vadd.f32 0.0, %v184
  %v186 = vpop.f32.mrb[0].mxu0
  %v187 = vpop.f32.mrb[0].mxu0
  %v188 = vadd.f32 0.0, %v187
  %v189 = vpop.f32.mrb[0].mxu0
  %190 = vmatprep.mubr.bf16.mxu0 0
  %191 = vmatmul.mubr.bf16.gmra.mrb[0].mxu0 %v115
  %v192 = vpop.f32.mrb[0].mxu0
  %v193 = vadd.f32 0.0, %v192
  %v194 = vpop.f32.mrb[0].mxu0
  %v195 = vpop.f32.mrb[0].mxu0
  %v196 = vadd.f32 0.0, %v195
  %v197 = vpop.f32.mrb[0].mxu0
  %198 = vmatprep.mubr.bf16.mxu0 0
  %199 = vmatmul.mubr.bf16.gmra.mrb[0].mxu0 %v118
  %v200 = vpop.f32.mrb[0].mxu0
  %v201 = vadd.f32 0.0, %v200
  %v202 = vpop.f32.mrb[0].mxu0
  %v203 = vpop.f32.mrb[0].mxu0
  %v204 = vadd.f32 0.0, %v203
  %v205 = vpop.f32.mrb[0].mxu0
  %206 = vmatprep.mubr.bf16.mxu0 0
  %207 = vmatmul.mubr.bf16.gmra.mrb[0].mxu0 %v121
  %v208 = vpop.f32.mrb[0].mxu0
  %v209 = vadd.f32 0.0, %v208
  %v210 = vpop.f32.mrb[0].mxu0
  %v211 = vpop.f32.mrb[0].mxu0
  %v212 = vadd.f32 0.0, %v211
  %v213 = vpop.f32.mrb[0].mxu0
  %214 = vmatprep.mubr.bf16.mxu0 0
  %215 = vmatmul.mubr.bf16.gmra.mrb[0].mxu0 %v124
  %v216 = vpop.f32.mrb[0].mxu0
  %v217 = vadd.f32 0.0, %v216
  %v218 = vpop.f32.mrb[0].mxu0
  %v219 = vpop.f32.mrb[0].mxu0
  %v220 = vadd.f32 0.0, %v219
  %v221 = vpop.f32.mrb[0].mxu0
  %222 = vdwg.mxu0
  %v223 = vld [vmem:[%s4] sm:$0xff]
  %v224 = vld [vmem:[%s4 + $0x8] sm:$0xff]
  %v225 = vld [vmem:[%s4 + $0x10] sm:$0xff]
  %v226 = vld [vmem:[%s4 + $0x18] sm:$0xff]
  %v227 = vld [vmem:[%s4 + $0x20] sm:$0xff]
  %v228 = vld [vmem:[%s4 + $0x28] sm:$0xff]
  %v229 = vld [vmem:[%s4 + $0x30] sm:$0xff]
  %v230 = vld [vmem:[%s4 + $0x38] sm:$0xff]
  %v231 = vld [vmem:[%s4 + $0x40] sm:$0xff]
  %v232 = vld [vmem:[%s4 + $0x48] sm:$0xff]
  %v233 = vld [vmem:[%s4 + $0x50] sm:$0xff]
  %v234 = vld [vmem:[%s4 + $0x58] sm:$0xff]
  %v235 = vld [vmem:[%s4 + $0x60] sm:$0xff]
  %v236 = vld [vmem:[%s4 + $0x68] sm:$0xff]
  %v237 = vld [vmem:[%s4 + $0x70] sm:$0xff]
  %v238 = vld [vmem:[%s4 + $0x78] sm:$0xff]
  %v239 = vmul.f32 %v161, %v223
  %v240 = vmul.f32 %v164, %v224
  %v241 = vmul.f32 %v169, %v225
  %v242 = vmul.f32 %v172, %v226
  %v243 = vmul.f32 %v177, %v227
  %v244 = vmul.f32 %v180, %v228
  %v245 = vmul.f32 %v185, %v229
  %v246 = vmul.f32 %v188, %v230
  %v247 = vmul.f32 %v193, %v231
  %v248 = vmul.f32 %v196, %v232
  %v249 = vmul.f32 %v201, %v233
  %v250 = vmul.f32 %v204, %v234
  %v251 = vmul.f32 %v209, %v235
  %v252 = vmul.f32 %v212, %v236
  %v253 = vmul.f32 %v217, %v237
  %v254 = vmul.f32 %v220, %v238
  %v255 = vadd.f32 %v239, %v240
  %v256 = vadd.f32 %v255, %v241
  %v257 = vadd.f32 %v256, %v242
  %v258 = vadd.f32 %v257, %v243
  %v259 = vadd.f32 %v258, %v244
  %v260 = vadd.f32 %v259, %v245
  %v261 = vadd.f32 %v260, %v246
  %v262 = vadd.f32 %v261, %v247
  %v263 = vadd.f32 %v262, %v248
  %v264 = vadd.f32 %v263, %v249
  %v265 = vadd.f32 %v264, %v250
  %v266 = vadd.f32 %v265, %v251
  %v267 = vadd.f32 %v266, %v252
  %v268 = vadd.f32 %v267, %v253
  %v269 = vadd.f32 %v268, %v254
  %v270 = vrot.slane %v269, 4
  %v271 = vadd.f32 %v269, %v270
  %v272 = vrot.slane %v271, 2
  %v273 = vadd.f32 %v271, %v272
  %v274 = vrot.slane %v273, 1
  %v275 = vadd.f32 %v273, %v274
  %v276 = vadd.f32 %v275, 0.0
  %v277 = vmul.f32 %v276, 0.0078125
  %v278 = vsub.f32 %v161, %v277
  %v279 = vsub.f32 %v164, %v277
  %v280 = vsub.f32 %v169, %v277
  %v281 = vsub.f32 %v172, %v277
  %v282 = vsub.f32 %v177, %v277
  %v283 = vsub.f32 %v180, %v277
  %v284 = vsub.f32 %v185, %v277
  %v285 = vsub.f32 %v188, %v277
  %v286 = vsub.f32 %v193, %v277
  %v287 = vsub.f32 %v196, %v277
  %v288 = vsub.f32 %v201, %v277
  %v289 = vsub.f32 %v204, %v277
  %v290 = vsub.f32 %v209, %v277
  %v291 = vsub.f32 %v212, %v277
  %v292 = vsub.f32 %v217, %v277
  %v293 = vsub.f32 %v220, %v277
  %v294 = vmul.f32 %v278, %v223
  %v295 = vmul.f32 %v279, %v224
  %v296 = vmul.f32 %v280, %v225
  %v297 = vmul.f32 %v281, %v226
  %v298 = vmul.f32 %v282, %v227
  %v299 = vmul.f32 %v283, %v228
  %v300 = vmul.f32 %v284, %v229
  %v301 = vmul.f32 %v285, %v230
  %v302 = vmul.f32 %v286, %v231
  %v303 = vmul.f32 %v287, %v232
  %v304 = vmul.f32 %v288, %v233
  %v305 = vmul.f32 %v289, %v234
  %v306 = vmul.f32 %v290, %v235
  %v307 = vmul.f32 %v291, %v236
  %v308 = vmul.f32 %v292, %v237
  %v309 = vmul.f32 %v293, %v238
  %v310 = vmul.f32 %v294, %v294
  %v311 = vmul.f32 %v295, %v295
  %v312 = vmul.f32 %v296, %v296
  %v313 = vmul.f32 %v297, %v297
  %v314 = vmul.f32 %v298, %v298
  %v315 = vmul.f32 %v299, %v299
  %v316 = vmul.f32 %v300, %v300
  %v317 = vmul.f32 %v301, %v301
  %v318 = vmul.f32 %v302, %v302
  %v319 = vmul.f32 %v303, %v303
  %v320 = vmul.f32 %v304, %v304
  %v321 = vmul.f32 %v305, %v305
  %v322 = vmul.f32 %v306, %v306
  %v323 = vmul.f32 %v307, %v307
  %v324 = vmul.f32 %v308, %v308
  %v325 = vmul.f32 %v309, %v309
  %v326 = vadd.f32 %v310, %v311
  %v327 = vadd.f32 %v326, %v312
  %v328 = vadd.f32 %v327, %v313
  %v329 = vadd.f32 %v328, %v314
  %v330 = vadd.f32 %v329, %v315
  %v331 = vadd.f32 %v330, %v316
  %v332 = vadd.f32 %v331, %v317
  %v333 = vadd.f32 %v332, %v318
  %v334 = vadd.f32 %v333, %v319
  %v335 = vadd.f32 %v334, %v320
  %v336 = vadd.f32 %v335, %v321
  %v337 = vadd.f32 %v336, %v322
  %v338 = vadd.f32 %v337, %v323
  %v339 = vadd.f32 %v338, %v324
  %v340 = vadd.f32 %v339, %v325
  %v341 = vrot.slane %v340, 4
  %v342 = vadd.f32 %v340, %v341
  %v343 = vrot.slane %v342, 2
  %v344 = vadd.f32 %v342, %v343
  %v345 = vrot.slane %v344, 1
  %v346 = vadd.f32 %v344, %v345
  %v347 = vadd.f32 %v346, 0.0
  %v348 = vmul.f32 %v347, 0.0078125
  %v349 = vld [vmem:[%s2] sm:$0x1]
  %v350 = vadd.f32 %v348, 1e-05
  %v351 = vrsqrt.pop %v350
  %v352 = vmul.f32 %v349, %v351
  %v353 = vld [vmem:[%s3] sm:$0x1]
  %v354 = vmul.f32 %v277, %v352
  %v355 = vsub.f32 %v353, %v354
  %v357 = vlaneseq
  %v358 = vshrl.u32 %v357, 7
  %v359 = vsub.s32 0, %v358
  %v360 = vrot.slane %v352, %v359
  %v362 = vmul.f32 %v161, %v360
  %v363 = vmul.f32 %v164, %v360
  %v364 = vmul.f32 %v169, %v360
  %v365 = vmul.f32 %v172, %v360
  %v366 = vmul.f32 %v177, %v360
  %v367 = vmul.f32 %v180, %v360
  %v368 = vmul.f32 %v185, %v360
  %v369 = vmul.f32 %v188, %v360
  %v370 = vmul.f32 %v193, %v360
  %v371 = vmul.f32 %v196, %v360
  %v372 = vmul.f32 %v201, %v360
  %v373 = vmul.f32 %v204, %v360
  %v374 = vmul.f32 %v209, %v360
  %v375 = vmul.f32 %v212, %v360
  %v376 = vmul.f32 %v217, %v360
  %v377 = vmul.f32 %v220, %v360
  %v379 = vlaneseq
  %v380 = vshrl.u32 %v379, 7
  %v381 = vsub.s32 0, %v380
  %v382 = vrot.slane %v355, %v381
  %v384 = vadd.f32 %v362, %v382
  %v385 = vadd.f32 %v363, %v382
  %v386 = vadd.f32 %v364, %v382
  %v387 = vadd.f32 %v365, %v382
  %v388 = vadd.f32 %v366, %v382
  %v389 = vadd.f32 %v367, %v382
  %v390 = vadd.f32 %v368, %v382
  %v391 = vadd.f32 %v369, %v382
  %v392 = vadd.f32 %v370, %v382
  %v393 = vadd.f32 %v371, %v382
  %v394 = vadd.f32 %v372, %v382
  %v395 = vadd.f32 %v373, %v382
  %v396 = vadd.f32 %v374, %v382
  %v397 = vadd.f32 %v375, %v382
  %v398 = vadd.f32 %v376, %v382
  %v399 = vadd.f32 %v377, %v382
  %vm400 = vcmp.ge.f32.partialorder %v384, 0.0
  %vm401 = vcmp.ge.f32.partialorder %v385, 0.0
  %vm402 = vcmp.ge.f32.partialorder %v386, 0.0
  %vm403 = vcmp.ge.f32.partialorder %v387, 0.0
  %vm404 = vcmp.ge.f32.partialorder %v388, 0.0
  %vm405 = vcmp.ge.f32.partialorder %v389, 0.0
  %vm406 = vcmp.ge.f32.partialorder %v390, 0.0
  %vm407 = vcmp.ge.f32.partialorder %v391, 0.0
  %vm408 = vcmp.ge.f32.partialorder %v392, 0.0
  %vm409 = vcmp.ge.f32.partialorder %v393, 0.0
  %vm410 = vcmp.ge.f32.partialorder %v394, 0.0
  %vm411 = vcmp.ge.f32.partialorder %v395, 0.0
  %vm412 = vcmp.ge.f32.partialorder %v396, 0.0
  %vm413 = vcmp.ge.f32.partialorder %v397, 0.0
  %vm414 = vcmp.ge.f32.partialorder %v398, 0.0
  %vm415 = vcmp.ge.f32.partialorder %v399, 0.0
  %v416 = vmul.f32 %v384, 0.01
  %v417 = vmul.f32 %v385, 0.01
  %v418 = vmul.f32 %v386, 0.01
  %v419 = vmul.f32 %v387, 0.01
  %v420 = vmul.f32 %v388, 0.01
  %v421 = vmul.f32 %v389, 0.01
  %v422 = vmul.f32 %v390, 0.01
  %v423 = vmul.f32 %v391, 0.01
  %v424 = vmul.f32 %v392, 0.01
  %v425 = vmul.f32 %v393, 0.01
  %v426 = vmul.f32 %v394, 0.01
  %v427 = vmul.f32 %v395, 0.01
  %v428 = vmul.f32 %v396, 0.01
  %v429 = vmul.f32 %v397, 0.01
  %v430 = vmul.f32 %v398, 0.01
  %v431 = vmul.f32 %v399, 0.01
  %v432 = vsel %vm400, %v384, %v416
  %v433 = vsel %vm401, %v385, %v417
  %v434 = vsel %vm402, %v386, %v418
  %v435 = vsel %vm403, %v387, %v419
  %v436 = vsel %vm404, %v388, %v420
  %v437 = vsel %vm405, %v389, %v421
  %v438 = vsel %vm406, %v390, %v422
  %v439 = vsel %vm407, %v391, %v423
  %v440 = vsel %vm408, %v392, %v424
  %v441 = vsel %vm409, %v393, %v425
  %v442 = vsel %vm410, %v394, %v426
  %v443 = vsel %vm411, %v395, %v427
  %v444 = vsel %vm412, %v396, %v428
  %v445 = vsel %vm413, %v397, %v429
  %v446 = vsel %vm414, %v398, %v430
  %v447 = vsel %vm415, %v399, %v431
  %448 = vst [vmem:[%s5] sm:$0xff] %v432
  %449 = vst [vmem:[%s5 + $0x8] sm:$0xff] %v433
  %450 = vst [vmem:[%s5 + $0x10] sm:$0xff] %v434
  %451 = vst [vmem:[%s5 + $0x18] sm:$0xff] %v435
  %452 = vst [vmem:[%s5 + $0x20] sm:$0xff] %v436
  %453 = vst [vmem:[%s5 + $0x28] sm:$0xff] %v437
  %454 = vst [vmem:[%s5 + $0x30] sm:$0xff] %v438
  %455 = vst [vmem:[%s5 + $0x38] sm:$0xff] %v439
  %456 = vst [vmem:[%s5 + $0x40] sm:$0xff] %v440
  %457 = vst [vmem:[%s5 + $0x48] sm:$0xff] %v441
  %458 = vst [vmem:[%s5 + $0x50] sm:$0xff] %v442
  %459 = vst [vmem:[%s5 + $0x58] sm:$0xff] %v443
  %460 = vst [vmem:[%s5 + $0x60] sm:$0xff] %v444
  %461 = vst [vmem:[%s5 + $0x68] sm:$0xff] %v445
  %462 = vst [vmem:[%s5 + $0x70] sm:$0xff] %v446
  %463 = vst [vmem:[%s5 + $0x78] sm:$0xff] %v447
  // Predicated region
  $region22: #{_lambda_.6} parent=0 // pred_check
    _
  $region23: #{_lambda_.6} parent=0 // pred_check_branch
    %465 = sbr.rel (0) target = $region25
  $region24: #{_lambda_.6} parent=0 // pred_region
    _
  $region25: #{_lambda_.6} parent=0 // pred_fallthru
    _
  // Predicated region
  $region26: #{_lambda_.6} parent=0 // pred_check
    _
  $region27: #{_lambda_.6} parent=0 // pred_check_branch
    %467 = sbr.rel (0) target = $region29
  $region28: #{_lambda_.6} parent=0 // pred_region
    _
  $region29: #{_lambda_.6} parent=0 // pred_fallthru
    _

// kernel: _lambda_.7
$region0: #{_lambda_.7}
  #allocation0 [shape = 'u32[]', space=smem, size = 0x4, offset = 0x4, fixed_abs, tag = 'smem constant byte address 0x4 - core index']
  #allocation1 [shape = 'u32[144,128]{1,0:T(1,128)}', space=vmem, size = 0x12000, scoped, tag = 'internal scratch']
  %s0 = inlined_call_operand.vmem [shape: bf16[32,256], index: 0, kind: input, shape index: {}]
  %s1 = inlined_call_operand.vmem [shape: bf16[256,128], index: 1, kind: input, shape index: {}]
  %s2 = inlined_call_operand.vmem [shape: f32[1,128], index: 2, kind: input, shape index: {}]
  %s3 = inlined_call_operand.vmem [shape: f32[1,128], index: 3, kind: input, shape index: {}]
  %s4 = inlined_call_operand.vmem [shape: f32[32,128], index: 4, kind: input, shape index: {}]
  %s5 = inlined_call_operand.vmem [shape: f32[32,128], index: 5, kind: output, shape index: {}]
  %s6 = sld [smem:[#allocation0]]
  $region30: #{_lambda_.7} parent=0
    _
  %s8 = ssub.s32 1, %s6
  %s9 = scalar_select 0, %s8, %s6
  // Predicated region
  $region2: #{_lambda_.7} parent=0 // pred_check
    _
  $region3: #{_lambda_.7} parent=0 // pred_check_branch
    %11 = sbr.rel (0) target = $region5
  $region4: #{_lambda_.7} parent=0 // pred_region
    _
  $region5: #{_lambda_.7} parent=0 // pred_fallthru
    _
  // Predicated region
  $region6: #{_lambda_.7} parent=0 // pred_check
    _
  $region7: #{_lambda_.7} parent=0 // pred_check_branch
    %13 = sbr.rel (0) target = $region9
  $region8: #{_lambda_.7} parent=0 // pred_region
    _
  $region9: #{_lambda_.7} parent=0 // pred_fallthru
    _
  // Predicated region
  $region10: #{_lambda_.7} parent=0 // pred_check
    _
  $region11: #{_lambda_.7} parent=0 // pred_check_branch
    %15 = sbr.rel (0) target = $region13
  $region12: #{_lambda_.7} parent=0 // pred_region
    _
  $region13: #{_lambda_.7} parent=0 // pred_fallthru
    _
  // Predicated region
  $region14: #{_lambda_.7} parent=0 // pred_check
    _
  $region15: #{_lambda_.7} parent=0 // pred_check_branch
    %17 = sbr.rel (0) target = $region17
  $region16: #{_lambda_.7} parent=0 // pred_region
    _
  $region17: #{_lambda_.7} parent=0 // pred_fallthru
    _
  // Predicated region
  $region18: #{_lambda_.7} parent=0 // pred_check
    _
  $region19: #{_lambda_.7} parent=0 // pred_check_branch
    %19 = sbr.rel (0) target = $region21
  $region20: #{_lambda_.7} parent=0 // pred_region
    _
  $region21: #{_lambda_.7} parent=0 // pred_fallthru
    _
  %v21 = vld [vmem:[%s0] sm:$0xff]
  %v22 = vld [vmem:[%s0 + $0x8] sm:$0xff]
  %v23 = vld [vmem:[%s0 + $0x10] sm:$0xff]
  %v24 = vld [vmem:[%s0 + $0x18] sm:$0xff]
  %v25 = vld [vmem:[%s1] sm:$0xf]
  %v26 = vld [vmem:[%s1 + $0x4] sm:$0xf]
  %v27 = vld [vmem:[%s1 + $0x8] sm:$0xf]
  %v28 = vld [vmem:[%s1 + $0xc] sm:$0xf]
  %v29 = vld [vmem:[%s1 + $0x10] sm:$0xf]
  %v30 = vld [vmem:[%s1 + $0x14] sm:$0xf]
  %v31 = vld [vmem:[%s1 + $0x18] sm:$0xf]
  %v32 = vld [vmem:[%s1 + $0x1c] sm:$0xf]
  %v33 = vld [vmem:[%s1 + $0x20] sm:$0xf]
  %v34 = vld [vmem:[%s1 + $0x24] sm:$0xf]
  %v35 = vld [vmem:[%s1 + $0x28] sm:$0xf]
  %v36 = vld [vmem:[%s1 + $0x2c] sm:$0xf]
  %v37 = vld [vmem:[%s1 + $0x30] sm:$0xf]
  %v38 = vld [vmem:[%s1 + $0x34] sm:$0xf]
  %v39 = vld [vmem:[%s1 + $0x38] sm:$0xf]
  %v40 = vld [vmem:[%s1 + $0x3c] sm:$0xf]
  %v41 = vld [vmem:[%s1 + $0x40] sm:$0xf]
  %v42 = vld [vmem:[%s1 + $0x44] sm:$0xf]
  %v43 = vld [vmem:[%s1 + $0x48] sm:$0xf]
  %v44 = vld [vmem:[%s1 + $0x4c] sm:$0xf]
  %v45 = vld [vmem:[%s1 + $0x50] sm:$0xf]
  %v46 = vld [vmem:[%s1 + $0x54] sm:$0xf]
  %v47 = vld [vmem:[%s1 + $0x58] sm:$0xf]
  %v48 = vld [vmem:[%s1 + $0x5c] sm:$0xf]
  %v49 = vld [vmem:[%s1 + $0x60] sm:$0xf]
  %v50 = vld [vmem:[%s1 + $0x64] sm:$0xf]
  %v51 = vld [vmem:[%s1 + $0x68] sm:$0xf]
  %v52 = vld [vmem:[%s1 + $0x6c] sm:$0xf]
  %v53 = vld [vmem:[%s1 + $0x70] sm:$0xf]
  %v54 = vld [vmem:[%s1 + $0x74] sm:$0xf]
  %v55 = vld [vmem:[%s1 + $0x78] sm:$0xf]
  %v56 = vld [vmem:[%s1 + $0x7c] sm:$0xf]
  %v61 = vunpack.c.l.b16 %v21
  %v62 = vunpack.c.h.b16 %v21
  %v63 = vunpack.c.l.b16 %v22
  %v64 = vunpack.c.h.b16 %v22
  %v65 = vunpack.c.l.b16 %v23
  %v66 = vunpack.c.h.b16 %v23
  %v67 = vunpack.c.l.b16 %v24
  %v68 = vunpack.c.h.b16 %v24
  %v69 = vpack.c.b16 %v63, %v61
  %v70 = vpack.c.b16 %v64, %v62
  %v71 = vpack.c.b16 %v67, %v65
  %v72 = vpack.c.b16 %v68, %v66
  %v109 = vunpack.c.l.b16 %v25
  %v110 = vunpack.c.l.b16 %v26
  %v111 = vunpack.c.l.b16 %v27
  %v112 = vunpack.c.l.b16 %v28
  %v113 = vunpack.c.l.b16 %v29
  %v114 = vunpack.c.l.b16 %v30
  %v115 = vunpack.c.l.b16 %v31
  %v116 = vunpack.c.l.b16 %v32
  %v117 = vunpack.c.l.b16 %v33
  %v118 = vunpack.c.l.b16 %v34
  %v119 = vunpack.c.l.b16 %v35
  %v120 = vunpack.c.l.b16 %v36
  %v121 = vunpack.c.l.b16 %v37
  %v122 = vunpack.c.l.b16 %v38
  %v123 = vunpack.c.l.b16 %v39
  %v124 = vunpack.c.l.b16 %v40
  %v125 = vunpack.c.l.b16 %v41
  %v126 = vunpack.c.l.b16 %v42
  %v127 = vunpack.c.l.b16 %v43
  %v128 = vunpack.c.l.b16 %v44
  %v129 = vunpack.c.l.b16 %v45
  %v130 = vunpack.c.l.b16 %v46
  %v131 = vunpack.c.l.b16 %v47
  %v132 = vunpack.c.l.b16 %v48
  %v133 = vunpack.c.l.b16 %v49
  %v134 = vunpack.c.l.b16 %v50
  %v135 = vunpack.c.l.b16 %v51
  %v136 = vunpack.c.l.b16 %v52
  %v137 = vunpack.c.l.b16 %v53
  %v138 = vunpack.c.l.b16 %v54
  %v139 = vunpack.c.l.b16 %v55
  %v140 = vunpack.c.l.b16 %v56
  %v141 = vpack.c.b16 %v110, %v109
  %v142 = vpack.c.b16 %v112, %v111
  %v143 = vpack.c.b16 %v114, %v113
  %v144 = vpack.c.b16 %v116, %v115
  %v145 = vpack.c.b16 %v118, %v117
  %v146 = vpack.c.b16 %v120, %v119
  %v147 = vpack.c.b16 %v122, %v121
  %v148 = vpack.c.b16 %v124, %v123
  %v149 = vpack.c.b16 %v126, %v125
  %v150 = vpack.c.b16 %v128, %v127
  %v151 = vpack.c.b16 %v130, %v129
  %v152 = vpack.c.b16 %v132, %v131
  %v153 = vpack.c.b16 %v134, %v133
  %v154 = vpack.c.b16 %v136, %v135
  %v155 = vpack.c.b16 %v138, %v137
  %v156 = vpack.c.b16 %v140, %v139
  %173 = vmatprep.subr.bf16.mxu0 0
  %174 = vmatpush1.bf16.msra.mxu0 %v141
  %175 = vmatprep.subr.bf16.mxu0 0
  %176 = vmatpush1.bf16.msra.mxu0 %v142
  %177 = vmatprep.subr.bf16.mxu0 0
  %178 = vmatpush1.bf16.msra.mxu0 %v143
  %179 = vmatprep.subr.bf16.mxu0 0
  %180 = vmatpush1.bf16.msra.mxu0 %v144
  %181 = vmatprep.subr.bf16.mxu0 0
  %182 = vmatpush1.bf16.msra.mxu0 %v145
  %183 = vmatprep.subr.bf16.mxu0 0
  %184 = vmatpush1.bf16.msra.mxu0 %v146
  %185 = vmatprep.subr.bf16.mxu0 0
  %186 = vmatpush1.bf16.msra.mxu0 %v147
  %187 = vmatprep.subr.bf16.mxu0 0
  %188 = vmatpush1.bf16.msra.mxu0 %v148
  %189 = vmatprep.subr.bf16.mxu0 0
  %190 = vmatpush1.bf16.msra.mxu0 %v149
  %191 = vmatprep.subr.bf16.mxu0 0
  %192 = vmatpush1.bf16.msra.mxu0 %v150
  %193 = vmatprep.subr.bf16.mxu0 0
  %194 = vmatpush1.bf16.msra.mxu0 %v151
  %195 = vmatprep.subr.bf16.mxu0 0
  %196 = vmatpush1.bf16.msra.mxu0 %v152
  %197 = vmatprep.subr.bf16.mxu0 0
  %198 = vmatpush1.bf16.msra.mxu0 %v153
  %199 = vmatprep.subr.bf16.mxu0 0
  %200 = vmatpush1.bf16.msra.mxu0 %v154
  %201 = vmatprep.subr.bf16.mxu0 0
  %202 = vmatpush1.bf16.msra.mxu0 %v155
  %203 = vmatprep.subr.bf16.mxu0 0
  %204 = vmatpush1.bf16.msra.mxu0 %v156
  %205 = vmatprep.mubr.bf16.mxu0 %v70
  %206 = vmatmul.mubr.bf16.gmra.mrb[0].mxu0 %v69
  %v207 = vpop.f32.mrb[0].mxu0
  %v208 = vadd.f32 0.0, %v207
  %v209 = vpop.f32.mrb[0].mxu0
  %v210 = vpop.f32.mrb[0].mxu0
  %v211 = vadd.f32 0.0, %v210
  %v212 = vpop.f32.mrb[0].mxu0
  %213 = vmatprep.mubr.bf16.mxu0 %v72
  %214 = vmatmul.mubr.bf16.gmra.mrb[0].mxu0 %v71
  %v215 = vpop.f32.mrb[0].mxu0
  %v216 = vadd.f32 0.0, %v215
  %v217 = vpop.f32.mrb[0].mxu0
  %v218 = vpop.f32.mrb[0].mxu0
  %v219 = vadd.f32 0.0, %v218
  %v220 = vpop.f32.mrb[0].mxu0
  %221 = vdwg.mxu0
  %v222 = vld [vmem:[%s4] sm:$0xff]
  %v223 = vld [vmem:[%s4 + $0x8] sm:$0xff]
  %v224 = vld [vmem:[%s4 + $0x10] sm:$0xff]
  %v225 = vld [vmem:[%s4 + $0x18] sm:$0xff]
  %v226 = vmul.f32 %v208, %v222
  %v227 = vmul.f32 %v211, %v223
  %v228 = vmul.f32 %v216, %v224
  %v229 = vmul.f32 %v219, %v225
  %v230 = vadd.f32 %v226, %v227
  %v231 = vadd.f32 %v230, %v228
  %v232 = vadd.f32 %v231, %v229
  %v233 = vrot.slane %v232, 4
  %v234 = vadd.f32 %v232, %v233
  %v235 = vrot.slane %v234, 2
  %v236 = vadd.f32 %v234, %v235
  %v237 = vrot.slane %v236, 1
  %v238 = vadd.f32 %v236, %v237
  %v239 = vadd.f32 %v238, 0.0
  %v240 = vmul.f32 %v239, 0.03125
  %v241 = vsub.f32 %v208, %v240
  %v242 = vsub.f32 %v211, %v240
  %v243 = vsub.f32 %v216, %v240
  %v244 = vsub.f32 %v219, %v240
  %v245 = vmul.f32 %v241, %v222
  %v246 = vmul.f32 %v242, %v223
  %v247 = vmul.f32 %v243, %v224
  %v248 = vmul.f32 %v244, %v225
  %v249 = vmul.f32 %v245, %v245
  %v250 = vmul.f32 %v246, %v246
  %v251 = vmul.f32 %v247, %v247
  %v252 = vmul.f32 %v248, %v248
  %v253 = vadd.f32 %v249, %v250
  %v254 = vadd.f32 %v253, %v251
  %v255 = vadd.f32 %v254, %v252
  %v256 = vrot.slane %v255, 4
  %v257 = vadd.f32 %v255, %v256
  %v258 = vrot.slane %v257, 2
  %v259 = vadd.f32 %v257, %v258
  %v260 = vrot.slane %v259, 1
  %v261 = vadd.f32 %v259, %v260
  %v262 = vadd.f32 %v261, 0.0
  %v263 = vmul.f32 %v262, 0.03125
  %v264 = vld [vmem:[%s2] sm:$0x1]
  %v265 = vadd.f32 %v263, 1e-05
  %v266 = vrsqrt.pop %v265
  %v267 = vmul.f32 %v264, %v266
  %v268 = vld [vmem:[%s3] sm:$0x1]
  %v269 = vmul.f32 %v240, %v267
  %v270 = vsub.f32 %v268, %v269
  %v272 = vlaneseq
  %v273 = vshrl.u32 %v272, 7
  %v274 = vsub.s32 0, %v273
  %v275 = vrot.slane %v267, %v274
  %v277 = vmul.f32 %v208, %v275
  %v278 = vmul.f32 %v211, %v275
  %v279 = vmul.f32 %v216, %v275
  %v280 = vmul.f32 %v219, %v275
  %v282 = vlaneseq
  %v283 = vshrl.u32 %v282, 7
  %v284 = vsub.s32 0, %v283
  %v285 = vrot.slane %v270, %v284
  %v287 = vadd.f32 %v277, %v285
  %v288 = vadd.f32 %v278, %v285
  %v289 = vadd.f32 %v279, %v285
  %v290 = vadd.f32 %v280, %v285
  %vm291 = vcmp.ge.f32.partialorder %v287, 0.0
  %vm292 = vcmp.ge.f32.partialorder %v288, 0.0
  %vm293 = vcmp.ge.f32.partialorder %v289, 0.0
  %vm294 = vcmp.ge.f32.partialorder %v290, 0.0
  %v295 = vmul.f32 %v287, 0.01
  %v296 = vmul.f32 %v288, 0.01
  %v297 = vmul.f32 %v289, 0.01
  %v298 = vmul.f32 %v290, 0.01
  %v299 = vsel %vm291, %v287, %v295
  %v300 = vsel %vm292, %v288, %v296
  %v301 = vsel %vm293, %v289, %v297
  %v302 = vsel %vm294, %v290, %v298
  %303 = vst [vmem:[%s5] sm:$0xff] %v299
  %304 = vst [vmem:[%s5 + $0x8] sm:$0xff] %v300
  %305 = vst [vmem:[%s5 + $0x10] sm:$0xff] %v301
  %306 = vst [vmem:[%s5 + $0x18] sm:$0xff] %v302
  // Predicated region
  $region22: #{_lambda_.7} parent=0 // pred_check
    _
  $region23: #{_lambda_.7} parent=0 // pred_check_branch
    %308 = sbr.rel (0) target = $region25
  $region24: #{_lambda_.7} parent=0 // pred_region
    _
  $region25: #{_lambda_.7} parent=0 // pred_fallthru
    _
  // Predicated region
  $region26: #{_lambda_.7} parent=0 // pred_check
    _
  $region27: #{_lambda_.7} parent=0 // pred_check_branch
    %310 = sbr.rel (0) target = $region29
  $region28: #{_lambda_.7} parent=0 // pred_region
    _
  $region29: #{_lambda_.7} parent=0 // pred_fallthru
    _

// kernel: _lambda_.8
$region0: #{_lambda_.8}
  #allocation0 [shape = 'u32[]', space=smem, size = 0x4, offset = 0x4, fixed_abs, tag = 'smem constant byte address 0x4 - core index']
  #allocation1 [shape = 'u32[144,128]{1,0:T(1,128)}', space=vmem, size = 0x12000, scoped, tag = 'internal scratch']
  %s0 = inlined_call_operand.vmem [shape: bf16[8,512], index: 0, kind: input, shape index: {}]
  %s1 = inlined_call_operand.vmem [shape: bf16[512,128], index: 1, kind: input, shape index: {}]
  %s2 = inlined_call_operand.vmem [shape: f32[1,128], index: 2, kind: input, shape index: {}]
  %s3 = inlined_call_operand.vmem [shape: f32[1,128], index: 3, kind: input, shape index: {}]
  %s4 = inlined_call_operand.vmem [shape: f32[8,128], index: 4, kind: input, shape index: {}]
  %s5 = inlined_call_operand.vmem [shape: f32[8,128], index: 5, kind: output, shape index: {}]
  %s6 = sld [smem:[#allocation0]]
  $region30: #{_lambda_.8} parent=0
    _
  %s8 = ssub.s32 1, %s6
  %s9 = scalar_select 0, %s8, %s6
  // Predicated region
  $region2: #{_lambda_.8} parent=0 // pred_check
    _
  $region3: #{_lambda_.8} parent=0 // pred_check_branch
    %11 = sbr.rel (0) target = $region5
  $region4: #{_lambda_.8} parent=0 // pred_region
    _
  $region5: #{_lambda_.8} parent=0 // pred_fallthru
    _
  // Predicated region
  $region6: #{_lambda_.8} parent=0 // pred_check
    _
  $region7: #{_lambda_.8} parent=0 // pred_check_branch
    %13 = sbr.rel (0) target = $region9
  $region8: #{_lambda_.8} parent=0 // pred_region
    _
  $region9: #{_lambda_.8} parent=0 // pred_fallthru
    _
  // Predicated region
  $region10: #{_lambda_.8} parent=0 // pred_check
    _
  $region11: #{_lambda_.8} parent=0 // pred_check_branch
    %15 = sbr.rel (0) target = $region13
  $region12: #{_lambda_.8} parent=0 // pred_region
    _
  $region13: #{_lambda_.8} parent=0 // pred_fallthru
    _
  // Predicated region
  $region14: #{_lambda_.8} parent=0 // pred_check
    _
  $region15: #{_lambda_.8} parent=0 // pred_check_branch
    %17 = sbr.rel (0) target = $region17
  $region16: #{_lambda_.8} parent=0 // pred_region
    _
  $region17: #{_lambda_.8} parent=0 // pred_fallthru
    _
  // Predicated region
  $region18: #{_lambda_.8} parent=0 // pred_check
    _
  $region19: #{_lambda_.8} parent=0 // pred_check_branch
    %19 = sbr.rel (0) target = $region21
  $region20: #{_lambda_.8} parent=0 // pred_region
    _
  $region21: #{_lambda_.8} parent=0 // pred_fallthru
    _
  %v21 = vld [vmem:[%s0] sm:$0xff]
  %v22 = vld [vmem:[%s0 + $0x8] sm:$0xff]
  %v23 = vld [vmem:[%s1] sm:$0xf]
  %v24 = vld [vmem:[%s1 + $0x4] sm:$0xf]
  %v25 = vld [vmem:[%s1 + $0x8] sm:$0xf]
  %v26 = vld [vmem:[%s1 + $0xc] sm:$0xf]
  %v27 = vld [vmem:[%s1 + $0x10] sm:$0xf]
  %v28 = vld [vmem:[%s1 + $0x14] sm:$0xf]
  %v29 = vld [vmem:[%s1 + $0x18] sm:$0xf]
  %v30 = vld [vmem:[%s1 + $0x1c] sm:$0xf]
  %v31 = vld [vmem:[%s1 + $0x20] sm:$0xf]
  %v32 = vld [vmem:[%s1 + $0x24] sm:$0xf]
  %v33 = vld [vmem:[%s1 + $0x28] sm:$0xf]
  %v34 = vld [vmem:[%s1 + $0x2c] sm:$0xf]
  %v35 = vld [vmem:[%s1 + $0x30] sm:$0xf]
  %v36 = vld [vmem:[%s1 + $0x34] sm:$0xf]
  %v37 = vld [vmem:[%s1 + $0x38] sm:$0xf]
  %v38 = vld [vmem:[%s1 + $0x3c] sm:$0xf]
  %v39 = vld [vmem:[%s1 + $0x40] sm:$0xf]
  %v40 = vld [vmem:[%s1 + $0x44] sm:$0xf]
  %v41 = vld [vmem:[%s1 + $0x48] sm:$0xf]
  %v42 = vld [vmem:[%s1 + $0x4c] sm:$0xf]
  %v43 = vld [vmem:[%s1 + $0x50] sm:$0xf]
  %v44 = vld [vmem:[%s1 + $0x54] sm:$0xf]
  %v45 = vld [vmem:[%s1 + $0x58] sm:$0xf]
  %v46 = vld [vmem:[%s1 + $0x5c] sm:$0xf]
  %v47 = vld [vmem:[%s1 + $0x60] sm:$0xf]
  %v48 = vld [vmem:[%s1 + $0x64] sm:$0xf]
  %v49 = vld [vmem:[%s1 + $0x68] sm:$0xf]
  %v50 = vld [vmem:[%s1 + $0x6c] sm:$0xf]
  %v51 = vld [vmem:[%s1 + $0x70] sm:$0xf]
  %v52 = vld [vmem:[%s1 + $0x74] sm:$0xf]
  %v53 = vld [vmem:[%s1 + $0x78] sm:$0xf]
  %v54 = vld [vmem:[%s1 + $0x7c] sm:$0xf]
  %v55 = vld [vmem:[%s1 + $0x80] sm:$0xf]
  %v56 = vld [vmem:[%s1 + $0x84] sm:$0xf]
  %v57 = vld [vmem:[%s1 + $0x88] sm:$0xf]
  %v58 = vld [vmem:[%s1 + $0x8c] sm:$0xf]
  %v59 = vld [vmem:[%s1 + $0x90] sm:$0xf]
  %v60 = vld [vmem:[%s1 + $0x94] sm:$0xf]
  %v61 = vld [vmem:[%s1 + $0x98] sm:$0xf]
  %v62 = vld [vmem:[%s1 + $0x9c] sm:$0xf]
  %v63 = vld [vmem:[%s1 + $0xa0] sm:$0xf]
  %v64 = vld [vmem:[%s1 + $0xa4] sm:$0xf]
  %v65 = vld [vmem:[%s1 + $0xa8] sm:$0xf]
  %v66 = vld [vmem:[%s1 + $0xac] sm:$0xf]
  %v67 = vld [vmem:[%s1 + $0xb0] sm:$0xf]
  %v68 = vld [vmem:[%s1 + $0xb4] sm:$0xf]
  %v69 = vld [vmem:[%s1 + $0xb8] sm:$0xf]
  %v70 = vld [vmem:[%s1 + $0xbc] sm:$0xf]
  %v71 = vld [vmem:[%s1 + $0xc0] sm:$0xf]
  %v72 = vld [vmem:[%s1 + $0xc4] sm:$0xf]
  %v73 = vld [vmem:[%s1 + $0xc8] sm:$0xf]
  %v74 = vld [vmem:[%s1 + $0xcc] sm:$0xf]
  %v75 = vld [vmem:[%s1 + $0xd0] sm:$0xf]
  %v76 = vld [vmem:[%s1 + $0xd4] sm:$0xf]
  %v77 = vld [vmem:[%s1 + $0xd8] sm:$0xf]
  %v78 = vld [vmem:[%s1 + $0xdc] sm:$0xf]
  %v79 = vld [vmem:[%s1 + $0xe0] sm:$0xf]
  %v80 = vld [vmem:[%s1 + $0xe4] sm:$0xf]
  %v81 = vld [vmem:[%s1 + $0xe8] sm:$0xf]
  %v82 = vld [vmem:[%s1 + $0xec] sm:$0xf]
  %v83 = vld [vmem:[%s1 + $0xf0] sm:$0xf]
  %v84 = vld [vmem:[%s1 + $0xf4] sm:$0xf]
  %v85 = vld [vmem:[%s1 + $0xf8] sm:$0xf]
  %v86 = vld [vmem:[%s1 + $0xfc] sm:$0xf]
  %v89 = vunpack.c.l.b16 %v21
  %v90 = vunpack.c.h.b16 %v21
  %v91 = vunpack.c.l.b16 %v22
  %v92 = vunpack.c.h.b16 %v22
  %v93 = vpack.c.b16 %v89, %v89
  %v94 = vpack.c.b16 %v90, %v90
  %v95 = vpack.c.b16 %v91, %v91
  %v96 = vpack.c.b16 %v92, %v92
  %v165 = vunpack.c.l.b16 %v23
  %v166 = vunpack.c.l.b16 %v24
  %v167 = vunpack.c.l.b16 %v25
  %v168 = vunpack.c.l.b16 %v26
  %v169 = vunpack.c.l.b16 %v27
  %v170 = vunpack.c.l.b16 %v28
  %v171 = vunpack.c.l.b16 %v29
  %v172 = vunpack.c.l.b16 %v30
  %v173 = vunpack.c.l.b16 %v31
  %v174 = vunpack.c.l.b16 %v32
  %v175 = vunpack.c.l.b16 %v33
  %v176 = vunpack.c.l.b16 %v34
  %v177 = vunpack.c.l.b16 %v35
  %v178 = vunpack.c.l.b16 %v36
  %v179 = vunpack.c.l.b16 %v37
  %v180 = vunpack.c.l.b16 %v38
  %v181 = vunpack.c.l.b16 %v39
  %v182 = vunpack.c.l.b16 %v40
  %v183 = vunpack.c.l.b16 %v41
  %v184 = vunpack.c.l.b16 %v42
  %v185 = vunpack.c.l.b16 %v43
  %v186 = vunpack.c.l.b16 %v44
  %v187 = vunpack.c.l.b16 %v45
  %v188 = vunpack.c.l.b16 %v46
  %v189 = vunpack.c.l.b16 %v47
  %v190 = vunpack.c.l.b16 %v48
  %v191 = vunpack.c.l.b16 %v49
  %v192 = vunpack.c.l.b16 %v50
  %v193 = vunpack.c.l.b16 %v51
  %v194 = vunpack.c.l.b16 %v52
  %v195 = vunpack.c.l.b16 %v53
  %v196 = vunpack.c.l.b16 %v54
  %v197 = vunpack.c.l.b16 %v55
  %v198 = vunpack.c.l.b16 %v56
  %v199 = vunpack.c.l.b16 %v57
  %v200 = vunpack.c.l.b16 %v58
  %v201 = vunpack.c.l.b16 %v59
  %v202 = vunpack.c.l.b16 %v60
  %v203 = vunpack.c.l.b16 %v61
  %v204 = vunpack.c.l.b16 %v62
  %v205 = vunpack.c.l.b16 %v63
  %v206 = vunpack.c.l.b16 %v64
  %v207 = vunpack.c.l.b16 %v65
  %v208 = vunpack.c.l.b16 %v66
  %v209 = vunpack.c.l.b16 %v67
  %v210 = vunpack.c.l.b16 %v68
  %v211 = vunpack.c.l.b16 %v69
  %v212 = vunpack.c.l.b16 %v70
  %v213 = vunpack.c.l.b16 %v71
  %v214 = vunpack.c.l.b16 %v72
  %v215 = vunpack.c.l.b16 %v73
  %v216 = vunpack.c.l.b16 %v74
  %v217 = vunpack.c.l.b16 %v75
  %v218 = vunpack.c.l.b16 %v76
  %v219 = vunpack.c.l.b16 %v77
  %v220 = vunpack.c.l.b16 %v78
  %v221 = vunpack.c.l.b16 %v79
  %v222 = vunpack.c.l.b16 %v80
  %v223 = vunpack.c.l.b16 %v81
  %v224 = vunpack.c.l.b16 %v82
  %v225 = vunpack.c.l.b16 %v83
  %v226 = vunpack.c.l.b16 %v84
  %v227 = vunpack.c.l.b16 %v85
  %v228 = vunpack.c.l.b16 %v86
  %v229 = vpack.c.b16 %v166, %v165
  %v230 = vpack.c.b16 %v168, %v167
  %v231 = vpack.c.b16 %v170, %v169
  %v232 = vpack.c.b16 %v172, %v171
  %v233 = vpack.c.b16 %v174, %v173
  %v234 = vpack.c.b16 %v176, %v175
  %v235 = vpack.c.b16 %v178, %v177
  %v236 = vpack.c.b16 %v180, %v179
  %v237 = vpack.c.b16 %v182, %v181
  %v238 = vpack.c.b16 %v184, %v183
  %v239 = vpack.c.b16 %v186, %v185
  %v240 = vpack.c.b16 %v188, %v187
  %v241 = vpack.c.b16 %v190, %v189
  %v242 = vpack.c.b16 %v192, %v191
  %v243 = vpack.c.b16 %v194, %v193
  %v244 = vpack.c.b16 %v196, %v195
  %v245 = vpack.c.b16 %v198, %v197
  %v246 = vpack.c.b16 %v200, %v199
  %v247 = vpack.c.b16 %v202, %v201
  %v248 = vpack.c.b16 %v204, %v203
  %v249 = vpack.c.b16 %v206, %v205
  %v250 = vpack.c.b16 %v208, %v207
  %v251 = vpack.c.b16 %v210, %v209
  %v252 = vpack.c.b16 %v212, %v211
  %v253 = vpack.c.b16 %v214, %v213
  %v254 = vpack.c.b16 %v216, %v215
  %v255 = vpack.c.b16 %v218, %v217
  %v256 = vpack.c.b16 %v220, %v219
  %v257 = vpack.c.b16 %v222, %v221
  %v258 = vpack.c.b16 %v224, %v223
  %v259 = vpack.c.b16 %v226, %v225
  %v260 = vpack.c.b16 %v228, %v227
  %293 = vmatprep.subr.bf16.mxu0 0
  %294 = vmatpush1.bf16.msra.mxu0 %v229
  %295 = vmatprep.subr.bf16.mxu0 0
  %296 = vmatpush1.bf16.msra.mxu0 %v230
  %297 = vmatprep.subr.bf16.mxu0 0
  %298 = vmatpush1.bf16.msra.mxu0 %v231
  %299 = vmatprep.subr.bf16.mxu0 0
  %300 = vmatpush1.bf16.msra.mxu0 %v232
  %301 = vmatprep.subr.bf16.mxu0 0
  %302 = vmatpush1.bf16.msra.mxu0 %v233
  %303 = vmatprep.subr.bf16.mxu0 0
  %304 = vmatpush1.bf16.msra.mxu0 %v234
  %305 = vmatprep.subr.bf16.mxu0 0
  %306 = vmatpush1.bf16.msra.mxu0 %v235
  %307 = vmatprep.subr.bf16.mxu0 0
  %308 = vmatpush1.bf16.msra.mxu0 %v236
  %309 = vmatprep.subr.bf16.mxu0 0
  %310 = vmatpush1.bf16.msra.mxu0 %v237
  %311 = vmatprep.subr.bf16.mxu0 0
  %312 = vmatpush1.bf16.msra.mxu0 %v238
  %313 = vmatprep.subr.bf16.mxu0 0
  %314 = vmatpush1.bf16.msra.mxu0 %v239
  %315 = vmatprep.subr.bf16.mxu0 0
  %316 = vmatpush1.bf16.msra.mxu0 %v240
  %317 = vmatprep.subr.bf16.mxu0 0
  %318 = vmatpush1.bf16.msra.mxu0 %v241
  %319 = vmatprep.subr.bf16.mxu0 0
  %320 = vmatpush1.bf16.msra.mxu0 %v242
  %321 = vmatprep.subr.bf16.mxu0 0
  %322 = vmatpush1.bf16.msra.mxu0 %v243
  %323 = vmatprep.subr.bf16.mxu0 0
  %324 = vmatpush1.bf16.msra.mxu0 %v244
  %325 = vmatprep.mubr.bf16.mxu0 %v94
  %326 = vmatmul.mubr.bf16.gmra.mrb[0].mxu0 %v93
  %v327 = vpop.f32.mrb[0].mxu0
  %v328 = vadd.f32 0.0, %v327
  %v329 = vpop.f32.mrb[0].mxu0
  %v330 = vpop.f32.mrb[0].mxu0
  %v331 = vpop.f32.mrb[0].mxu0
  %332 = vdwg.mxu0
  %333 = vmatprep.subr.bf16.mxu0 0
  %334 = vmatpush1.bf16.msra.mxu0 %v245
  %335 = vmatprep.subr.bf16.mxu0 0
  %336 = vmatpush1.bf16.msra.mxu0 %v246
  %337 = vmatprep.subr.bf16.mxu0 0
  %338 = vmatpush1.bf16.msra.mxu0 %v247
  %339 = vmatprep.subr.bf16.mxu0 0
  %340 = vmatpush1.bf16.msra.mxu0 %v248
  %341 = vmatprep.subr.bf16.mxu0 0
  %342 = vmatpush1.bf16.msra.mxu0 %v249
  %343 = vmatprep.subr.bf16.mxu0 0
  %344 = vmatpush1.bf16.msra.mxu0 %v250
  %345 = vmatprep.subr.bf16.mxu0 0
  %346 = vmatpush1.bf16.msra.mxu0 %v251
  %347 = vmatprep.subr.bf16.mxu0 0
  %348 = vmatpush1.bf16.msra.mxu0 %v252
  %349 = vmatprep.subr.bf16.mxu0 0
  %350 = vmatpush1.bf16.msra.mxu0 %v253
  %351 = vmatprep.subr.bf16.mxu0 0
  %352 = vmatpush1.bf16.msra.mxu0 %v254
  %353 = vmatprep.subr.bf16.mxu0 0
  %354 = vmatpush1.bf16.msra.mxu0 %v255
  %355 = vmatprep.subr.bf16.mxu0 0
  %356 = vmatpush1.bf16.msra.mxu0 %v256
  %357 = vmatprep.subr.bf16.mxu0 0
  %358 = vmatpush1.bf16.msra.mxu0 %v257
  %359 = vmatprep.subr.bf16.mxu0 0
  %360 = vmatpush1.bf16.msra.mxu0 %v258
  %361 = vmatprep.subr.bf16.mxu0 0
  %362 = vmatpush1.bf16.msra.mxu0 %v259
  %363 = vmatprep.subr.bf16.mxu0 0
  %364 = vmatpush1.bf16.msra.mxu0 %v260
  %365 = vmatprep.mubr.bf16.mxu0 %v96
  %366 = vmatmul.mubr.bf16.gmra.mrb[0].mxu0 %v95
  %v367 = vpop.f32.mrb[0].mxu0
  %v368 = vadd.f32 %v328, %v367
  %v369 = vpop.f32.mrb[0].mxu0
  %v370 = vpop.f32.mrb[0].mxu0
  %v371 = vpop.f32.mrb[0].mxu0
  %372 = vdwg.mxu0
  %v373 = vld [vmem:[%s4] sm:$0xff]
  %v374 = vmul.f32 %v368, %v373
  %v375 = vrot.slane %v374, 4
  %v376 = vadd.f32 %v374, %v375
  %v377 = vrot.slane %v376, 2
  %v378 = vadd.f32 %v376, %v377
  %v379 = vrot.slane %v378, 1
  %v380 = vadd.f32 %v378, %v379
  %v381 = vadd.f32 %v380, 0.0
  %v382 = vmul.f32 %v381, 0.125
  %v383 = vsub.f32 %v368, %v382
  %v384 = vmul.f32 %v383, %v373
  %v385 = vmul.f32 %v384, %v384
  %v386 = vrot.slane %v385, 4
  %v387 = vadd.f32 %v385, %v386
  %v388 = vrot.slane %v387, 2
  %v389 = vadd.f32 %v387, %v388
  %v390 = vrot.slane %v389, 1
  %v391 = vadd.f32 %v389, %v390
  %v392 = vadd.f32 %v391, 0.0
  %v393 = vmul.f32 %v392, 0.125
  %v394 = vld [vmem:[%s2] sm:$0x1]
  %v395 = vadd.f32 %v393, 1e-05
  %v396 = vrsqrt.pop %v395
  %v397 = vmul.f32 %v394, %v396
  %v398 = vld [vmem:[%s3] sm:$0x1]
  %v399 = vmul.f32 %v382, %v397
  %v400 = vsub.f32 %v398, %v399
  %v402 = vlaneseq
  %v403 = vshrl.u32 %v402, 7
  %v404 = vsub.s32 0, %v403
  %v405 = vrot.slane %v397, %v404
  %v407 = vmul.f32 %v368, %v405
  %v409 = vlaneseq
  %v410 = vshrl.u32 %v409, 7
  %v411 = vsub.s32 0, %v410
  %v412 = vrot.slane %v400, %v411
  %v414 = vadd.f32 %v407, %v412
  %vm415 = vcmp.ge.f32.partialorder %v414, 0.0
  %v416 = vmul.f32 %v414, 0.01
  %v417 = vsel %vm415, %v414, %v416
  %418 = vst [vmem:[%s5] sm:$0xff] %v417
  // Predicated region
  $region22: #{_lambda_.8} parent=0 // pred_check
    _
  $region23: #{_lambda_.8} parent=0 // pred_check_branch
    %420 = sbr.rel (0) target = $region25
  $region24: #{_lambda_.8} parent=0 // pred_region
    _
  $region25: #{_lambda_.8} parent=0 // pred_fallthru
    _
  // Predicated region
  $region26: #{_lambda_.8} parent=0 // pred_check
    _
  $region27: #{_lambda_.8} parent=0 // pred_check_branch
    %422 = sbr.rel (0) target = $region29
  $region28: #{_lambda_.8} parent=0 // pred_region
    _
  $region29: #{_lambda_.8} parent=0 // pred_fallthru
    _

// kernel: _lambda_.9
$region0: #{_lambda_.9}
  #allocation0 [shape = 'u32[]', space=smem, size = 0x4, offset = 0x4, fixed_abs, tag = 'smem constant byte address 0x4 - core index']
  #allocation1 [shape = 'u32[144,128]{1,0:T(1,128)}', space=vmem, size = 0x12000, scoped, tag = 'internal scratch']
  %s0 = inlined_call_operand.vmem [shape: bf16[24,256], index: 0, kind: input, shape index: {}]
  %s1 = inlined_call_operand.vmem [shape: bf16[256,512], index: 1, kind: input, shape index: {}]
  %s2 = inlined_call_operand.vmem [shape: f32[1,128], index: 2, kind: input, shape index: {}]
  %s3 = inlined_call_operand.vmem [shape: f32[1,128], index: 3, kind: input, shape index: {}]
  %s4 = inlined_call_operand.vmem [shape: f32[24,512], index: 4, kind: input, shape index: {}]
  %s5 = inlined_call_operand.vmem [shape: f32[24,512], index: 5, kind: output, shape index: {}]
  %s6 = sld [smem:[#allocation0]]
  $region30: #{_lambda_.9} parent=0
    _
  %s8 = ssub.s32 1, %s6
  %s9 = scalar_select 0, %s8, %s6
  // Predicated region
  $region2: #{_lambda_.9} parent=0 // pred_check
    _
  $region3: #{_lambda_.9} parent=0 // pred_check_branch
    %11 = sbr.rel (0) target = $region5
  $region4: #{_lambda_.9} parent=0 // pred_region
    _
  $region5: #{_lambda_.9} parent=0 // pred_fallthru
    _
  // Predicated region
  $region6: #{_lambda_.9} parent=0 // pred_check
    _
  $region7: #{_lambda_.9} parent=0 // pred_check_branch
    %13 = sbr.rel (0) target = $region9
  $region8: #{_lambda_.9} parent=0 // pred_region
    _
  $region9: #{_lambda_.9} parent=0 // pred_fallthru
    _
  // Predicated region
  $region10: #{_lambda_.9} parent=0 // pred_check
    _
  $region11: #{_lambda_.9} parent=0 // pred_check_branch
    %15 = sbr.rel (0) target = $region13
  $region12: #{_lambda_.9} parent=0 // pred_region
    _
  $region13: #{_lambda_.9} parent=0 // pred_fallthru
    _
  // Predicated region
  $region14: #{_lambda_.9} parent=0 // pred_check
    _
  $region15: #{_lambda_.9} parent=0 // pred_check_branch
    %17 = sbr.rel (0) target = $region17
  $region16: #{_lambda_.9} parent=0 // pred_region
    _
  $region17: #{_lambda_.9} parent=0 // pred_fallthru
    _
  // Predicated region
  $region18: #{_lambda_.9} parent=0 // pred_check
    _
  $region19: #{_lambda_.9} parent=0 // pred_check_branch
    %19 = sbr.rel (0) target = $region21
  $region20: #{_lambda_.9} parent=0 // pred_region
    _
  $region21: #{_lambda_.9} parent=0 // pred_fallthru
    _
  %v20 = vld [vmem:[%s0] sm:$0xff]
  %v21 = vld [vmem:[%s0 + $0x8] sm:$0xff]
  %v22 = vld [vmem:[%s0 + $0x10] sm:$0xff]
  %v23 = vld [vmem:[%s1] sm:$0xff]
  %v24 = vld [vmem:[%s1 + $0x8] sm:$0xff]
  %v25 = vld [vmem:[%s1 + $0x10] sm:$0xff]
  %v26 = vld [vmem:[%s1 + $0x18] sm:$0xff]
  %v27 = vld [vmem:[%s1 + $0x20] sm:$0xff]
  %v28 = vld [vmem:[%s1 + $0x28] sm:$0xff]
  %v29 = vld [vmem:[%s1 + $0x30] sm:$0xff]
  %v30 = vld [vmem:[%s1 + $0x38] sm:$0xff]
  %v31 = vld [vmem:[%s1 + $0x40] sm:$0xff]
  %v32 = vld [vmem:[%s1 + $0x48] sm:$0xff]
  %v33 = vld [vmem:[%s1 + $0x50] sm:$0xff]
  %v34 = vld [vmem:[%s1 + $0x58] sm:$0xff]
  %v35 = vld [vmem:[%s1 + $0x60] sm:$0xff]
  %v36 = vld [vmem:[%s1 + $0x68] sm:$0xff]
  %v37 = vld [vmem:[%s1 + $0x70] sm:$0xff]
  %v38 = vld [vmem:[%s1 + $0x78] sm:$0xff]
  %v39 = vld [vmem:[%s1 + $0x80] sm:$0xff]
  %v40 = vld [vmem:[%s1 + $0x88] sm:$0xff]
  %v41 = vld [vmem:[%s1 + $0x90] sm:$0xff]
  %v42 = vld [vmem:[%s1 + $0x98] sm:$0xff]
  %v43 = vld [vmem:[%s1 + $0xa0] sm:$0xff]
  %v44 = vld [vmem:[%s1 + $0xa8] sm:$0xff]
  %v45 = vld [vmem:[%s1 + $0xb0] sm:$0xff]
  %v46 = vld [vmem:[%s1 + $0xb8] sm:$0xff]
  %v47 = vld [vmem:[%s1 + $0xc0] sm:$0xff]
  %v48 = vld [vmem:[%s1 + $0xc8] sm:$0xff]
  %v49 = vld [vmem:[%s1 + $0xd0] sm:$0xff]
  %v50 = vld [vmem:[%s1 + $0xd8] sm:$0xff]
  %v51 = vld [vmem:[%s1 + $0xe0] sm:$0xff]
  %v52 = vld [vmem:[%s1 + $0xe8] sm:$0xff]
  %v53 = vld [vmem:[%s1 + $0xf0] sm:$0xff]
  %v54 = vld [vmem:[%s1 + $0xf8] sm:$0xff]
  %v55 = vld [vmem:[%s1 + $0x100] sm:$0xff]
  %v56 = vld [vmem:[%s1 + $0x108] sm:$0xff]
  %v57 = vld [vmem:[%s1 + $0x110] sm:$0xff]
  %v58 = vld [vmem:[%s1 + $0x118] sm:$0xff]
  %v59 = vld [vmem:[%s1 + $0x120] sm:$0xff]
  %v60 = vld [vmem:[%s1 + $0x128] sm:$0xff]
  %v61 = vld [vmem:[%s1 + $0x130] sm:$0xff]
  %v62 = vld [vmem:[%s1 + $0x138] sm:$0xff]
  %v63 = vld [vmem:[%s1 + $0x140] sm:$0xff]
  %v64 = vld [vmem:[%s1 + $0x148] sm:$0xff]
  %v65 = vld [vmem:[%s1 + $0x150] sm:$0xff]
  %v66 = vld [vmem:[%s1 + $0x158] sm:$0xff]
  %v67 = vld [vmem:[%s1 + $0x160] sm:$0xff]
  %v68 = vld [vmem:[%s1 + $0x168] sm:$0xff]
  %v69 = vld [vmem:[%s1 + $0x170] sm:$0xff]
  %v70 = vld [vmem:[%s1 + $0x178] sm:$0xff]
  %v71 = vld [vmem:[%s1 + $0x180] sm:$0xff]
  %v72 = vld [vmem:[%s1 + $0x188] sm:$0xff]
  %v73 = vld [vmem:[%s1 + $0x190] sm:$0xff]
  %v74 = vld [vmem:[%s1 + $0x198] sm:$0xff]
  %v75 = vld [vmem:[%s1 + $0x1a0] sm:$0xff]
  %v76 = vld [vmem:[%s1 + $0x1a8] sm:$0xff]
  %v77 = vld [vmem:[%s1 + $0x1b0] sm:$0xff]
  %v78 = vld [vmem:[%s1 + $0x1b8] sm:$0xff]
  %v79 = vld [vmem:[%s1 + $0x1c0] sm:$0xff]
  %v80 = vld [vmem:[%s1 + $0x1c8] sm:$0xff]
  %v81 = vld [vmem:[%s1 + $0x1d0] sm:$0xff]
  %v82 = vld [vmem:[%s1 + $0x1d8] sm:$0xff]
  %v83 = vld [vmem:[%s1 + $0x1e0] sm:$0xff]
  %v84 = vld [vmem:[%s1 + $0x1e8] sm:$0xff]
  %v85 = vld [vmem:[%s1 + $0x1f0] sm:$0xff]
  %v86 = vld [vmem:[%s1 + $0x1f8] sm:$0xff]
  %v90 = vunpack.c.l.b16 %v20
  %v91 = vunpack.c.h.b16 %v20
  %v92 = vunpack.c.l.b16 %v21
  %v93 = vunpack.c.h.b16 %v21
  %v94 = vunpack.c.l.b16 %v22
  %v95 = vunpack.c.h.b16 %v22
  %v96 = vpack.c.b16 %v92, %v90
  %v97 = vpack.c.b16 %v93, %v91
  %v98 = vpack.c.b16 %v94, %v94
  %v99 = vpack.c.b16 %v95, %v95
  %v168 = vunpack.c.l.b16 %v23
  %v169 = vunpack.c.h.b16 %v23
  %v170 = vunpack.c.l.b16 %v24
  %v171 = vunpack.c.h.b16 %v24
  %v172 = vunpack.c.l.b16 %v25
  %v173 = vunpack.c.h.b16 %v25
  %v174 = vunpack.c.l.b16 %v26
  %v175 = vunpack.c.h.b16 %v26
  %v176 = vunpack.c.l.b16 %v27
  %v177 = vunpack.c.h.b16 %v27
  %v178 = vunpack.c.l.b16 %v28
  %v179 = vunpack.c.h.b16 %v28
  %v180 = vunpack.c.l.b16 %v29
  %v181 = vunpack.c.h.b16 %v29
  %v182 = vunpack.c.l.b16 %v30
  %v183 = vunpack.c.h.b16 %v30
  %v184 = vunpack.c.l.b16 %v31
  %v185 = vunpack.c.h.b16 %v31
  %v186 = vunpack.c.l.b16 %v32
  %v187 = vunpack.c.h.b16 %v32
  %v188 = vunpack.c.l.b16 %v33
  %v189 = vunpack.c.h.b16 %v33
  %v190 = vunpack.c.l.b16 %v34
  %v191 = vunpack.c.h.b16 %v34
  %v192 = vunpack.c.l.b16 %v35
  %v193 = vunpack.c.h.b16 %v35
  %v194 = vunpack.c.l.b16 %v36
  %v195 = vunpack.c.h.b16 %v36
  %v196 = vunpack.c.l.b16 %v37
  %v197 = vunpack.c.h.b16 %v37
  %v198 = vunpack.c.l.b16 %v38
  %v199 = vunpack.c.h.b16 %v38
  %v200 = vunpack.c.l.b16 %v39
  %v201 = vunpack.c.h.b16 %v39
  %v202 = vunpack.c.l.b16 %v40
  %v203 = vunpack.c.h.b16 %v40
  %v204 = vunpack.c.l.b16 %v41
  %v205 = vunpack.c.h.b16 %v41
  %v206 = vunpack.c.l.b16 %v42
  %v207 = vunpack.c.h.b16 %v42
  %v208 = vunpack.c.l.b16 %v43
  %v209 = vunpack.c.h.b16 %v43
  %v210 = vunpack.c.l.b16 %v44
  %v211 = vunpack.c.h.b16 %v44
  %v212 = vunpack.c.l.b16 %v45
  %v213 = vunpack.c.h.b16 %v45
  %v214 = vunpack.c.l.b16 %v46
  %v215 = vunpack.c.h.b16 %v46
  %v216 = vunpack.c.l.b16 %v47
  %v217 = vunpack.c.h.b16 %v47
  %v218 = vunpack.c.l.b16 %v48
  %v219 = vunpack.c.h.b16 %v48
  %v220 = vunpack.c.l.b16 %v49
  %v221 = vunpack.c.h.b16 %v49
  %v222 = vunpack.c.l.b16 %v50
  %v223 = vunpack.c.h.b16 %v50
  %v224 = vunpack.c.l.b16 %v51
  %v225 = vunpack.c.h.b16 %v51
  %v226 = vunpack.c.l.b16 %v52
  %v227 = vunpack.c.h.b16 %v52
  %v228 = vunpack.c.l.b16 %v53
  %v229 = vunpack.c.h.b16 %v53
  %v230 = vunpack.c.l.b16 %v54
  %v231 = vunpack.c.h.b16 %v54
  %v232 = vunpack.c.l.b16 %v55
  %v233 = vunpack.c.h.b16 %v55
  %v234 = vunpack.c.l.b16 %v56
  %v235 = vunpack.c.h.b16 %v56
  %v236 = vunpack.c.l.b16 %v57
  %v237 = vunpack.c.h.b16 %v57
  %v238 = vunpack.c.l.b16 %v58
  %v239 = vunpack.c.h.b16 %v58
  %v240 = vunpack.c.l.b16 %v59
  %v241 = vunpack.c.h.b16 %v59
  %v242 = vunpack.c.l.b16 %v60
  %v243 = vunpack.c.h.b16 %v60
  %v244 = vunpack.c.l.b16 %v61
  %v245 = vunpack.c.h.b16 %v61
  %v246 = vunpack.c.l.b16 %v62
  %v247 = vunpack.c.h.b16 %v62
  %v248 = vunpack.c.l.b16 %v63
  %v249 = vunpack.c.h.b16 %v63
  %v250 = vunpack.c.l.b16 %v64
  %v251 = vunpack.c.h.b16 %v64
  %v252 = vunpack.c.l.b16 %v65
  %v253 = vunpack.c.h.b16 %v65
  %v254 = vunpack.c.l.b16 %v66
  %v255 = vunpack.c.h.b16 %v66
  %v256 = vunpack.c.l.b16 %v67
  %v257 = vunpack.c.h.b16 %v67
  %v258 = vunpack.c.l.b16 %v68
  %v259 = vunpack.c.h.b16 %v68
  %v260 = vunpack.c.l.b16 %v69
  %v261 = vunpack.c.h.b16 %v69
  %v262 = vunpack.c.l.b16 %v70
  %v263 = vunpack.c.h.b16 %v70
  %v264 = vunpack.c.l.b16 %v71
  %v265 = vunpack.c.h.b16 %v71
  %v266 = vunpack.c.l.b16 %v72
  %v267 = vunpack.c.h.b16 %v72
  %v268 = vunpack.c.l.b16 %v73
  %v269 = vunpack.c.h.b16 %v73
  %v270 = vunpack.c.l.b16 %v74
  %v271 = vunpack.c.h.b16 %v74
  %v272 = vunpack.c.l.b16 %v75
  %v273 = vunpack.c.h.b16 %v75
  %v274 = vunpack.c.l.b16 %v76
  %v275 = vunpack.c.h.b16 %v76
  %v276 = vunpack.c.l.b16 %v77
  %v277 = vunpack.c.h.b16 %v77
  %v278 = vunpack.c.l.b16 %v78
  %v279 = vunpack.c.h.b16 %v78
  %v280 = vunpack.c.l.b16 %v79
  %v281 = vunpack.c.h.b16 %v79
  %v282 = vunpack.c.l.b16 %v80
  %v283 = vunpack.c.h.b16 %v80
  %v284 = vunpack.c.l.b16 %v81
  %v285 = vunpack.c.h.b16 %v81
  %v286 = vunpack.c.l.b16 %v82
  %v287 = vunpack.c.h.b16 %v82
  %v288 = vunpack.c.l.b16 %v83
  %v289 = vunpack.c.h.b16 %v83
  %v290 = vunpack.c.l.b16 %v84
  %v291 = vunpack.c.h.b16 %v84
  %v292 = vunpack.c.l.b16 %v85
  %v293 = vunpack.c.h.b16 %v85
  %v294 = vunpack.c.l.b16 %v86
  %v295 = vunpack.c.h.b16 %v86
  %v296 = vpack.c.b16 %v172, %v168
  %v297 = vpack.c.b16 %v173, %v169
  %v298 = vpack.c.b16 %v174, %v170
  %v299 = vpack.c.b16 %v175, %v171
  %v300 = vpack.c.b16 %v180, %v176
  %v301 = vpack.c.b16 %v181, %v177
  %v302 = vpack.c.b16 %v182, %v178
  %v303 = vpack.c.b16 %v183, %v179
  %v304 = vpack.c.b16 %v188, %v184
  %v305 = vpack.c.b16 %v189, %v185
  %v306 = vpack.c.b16 %v190, %v186
  %v307 = vpack.c.b16 %v191, %v187
  %v308 = vpack.c.b16 %v196, %v192
  %v309 = vpack.c.b16 %v197, %v193
  %v310 = vpack.c.b16 %v198, %v194
  %v311 = vpack.c.b16 %v199, %v195
  %v312 = vpack.c.b16 %v204, %v200
  %v313 = vpack.c.b16 %v205, %v201
  %v314 = vpack.c.b16 %v206, %v202
  %v315 = vpack.c.b16 %v207, %v203
  %v316 = vpack.c.b16 %v212, %v208
  %v317 = vpack.c.b16 %v213, %v209
  %v318 = vpack.c.b16 %v214, %v210
  %v319 = vpack.c.b16 %v215, %v211
  %v320 = vpack.c.b16 %v220, %v216
  %v321 = vpack.c.b16 %v221, %v217
  %v322 = vpack.c.b16 %v222, %v218
  %v323 = vpack.c.b16 %v223, %v219
  %v324 = vpack.c.b16 %v228, %v224
  %v325 = vpack.c.b16 %v229, %v225
  %v326 = vpack.c.b16 %v230, %v226
  %v327 = vpack.c.b16 %v231, %v227
  %v328 = vpack.c.b16 %v236, %v232
  %v329 = vpack.c.b16 %v237, %v233
  %v330 = vpack.c.b16 %v238, %v234
  %v331 = vpack.c.b16 %v239, %v235
  %v332 = vpack.c.b16 %v244, %v240
  %v333 = vpack.c.b16 %v245, %v241
  %v334 = vpack.c.b16 %v246, %v242
  %v335 = vpack.c.b16 %v247, %v243
  %v336 = vpack.c.b16 %v252, %v248
  %v337 = vpack.c.b16 %v253, %v249
  %v338 = vpack.c.b16 %v254, %v250
  %v339 = vpack.c.b16 %v255, %v251
  %v340 = vpack.c.b16 %v260, %v256
  %v341 = vpack.c.b16 %v261, %v257
  %v342 = vpack.c.b16 %v262, %v258
  %v343 = vpack.c.b16 %v263, %v259
  %v344 = vpack.c.b16 %v268, %v264
  %v345 = vpack.c.b16 %v269, %v265
  %v346 = vpack.c.b16 %v270, %v266
  %v347 = vpack.c.b16 %v271, %v267
  %v348 = vpack.c.b16 %v276, %v272
  %v349 = vpack.c.b16 %v277, %v273
  %v350 = vpack.c.b16 %v278, %v274
  %v351 = vpack.c.b16 %v279, %v275
  %v352 = vpack.c.b16 %v284, %v280
  %v353 = vpack.c.b16 %v285, %v281
  %v354 = vpack.c.b16 %v286, %v282
  %v355 = vpack.c.b16 %v287, %v283
  %v356 = vpack.c.b16 %v292, %v288
  %v357 = vpack.c.b16 %v293, %v289
  %v358 = vpack.c.b16 %v294, %v290
  %v359 = vpack.c.b16 %v295, %v291
  %424 = vmatprep.subr.bf16.mxu0 %v297
  %425 = vmatpush1.bf16.msra.mxu0 %v296
  %426 = vmatprep.subr.bf16.mxu0 %v301
  %427 = vmatpush1.bf16.msra.mxu0 %v300
  %428 = vmatprep.subr.bf16.mxu0 %v305
  %429 = vmatpush1.bf16.msra.mxu0 %v304
  %430 = vmatprep.subr.bf16.mxu0 %v309
  %431 = vmatpush1.bf16.msra.mxu0 %v308
  %432 = vmatprep.subr.bf16.mxu0 %v313
  %433 = vmatpush1.bf16.msra.mxu0 %v312
  %434 = vmatprep.subr.bf16.mxu0 %v317
  %435 = vmatpush1.bf16.msra.mxu0 %v316
  %436 = vmatprep.subr.bf16.mxu0 %v321
  %437 = vmatpush1.bf16.msra.mxu0 %v320
  %438 = vmatprep.subr.bf16.mxu0 %v325
  %439 = vmatpush1.bf16.msra.mxu0 %v324
  %440 = vmatprep.subr.bf16.mxu0 %v329
  %441 = vmatpush1.bf16.msra.mxu0 %v328
  %442 = vmatprep.subr.bf16.mxu0 %v333
  %443 = vmatpush1.bf16.msra.mxu0 %v332
  %444 = vmatprep.subr.bf16.mxu0 %v337
  %445 = vmatpush1.bf16.msra.mxu0 %v336
  %446 = vmatprep.subr.bf16.mxu0 %v341
  %447 = vmatpush1.bf16.msra.mxu0 %v340
  %448 = vmatprep.subr.bf16.mxu0 %v345
  %449 = vmatpush1.bf16.msra.mxu0 %v344
  %450 = vmatprep.subr.bf16.mxu0 %v349
  %451 = vmatpush1.bf16.msra.mxu0 %v348
  %452 = vmatprep.subr.bf16.mxu0 %v353
  %453 = vmatpush1.bf16.msra.mxu0 %v352
  %454 = vmatprep.subr.bf16.mxu0 %v357
  %455 = vmatpush1.bf16.msra.mxu0 %v356
  %456 = vmatprep.mubr.bf16.mxu0 %v97
  %457 = vmatmul.mubr.bf16.gmra.mrb[0].mxu0 %v96
  %v458 = vpop.f32.mrb[0].mxu0
  %v459 = vadd.f32 0.0, %v458
  %v460 = vpop.f32.mrb[0].mxu0
  %v461 = vadd.f32 0.0, %v460
  %v462 = vpop.f32.mrb[0].mxu0
  %v463 = vadd.f32 0.0, %v462
  %v464 = vpop.f32.mrb[0].mxu0
  %v465 = vadd.f32 0.0, %v464
  %466 = vmatprep.mubr.bf16.mxu0 %v99
  %467 = vmatmul.mubr.bf16.gmra.mrb[0].mxu0 %v98
  %v468 = vpop.f32.mrb[0].mxu0
  %v469 = vadd.f32 0.0, %v468
  %v470 = vpop.f32.mrb[0].mxu0
  %v471 = vadd.f32 0.0, %v470
  %v472 = vpop.f32.mrb[0].mxu0
  %v473 = vpop.f32.mrb[0].mxu0
  %474 = vdwg.mxu0
  %475 = vmatprep.subr.bf16.mxu0 %v299
  %476 = vmatpush1.bf16.msra.mxu0 %v298
  %477 = vmatprep.subr.bf16.mxu0 %v303
  %478 = vmatpush1.bf16.msra.mxu0 %v302
  %479 = vmatprep.subr.bf16.mxu0 %v307
  %480 = vmatpush1.bf16.msra.mxu0 %v306
  %481 = vmatprep.subr.bf16.mxu0 %v311
  %482 = vmatpush1.bf16.msra.mxu0 %v310
  %483 = vmatprep.subr.bf16.mxu0 %v315
  %484 = vmatpush1.bf16.msra.mxu0 %v314
  %485 = vmatprep.subr.bf16.mxu0 %v319
  %486 = vmatpush1.bf16.msra.mxu0 %v318
  %487 = vmatprep.subr.bf16.mxu0 %v323
  %488 = vmatpush1.bf16.msra.mxu0 %v322
  %489 = vmatprep.subr.bf16.mxu0 %v327
  %490 = vmatpush1.bf16.msra.mxu0 %v326
  %491 = vmatprep.subr.bf16.mxu0 %v331
  %492 = vmatpush1.bf16.msra.mxu0 %v330
  %493 = vmatprep.subr.bf16.mxu0 %v335
  %494 = vmatpush1.bf16.msra.mxu0 %v334
  %495 = vmatprep.subr.bf16.mxu0 %v339
  %496 = vmatpush1.bf16.msra.mxu0 %v338
  %497 = vmatprep.subr.bf16.mxu0 %v343
  %498 = vmatpush1.bf16.msra.mxu0 %v342
  %499 = vmatprep.subr.bf16.mxu0 %v347
  %500 = vmatpush1.bf16.msra.mxu0 %v346
  %501 = vmatprep.subr.bf16.mxu0 %v351
  %502 = vmatpush1.bf16.msra.mxu0 %v350
  %503 = vmatprep.subr.bf16.mxu0 %v355
  %504 = vmatpush1.bf16.msra.mxu0 %v354
  %505 = vmatprep.subr.bf16.mxu0 %v359
  %506 = vmatpush1.bf16.msra.mxu0 %v358
  %507 = vmatprep.mubr.bf16.mxu0 %v97
  %508 = vmatmul.mubr.bf16.gmra.mrb[0].mxu0 %v96
  %v509 = vpop.f32.mrb[0].mxu0
  %v510 = vadd.f32 0.0, %v509
  %v511 = vpop.f32.mrb[0].mxu0
  %v512 = vadd.f32 0.0, %v511
  %v513 = vpop.f32.mrb[0].mxu0
  %v514 = vadd.f32 0.0, %v513
  %v515 = vpop.f32.mrb[0].mxu0
  %v516 = vadd.f32 0.0, %v515
  %517 = vmatprep.mubr.bf16.mxu0 %v99
  %518 = vmatmul.mubr.bf16.gmra.mrb[0].mxu0 %v98
  %v519 = vpop.f32.mrb[0].mxu0
  %v520 = vadd.f32 0.0, %v519
  %v521 = vpop.f32.mrb[0].mxu0
  %v522 = vadd.f32 0.0, %v521
  %v523 = vpop.f32.mrb[0].mxu0
  %v524 = vpop.f32.mrb[0].mxu0
  %525 = vdwg.mxu0
  %v526 = vld [vmem:[%s4] sm:$0xff]
  %v527 = vld [vmem:[%s4 + $0x8] sm:$0xff]
  %v528 = vld [vmem:[%s4 + $0x10] sm:$0xff]
  %v529 = vld [vmem:[%s4 + $0x18] sm:$0xff]
  %v530 = vld [vmem:[%s4 + $0x20] sm:$0xff]
  %v531 = vld [vmem:[%s4 + $0x28] sm:$0xff]
  %v532 = vld [vmem:[%s4 + $0x30] sm:$0xff]
  %v533 = vld [vmem:[%s4 + $0x38] sm:$0xff]
  %v534 = vld [vmem:[%s4 + $0x40] sm:$0xff]
  %v535 = vld [vmem:[%s4 + $0x48] sm:$0xff]
  %v536 = vld [vmem:[%s4 + $0x50] sm:$0xff]
  %v537 = vld [vmem:[%s4 + $0x58] sm:$0xff]
  %v538 = vmul.f32 %v459, %v526
  %v539 = vmul.f32 %v463, %v530
  %v540 = vmul.f32 %v469, %v534
  %v541 = vadd.f32 %v538, %v539
  %v542 = vadd.f32 %v541, %v540
  %v543 = vrot.slane %v542, 4
  %v544 = vadd.f32 %v542, %v543
  %v545 = vrot.slane %v544, 2
  %v546 = vadd.f32 %v544, %v545
  %v547 = vrot.slane %v546, 1
  %v548 = vadd.f32 %v546, %v547
  %v549 = vadd.f32 %v548, 0.0
  %v550 = vmul.f32 %v461, %v527
  %v551 = vmul.f32 %v465, %v531
  %v552 = vmul.f32 %v471, %v535
  %v553 = vadd.f32 %v550, %v551
  %v554 = vadd.f32 %v553, %v552
  %v555 = vrot.slane %v554, 4
  %v556 = vadd.f32 %v554, %v555
  %v557 = vrot.slane %v556, 2
  %v558 = vadd.f32 %v556, %v557
  %v559 = vrot.slane %v558, 1
  %v560 = vadd.f32 %v558, %v559
  %v561 = vadd.f32 %v549, %v560
  %v562 = vmul.f32 %v510, %v528
  %v563 = vmul.f32 %v514, %v532
  %v564 = vmul.f32 %v520, %v536
  %v565 = vadd.f32 %v562, %v563
  %v566 = vadd.f32 %v565, %v564
  %v567 = vrot.slane %v566, 4
  %v568 = vadd.f32 %v566, %v567
  %v569 = vrot.slane %v568, 2
  %v570 = vadd.f32 %v568, %v569
  %v571 = vrot.slane %v570, 1
  %v572 = vadd.f32 %v570, %v571
  %v573 = vadd.f32 %v561, %v572
  %v574 = vmul.f32 %v512, %v529
  %v575 = vmul.f32 %v516, %v533
  %v576 = vmul.f32 %v522, %v537
  %v577 = vadd.f32 %v574, %v575
  %v578 = vadd.f32 %v577, %v576
  %v579 = vrot.slane %v578, 4
  %v580 = vadd.f32 %v578, %v579
  %v581 = vrot.slane %v580, 2
  %v582 = vadd.f32 %v580, %v581
  %v583 = vrot.slane %v582, 1
  %v584 = vadd.f32 %v582, %v583
  %v585 = vadd.f32 %v573, %v584
  %v586 = vmul.f32 %v585, 0.03125
  %v587 = vsub.f32 %v459, %v586
  %v588 = vsub.f32 %v463, %v586
  %v589 = vsub.f32 %v469, %v586
  %v590 = vmul.f32 %v587, %v526
  %v591 = vmul.f32 %v588, %v530
  %v592 = vmul.f32 %v589, %v534
  %v593 = vmul.f32 %v590, %v590
  %v594 = vmul.f32 %v591, %v591
  %v595 = vmul.f32 %v592, %v592
  %v596 = vadd.f32 %v593, %v594
  %v597 = vadd.f32 %v596, %v595
  %v598 = vrot.slane %v597, 4
  %v599 = vadd.f32 %v597, %v598
  %v600 = vrot.slane %v599, 2
  %v601 = vadd.f32 %v599, %v600
  %v602 = vrot.slane %v601, 1
  %v603 = vadd.f32 %v601, %v602
  %v604 = vadd.f32 %v603, 0.0
  %v605 = vsub.f32 %v461, %v586
  %v606 = vsub.f32 %v465, %v586
  %v607 = vsub.f32 %v471, %v586
  %v608 = vmul.f32 %v605, %v527
  %v609 = vmul.f32 %v606, %v531
  %v610 = vmul.f32 %v607, %v535
  %v611 = vmul.f32 %v608, %v608
  %v612 = vmul.f32 %v609, %v609
  %v613 = vmul.f32 %v610, %v610
  %v614 = vadd.f32 %v611, %v612
  %v615 = vadd.f32 %v614, %v613
  %v616 = vrot.slane %v615, 4
  %v617 = vadd.f32 %v615, %v616
  %v618 = vrot.slane %v617, 2
  %v619 = vadd.f32 %v617, %v618
  %v620 = vrot.slane %v619, 1
  %v621 = vadd.f32 %v619, %v620
  %v622 = vadd.f32 %v604, %v621
  %v623 = vsub.f32 %v510, %v586
  %v624 = vsub.f32 %v514, %v586
  %v625 = vsub.f32 %v520, %v586
  %v626 = vmul.f32 %v623, %v528
  %v627 = vmul.f32 %v624, %v532
  %v628 = vmul.f32 %v625, %v536
  %v629 = vmul.f32 %v626, %v626
  %v630 = vmul.f32 %v627, %v627
  %v631 = vmul.f32 %v628, %v628
  %v632 = vadd.f32 %v629, %v630
  %v633 = vadd.f32 %v632, %v631
  %v634 = vrot.slane %v633, 4
  %v635 = vadd.f32 %v633, %v634
  %v636 = vrot.slane %v635, 2
  %v637 = vadd.f32 %v635, %v636
  %v638 = vrot.slane %v637, 1
  %v639 = vadd.f32 %v637, %v638
  %v640 = vadd.f32 %v622, %v639
  %v641 = vsub.f32 %v512, %v586
  %v642 = vsub.f32 %v516, %v586
  %v643 = vsub.f32 %v522, %v586
  %v644 = vmul.f32 %v641, %v529
  %v645 = vmul.f32 %v642, %v533
  %v646 = vmul.f32 %v643, %v537
  %v647 = vmul.f32 %v644, %v644
  %v648 = vmul.f32 %v645, %v645
  %v649 = vmul.f32 %v646, %v646
  %v650 = vadd.f32 %v647, %v648
  %v651 = vadd.f32 %v650, %v649
  %v652 = vrot.slane %v651, 4
  %v653 = vadd.f32 %v651, %v652
  %v654 = vrot.slane %v653, 2
  %v655 = vadd.f32 %v653, %v654
  %v656 = vrot.slane %v655, 1
  %v657 = vadd.f32 %v655, %v656
  %v658 = vadd.f32 %v640, %v657
  %v659 = vmul.f32 %v658, 0.03125
  %v660 = vld [vmem:[%s2] sm:$0x1]
  %v661 = vadd.f32 %v659, 1e-05
  %v662 = vrsqrt.pop %v661
  %v663 = vmul.f32 %v660, %v662
  %v664 = vld [vmem:[%s3] sm:$0x1]
  %v665 = vmul.f32 %v586, %v663
  %v666 = vsub.f32 %v664, %v665
  %v668 = vlaneseq
  %v669 = vshrl.u32 %v668, 7
  %v670 = vsub.s32 0, %v669
  %v671 = vrot.slane %v663, %v670
  %v673 = vmul.f32 %v459, %v671
  %v674 = vmul.f32 %v463, %v671
  %v675 = vmul.f32 %v469, %v671
  %v677 = vlaneseq
  %v678 = vshrl.u32 %v677, 7
  %v679 = vsub.s32 0, %v678
  %v680 = vrot.slane %v666, %v679
  %v682 = vadd.f32 %v673, %v680
  %v683 = vadd.f32 %v674, %v680
  %v684 = vadd.f32 %v675, %v680
  %v685 = vmax.f32 %v682, 0.0
  %v686 = vmax.f32 %v683, 0.0
  %v687 = vmax.f32 %v684, 0.0
  %688 = vst [vmem:[%s5] sm:$0xff] %v685
  %689 = vst [vmem:[%s5 + $0x20] sm:$0xff] %v686
  %690 = vst [vmem:[%s5 + $0x40] sm:$0xff] %v687
  %v691 = vmul.f32 %v461, %v671
  %v692 = vmul.f32 %v465, %v671
  %v693 = vmul.f32 %v471, %v671
  %v694 = vadd.f32 %v691, %v680
  %v695 = vadd.f32 %v692, %v680
  %v696 = vadd.f32 %v693, %v680
  %v697 = vmax.f32 %v694, 0.0
  %v698 = vmax.f32 %v695, 0.0
  %v699 = vmax.f32 %v696, 0.0
  %700 = vst [vmem:[%s5 + $0x8] sm:$0xff] %v697
  %701 = vst [vmem:[%s5 + $0x28] sm:$0xff] %v698
  %702 = vst [vmem:[%s5 + $0x48] sm:$0xff] %v699
  %v703 = vmul.f32 %v510, %v671
  %v704 = vmul.f32 %v514, %v671
  %v705 = vmul.f32 %v520, %v671
  %v706 = vadd.f32 %v703, %v680
  %v707 = vadd.f32 %v704, %v680
  %v708 = vadd.f32 %v705, %v680
  %v709 = vmax.f32 %v706, 0.0
  %v710 = vmax.f32 %v707, 0.0
  %v711 = vmax.f32 %v708, 0.0
  %712 = vst [vmem:[%s5 + $0x10] sm:$0xff] %v709
  %713 = vst [vmem:[%s5 + $0x30] sm:$0xff] %v710
  %714 = vst [vmem:[%s5 + $0x50] sm:$0xff] %v711
  %v715 = vmul.f32 %v512, %v671
  %v716 = vmul.f32 %v516, %v671
  %v717 = vmul.f32 %v522, %v671
  %v718 = vadd.f32 %v715, %v680
  %v719 = vadd.f32 %v716, %v680
  %v720 = vadd.f32 %v717, %v680
  %v721 = vmax.f32 %v718, 0.0
  %v722 = vmax.f32 %v719, 0.0
  %v723 = vmax.f32 %v720, 0.0
  %724 = vst [vmem:[%s5 + $0x18] sm:$0xff] %v721
  %725 = vst [vmem:[%s5 + $0x38] sm:$0xff] %v722
  %726 = vst [vmem:[%s5 + $0x58] sm:$0xff] %v723
  // Predicated region
  $region22: #{_lambda_.9} parent=0 // pred_check
    _
  $region23: #{_lambda_.9} parent=0 // pred_check_branch
    %728 = sbr.rel (0) target = $region25
  $region24: #{_lambda_.9} parent=0 // pred_region
    _
  $region25: #{_lambda_.9} parent=0 // pred_fallthru
    _
  // Predicated region
  $region26: #{_lambda_.9} parent=0 // pred_check
    _
  $region27: #{_lambda_.9} parent=0 // pred_check_branch
    %730 = sbr.rel (0) target = $region29
  $region28: #{_lambda_.9} parent=0 // pred_region
    _
  $region29: #{_lambda_.9} parent=0 // pred_fallthru
    _

// kernel: _lambda_.10
$region0: #{_lambda_.10}
  #allocation0 [shape = 'u32[]', space=smem, size = 0x4, offset = 0x4, fixed_abs, tag = 'smem constant byte address 0x4 - core index']
  #allocation1 [shape = 'u32[144,128]{1,0:T(1,128)}', space=vmem, size = 0x12000, scoped, tag = 'internal scratch']
  %s0 = inlined_call_operand.vmem [shape: bf16[56,384], index: 0, kind: input, shape index: {}]
  %s1 = inlined_call_operand.vmem [shape: bf16[384,512], index: 1, kind: input, shape index: {}]
  %s2 = inlined_call_operand.vmem [shape: f32[1,128], index: 2, kind: input, shape index: {}]
  %s3 = inlined_call_operand.vmem [shape: f32[1,128], index: 3, kind: input, shape index: {}]
  %s4 = inlined_call_operand.vmem [shape: f32[56,512], index: 4, kind: input, shape index: {}]
  %s5 = inlined_call_operand.vmem [shape: f32[56,512], index: 5, kind: output, shape index: {}]
  %s6 = sld [smem:[#allocation0]]
  $region30: #{_lambda_.10} parent=0
    _
  %s8 = ssub.s32 1, %s6
  %s9 = scalar_select 0, %s8, %s6
  // Predicated region
  $region2: #{_lambda_.10} parent=0 // pred_check
    _
  $region3: #{_lambda_.10} parent=0 // pred_check_branch
    %11 = sbr.rel (0) target = $region5
  $region4: #{_lambda_.10} parent=0 // pred_region
    _
  $region5: #{_lambda_.10} parent=0 // pred_fallthru
    _
  // Predicated region
  $region6: #{_lambda_.10} parent=0 // pred_check
    _
  $region7: #{_lambda_.10} parent=0 // pred_check_branch
    %13 = sbr.rel (0) target = $region9
  $region8: #{_lambda_.10} parent=0 // pred_region
    _
  $region9: #{_lambda_.10} parent=0 // pred_fallthru
    _
  // Predicated region
  $region10: #{_lambda_.10} parent=0 // pred_check
    _
  $region11: #{_lambda_.10} parent=0 // pred_check_branch
    %15 = sbr.rel (0) target = $region13
  $region12: #{_lambda_.10} parent=0 // pred_region
    _
  $region13: #{_lambda_.10} parent=0 // pred_fallthru
    _
  // Predicated region
  $region14: #{_lambda_.10} parent=0 // pred_check
    _
  $region15: #{_lambda_.10} parent=0 // pred_check_branch
    %17 = sbr.rel (0) target = $region17
  $region16: #{_lambda_.10} parent=0 // pred_region
    _
  $region17: #{_lambda_.10} parent=0 // pred_fallthru
    _
  // Predicated region
  $region18: #{_lambda_.10} parent=0 // pred_check
    _
  $region19: #{_lambda_.10} parent=0 // pred_check_branch
    %19 = sbr.rel (0) target = $region21
  $region20: #{_lambda_.10} parent=0 // pred_region
    _
  $region21: #{_lambda_.10} parent=0 // pred_fallthru
    _
  %v21 = vld [vmem:[%s0] sm:$0xff]
  %v22 = vld [vmem:[%s0 + $0x8] sm:$0xf]
  %v23 = vld [vmem:[%s0 + $0xc] sm:$0xff]
  %v24 = vld [vmem:[%s0 + $0x14] sm:$0xf]
  %v25 = vld [vmem:[%s0 + $0x18] sm:$0xff]
  %v26 = vld [vmem:[%s0 + $0x20] sm:$0xf]
  %v27 = vld [vmem:[%s0 + $0x24] sm:$0xff]
  %v28 = vld [vmem:[%s0 + $0x2c] sm:$0xf]
  %v29 = vld [vmem:[%s0 + $0x30] sm:$0xff]
  %v30 = vld [vmem:[%s0 + $0x38] sm:$0xf]
  %v31 = vld [vmem:[%s0 + $0x3c] sm:$0xff]
  %v32 = vld [vmem:[%s0 + $0x44] sm:$0xf]
  %v33 = vld [vmem:[%s0 + $0x48] sm:$0xff]
  %v34 = vld [vmem:[%s0 + $0x50] sm:$0xf]
  %v35 = vld [vmem:[%s1] sm:$0xff]
  %v36 = vld [vmem:[%s1 + $0x8] sm:$0xff]
  %v37 = vld [vmem:[%s1 + $0x10] sm:$0xff]
  %v38 = vld [vmem:[%s1 + $0x18] sm:$0xff]
  %v39 = vld [vmem:[%s1 + $0x20] sm:$0xff]
  %v40 = vld [vmem:[%s1 + $0x28] sm:$0xff]
  %v41 = vld [vmem:[%s1 + $0x30] sm:$0xff]
  %v42 = vld [vmem:[%s1 + $0x38] sm:$0xff]
  %v43 = vld [vmem:[%s1 + $0x40] sm:$0xff]
  %v44 = vld [vmem:[%s1 + $0x48] sm:$0xff]
  %v45 = vld [vmem:[%s1 + $0x50] sm:$0xff]
  %v46 = vld [vmem:[%s1 + $0x58] sm:$0xff]
  %v47 = vld [vmem:[%s1 + $0x60] sm:$0xff]
  %v48 = vld [vmem:[%s1 + $0x68] sm:$0xff]
  %v49 = vld [vmem:[%s1 + $0x70] sm:$0xff]
  %v50 = vld [vmem:[%s1 + $0x78] sm:$0xff]
  %v51 = vld [vmem:[%s1 + $0x80] sm:$0xff]
  %v52 = vld [vmem:[%s1 + $0x88] sm:$0xff]
  %v53 = vld [vmem:[%s1 + $0x90] sm:$0xff]
  %v54 = vld [vmem:[%s1 + $0x98] sm:$0xff]
  %v55 = vld [vmem:[%s1 + $0xa0] sm:$0xff]
  %v56 = vld [vmem:[%s1 + $0xa8] sm:$0xff]
  %v57 = vld [vmem:[%s1 + $0xb0] sm:$0xff]
  %v58 = vld [vmem:[%s1 + $0xb8] sm:$0xff]
  %v59 = vld [vmem:[%s1 + $0xc0] sm:$0xff]
  %v60 = vld [vmem:[%s1 + $0xc8] sm:$0xff]
  %v61 = vld [vmem:[%s1 + $0xd0] sm:$0xff]
  %v62 = vld [vmem:[%s1 + $0xd8] sm:$0xff]
  %v63 = vld [vmem:[%s1 + $0xe0] sm:$0xff]
  %v64 = vld [vmem:[%s1 + $0xe8] sm:$0xff]
  %v65 = vld [vmem:[%s1 + $0xf0] sm:$0xff]
  %v66 = vld [vmem:[%s1 + $0xf8] sm:$0xff]
  %v67 = vld [vmem:[%s1 + $0x100] sm:$0xff]
  %v68 = vld [vmem:[%s1 + $0x108] sm:$0xff]
  %v69 = vld [vmem:[%s1 + $0x110] sm:$0xff]
  %v70 = vld [vmem:[%s1 + $0x118] sm:$0xff]
  %v71 = vld [vmem:[%s1 + $0x120] sm:$0xff]
  %v72 = vld [vmem:[%s1 + $0x128] sm:$0xff]
  %v73 = vld [vmem:[%s1 + $0x130] sm:$0xff]
  %v74 = vld [vmem:[%s1 + $0x138] sm:$0xff]
  %v75 = vld [vmem:[%s1 + $0x140] sm:$0xff]
  %v76 = vld [vmem:[%s1 + $0x148] sm:$0xff]
  %v77 = vld [vmem:[%s1 + $0x150] sm:$0xff]
  %v78 = vld [vmem:[%s1 + $0x158] sm:$0xff]
  %v79 = vld [vmem:[%s1 + $0x160] sm:$0xff]
  %v80 = vld [vmem:[%s1 + $0x168] sm:$0xff]
  %v81 = vld [vmem:[%s1 + $0x170] sm:$0xff]
  %v82 = vld [vmem:[%s1 + $0x178] sm:$0xff]
  %v83 = vld [vmem:[%s1 + $0x180] sm:$0xff]
  %v84 = vld [vmem:[%s1 + $0x188] sm:$0xff]
  %v85 = vld [vmem:[%s1 + $0x190] sm:$0xff]
  %v86 = vld [vmem:[%s1 + $0x198] sm:$0xff]
  %v87 = vld [vmem:[%s1 + $0x1a0] sm:$0xff]
  %v88 = vld [vmem:[%s1 + $0x1a8] sm:$0xff]
  %v89 = vld [vmem:[%s1 + $0x1b0] sm:$0xff]
  %v90 = vld [vmem:[%s1 + $0x1b8] sm:$0xff]
  %v91 = vld [vmem:[%s1 + $0x1c0] sm:$0xff]
  %v92 = vld [vmem:[%s1 + $0x1c8] sm:$0xff]
  %v93 = vld [vmem:[%s1 + $0x1d0] sm:$0xff]
  %v94 = vld [vmem:[%s1 + $0x1d8] sm:$0xff]
  %v95 = vld [vmem:[%s1 + $0x1e0] sm:$0xff]
  %v96 = vld [vmem:[%s1 + $0x1e8] sm:$0xff]
  %v97 = vld [vmem:[%s1 + $0x1f0] sm:$0xff]
  %v98 = vld [vmem:[%s1 + $0x1f8] sm:$0xff]
  %v99 = vld [vmem:[%s1 + $0x200] sm:$0xff]
  %v100 = vld [vmem:[%s1 + $0x208] sm:$0xff]
  %v101 = vld [vmem:[%s1 + $0x210] sm:$0xff]
  %v102 = vld [vmem:[%s1 + $0x218] sm:$0xff]
  %v103 = vld [vmem:[%s1 + $0x220] sm:$0xff]
  %v104 = vld [vmem:[%s1 + $0x228] sm:$0xff]
  %v105 = vld [vmem:[%s1 + $0x230] sm:$0xff]
  %v106 = vld [vmem:[%s1 + $0x238] sm:$0xff]
  %v107 = vld [vmem:[%s1 + $0x240] sm:$0xff]
  %v108 = vld [vmem:[%s1 + $0x248] sm:$0xff]
  %v109 = vld [vmem:[%s1 + $0x250] sm:$0xff]
  %v110 = vld [vmem:[%s1 + $0x258] sm:$0xff]
  %v111 = vld [vmem:[%s1 + $0x260] sm:$0xff]
  %v112 = vld [vmem:[%s1 + $0x268] sm:$0xff]
  %v113 = vld [vmem:[%s1 + $0x270] sm:$0xff]
  %v114 = vld [vmem:[%s1 + $0x278] sm:$0xff]
  %v115 = vld [vmem:[%s1 + $0x280] sm:$0xff]
  %v116 = vld [vmem:[%s1 + $0x288] sm:$0xff]
  %v117 = vld [vmem:[%s1 + $0x290] sm:$0xff]
  %v118 = vld [vmem:[%s1 + $0x298] sm:$0xff]
  %v119 = vld [vmem:[%s1 + $0x2a0] sm:$0xff]
  %v120 = vld [vmem:[%s1 + $0x2a8] sm:$0xff]
  %v121 = vld [vmem:[%s1 + $0x2b0] sm:$0xff]
  %v122 = vld [vmem:[%s1 + $0x2b8] sm:$0xff]
  %v123 = vld [vmem:[%s1 + $0x2c0] sm:$0xff]
  %v124 = vld [vmem:[%s1 + $0x2c8] sm:$0xff]
  %v125 = vld [vmem:[%s1 + $0x2d0] sm:$0xff]
  %v126 = vld [vmem:[%s1 + $0x2d8] sm:$0xff]
  %v127 = vld [vmem:[%s1 + $0x2e0] sm:$0xff]
  %v128 = vld [vmem:[%s1 + $0x2e8] sm:$0xff]
  %v129 = vld [vmem:[%s1 + $0x2f0] sm:$0xff]
  %v130 = vld [vmem:[%s1 + $0x2f8] sm:$0xff]
  %v145 = vunpack.c.l.b16 %v21
  %v146 = vunpack.c.h.b16 %v21
  %v147 = vunpack.c.l.b16 %v22
  %v148 = vunpack.c.l.b16 %v23
  %v149 = vunpack.c.h.b16 %v23
  %v150 = vunpack.c.l.b16 %v24
  %v151 = vunpack.c.l.b16 %v25
  %v152 = vunpack.c.h.b16 %v25
  %v153 = vunpack.c.l.b16 %v26
  %v154 = vunpack.c.l.b16 %v27
  %v155 = vunpack.c.h.b16 %v27
  %v156 = vunpack.c.l.b16 %v28
  %v157 = vunpack.c.l.b16 %v29
  %v158 = vunpack.c.h.b16 %v29
  %v159 = vunpack.c.l.b16 %v30
  %v160 = vunpack.c.l.b16 %v31
  %v161 = vunpack.c.h.b16 %v31
  %v162 = vunpack.c.l.b16 %v32
  %v163 = vunpack.c.l.b16 %v33
  %v164 = vunpack.c.h.b16 %v33
  %v165 = vunpack.c.l.b16 %v34
  %v166 = vpack.c.b16 %v148, %v145
  %v167 = vpack.c.b16 %v149, %v146
  %v168 = vpack.c.b16 %v150, %v147
  %v169 = vpack.c.b16 %v154, %v151
  %v170 = vpack.c.b16 %v155, %v152
  %v171 = vpack.c.b16 %v156, %v153
  %v172 = vpack.c.b16 %v160, %v157
  %v173 = vpack.c.b16 %v161, %v158
  %v174 = vpack.c.b16 %v162, %v159
  %v175 = vpack.c.b16 %v163, %v163
  %v176 = vpack.c.b16 %v164, %v164
  %v177 = vpack.c.b16 %v165, %v165
  %v286 = vunpack.c.l.b16 %v35
  %v287 = vunpack.c.h.b16 %v35
  %v288 = vunpack.c.l.b16 %v36
  %v289 = vunpack.c.h.b16 %v36
  %v290 = vunpack.c.l.b16 %v37
  %v291 = vunpack.c.h.b16 %v37
  %v292 = vunpack.c.l.b16 %v38
  %v293 = vunpack.c.h.b16 %v38
  %v294 = vunpack.c.l.b16 %v39
  %v295 = vunpack.c.h.b16 %v39
  %v296 = vunpack.c.l.b16 %v40
  %v297 = vunpack.c.h.b16 %v40
  %v298 = vunpack.c.l.b16 %v41
  %v299 = vunpack.c.h.b16 %v41
  %v300 = vunpack.c.l.b16 %v42
  %v301 = vunpack.c.h.b16 %v42
  %v302 = vunpack.c.l.b16 %v43
  %v303 = vunpack.c.h.b16 %v43
  %v304 = vunpack.c.l.b16 %v44
  %v305 = vunpack.c.h.b16 %v44
  %v306 = vunpack.c.l.b16 %v45
  %v307 = vunpack.c.h.b16 %v45
  %v308 = vunpack.c.l.b16 %v46
  %v309 = vunpack.c.h.b16 %v46
  %v310 = vunpack.c.l.b16 %v47
  %v311 = vunpack.c.h.b16 %v47
  %v312 = vunpack.c.l.b16 %v48
  %v313 = vunpack.c.h.b16 %v48
  %v314 = vunpack.c.l.b16 %v49
  %v315 = vunpack.c.h.b16 %v49
  %v316 = vunpack.c.l.b16 %v50
  %v317 = vunpack.c.h.b16 %v50
  %v318 = vunpack.c.l.b16 %v51
  %v319 = vunpack.c.h.b16 %v51
  %v320 = vunpack.c.l.b16 %v52
  %v321 = vunpack.c.h.b16 %v52
  %v322 = vunpack.c.l.b16 %v53
  %v323 = vunpack.c.h.b16 %v53
  %v324 = vunpack.c.l.b16 %v54
  %v325 = vunpack.c.h.b16 %v54
  %v326 = vunpack.c.l.b16 %v55
  %v327 = vunpack.c.h.b16 %v55
  %v328 = vunpack.c.l.b16 %v56
  %v329 = vunpack.c.h.b16 %v56
  %v330 = vunpack.c.l.b16 %v57
  %v331 = vunpack.c.h.b16 %v57
  %v332 = vunpack.c.l.b16 %v58
  %v333 = vunpack.c.h.b16 %v58
  %v334 = vunpack.c.l.b16 %v59
  %v335 = vunpack.c.h.b16 %v59
  %v336 = vunpack.c.l.b16 %v60
  %v337 = vunpack.c.h.b16 %v60
  %v338 = vunpack.c.l.b16 %v61
  %v339 = vunpack.c.h.b16 %v61
  %v340 = vunpack.c.l.b16 %v62
  %v341 = vunpack.c.h.b16 %v62
  %v342 = vunpack.c.l.b16 %v63
  %v343 = vunpack.c.h.b16 %v63
  %v344 = vunpack.c.l.b16 %v64
  %v345 = vunpack.c.h.b16 %v64
  %v346 = vunpack.c.l.b16 %v65
  %v347 = vunpack.c.h.b16 %v65
  %v348 = vunpack.c.l.b16 %v66
  %v349 = vunpack.c.h.b16 %v66
  %v350 = vunpack.c.l.b16 %v67
  %v351 = vunpack.c.h.b16 %v67
  %v352 = vunpack.c.l.b16 %v68
  %v353 = vunpack.c.h.b16 %v68
  %v354 = vunpack.c.l.b16 %v69
  %v355 = vunpack.c.h.b16 %v69
  %v356 = vunpack.c.l.b16 %v70
  %v357 = vunpack.c.h.b16 %v70
  %v358 = vunpack.c.l.b16 %v71
  %v359 = vunpack.c.h.b16 %v71
  %v360 = vunpack.c.l.b16 %v72
  %v361 = vunpack.c.h.b16 %v72
  %v362 = vunpack.c.l.b16 %v73
  %v363 = vunpack.c.h.b16 %v73
  %v364 = vunpack.c.l.b16 %v74
  %v365 = vunpack.c.h.b16 %v74
  %v366 = vunpack.c.l.b16 %v75
  %v367 = vunpack.c.h.b16 %v75
  %v368 = vunpack.c.l.b16 %v76
  %v369 = vunpack.c.h.b16 %v76
  %v370 = vunpack.c.l.b16 %v77
  %v371 = vunpack.c.h.b16 %v77
  %v372 = vunpack.c.l.b16 %v78
  %v373 = vunpack.c.h.b16 %v78
  %v374 = vunpack.c.l.b16 %v79
  %v375 = vunpack.c.h.b16 %v79
  %v376 = vunpack.c.l.b16 %v80
  %v377 = vunpack.c.h.b16 %v80
  %v378 = vunpack.c.l.b16 %v81
  %v379 = vunpack.c.h.b16 %v81
  %v380 = vunpack.c.l.b16 %v82
  %v381 = vunpack.c.h.b16 %v82
  %v382 = vunpack.c.l.b16 %v83
  %v383 = vunpack.c.h.b16 %v83
  %v384 = vunpack.c.l.b16 %v84
  %v385 = vunpack.c.h.b16 %v84
  %v386 = vunpack.c.l.b16 %v85
  %v387 = vunpack.c.h.b16 %v85
  %v388 = vunpack.c.l.b16 %v86
  %v389 = vunpack.c.h.b16 %v86
  %v390 = vunpack.c.l.b16 %v87
  %v391 = vunpack.c.h.b16 %v87
  %v392 = vunpack.c.l.b16 %v88
  %v393 = vunpack.c.h.b16 %v88
  %v394 = vunpack.c.l.b16 %v89
  %v395 = vunpack.c.h.b16 %v89
  %v396 = vunpack.c.l.b16 %v90
  %v397 = vunpack.c.h.b16 %v90
  %v398 = vunpack.c.l.b16 %v91
  %v399 = vunpack.c.h.b16 %v91
  %v400 = vunpack.c.l.b16 %v92
  %v401 = vunpack.c.h.b16 %v92
  %v402 = vunpack.c.l.b16 %v93
  %v403 = vunpack.c.h.b16 %v93
  %v404 = vunpack.c.l.b16 %v94
  %v405 = vunpack.c.h.b16 %v94
  %v406 = vunpack.c.l.b16 %v95
  %v407 = vunpack.c.h.b16 %v95
  %v408 = vunpack.c.l.b16 %v96
  %v409 = vunpack.c.h.b16 %v96
  %v410 = vunpack.c.l.b16 %v97
  %v411 = vunpack.c.h.b16 %v97
  %v412 = vunpack.c.l.b16 %v98
  %v413 = vunpack.c.h.b16 %v98
  %v414 = vunpack.c.l.b16 %v99
  %v415 = vunpack.c.h.b16 %v99
  %v416 = vunpack.c.l.b16 %v100
  %v417 = vunpack.c.h.b16 %v100
  %v418 = vunpack.c.l.b16 %v101
  %v419 = vunpack.c.h.b16 %v101
  %v420 = vunpack.c.l.b16 %v102
  %v421 = vunpack.c.h.b16 %v102
  %v422 = vunpack.c.l.b16 %v103
  %v423 = vunpack.c.h.b16 %v103
  %v424 = vunpack.c.l.b16 %v104
  %v425 = vunpack.c.h.b16 %v104
  %v426 = vunpack.c.l.b16 %v105
  %v427 = vunpack.c.h.b16 %v105
  %v428 = vunpack.c.l.b16 %v106
  %v429 = vunpack.c.h.b16 %v106
  %v430 = vunpack.c.l.b16 %v107
  %v431 = vunpack.c.h.b16 %v107
  %v432 = vunpack.c.l.b16 %v108
  %v433 = vunpack.c.h.b16 %v108
  %v434 = vunpack.c.l.b16 %v109
  %v435 = vunpack.c.h.b16 %v109
  %v436 = vunpack.c.l.b16 %v110
  %v437 = vunpack.c.h.b16 %v110
  %v438 = vunpack.c.l.b16 %v111
  %v439 = vunpack.c.h.b16 %v111
  %v440 = vunpack.c.l.b16 %v112
  %v441 = vunpack.c.h.b16 %v112
  %v442 = vunpack.c.l.b16 %v113
  %v443 = vunpack.c.h.b16 %v113
  %v444 = vunpack.c.l.b16 %v114
  %v445 = vunpack.c.h.b16 %v114
  %v446 = vunpack.c.l.b16 %v115
  %v447 = vunpack.c.h.b16 %v115
  %v448 = vunpack.c.l.b16 %v116
  %v449 = vunpack.c.h.b16 %v116
  %v450 = vunpack.c.l.b16 %v117
  %v451 = vunpack.c.h.b16 %v117
  %v452 = vunpack.c.l.b16 %v118
  %v453 = vunpack.c.h.b16 %v118
  %v454 = vunpack.c.l.b16 %v119
  %v455 = vunpack.c.h.b16 %v119
  %v456 = vunpack.c.l.b16 %v120
  %v457 = vunpack.c.h.b16 %v120
  %v458 = vunpack.c.l.b16 %v121
  %v459 = vunpack.c.h.b16 %v121
  %v460 = vunpack.c.l.b16 %v122
  %v461 = vunpack.c.h.b16 %v122
  %v462 = vunpack.c.l.b16 %v123
  %v463 = vunpack.c.h.b16 %v123
  %v464 = vunpack.c.l.b16 %v124
  %v465 = vunpack.c.h.b16 %v124
  %v466 = vunpack.c.l.b16 %v125
  %v467 = vunpack.c.h.b16 %v125
  %v468 = vunpack.c.l.b16 %v126
  %v469 = vunpack.c.h.b16 %v126
  %v470 = vunpack.c.l.b16 %v127
  %v471 = vunpack.c.h.b16 %v127
  %v472 = vunpack.c.l.b16 %v128
  %v473 = vunpack.c.h.b16 %v128
  %v474 = vunpack.c.l.b16 %v129
  %v475 = vunpack.c.h.b16 %v129
  %v476 = vunpack.c.l.b16 %v130
  %v477 = vunpack.c.h.b16 %v130
  %v478 = vpack.c.b16 %v290, %v286
  %v479 = vpack.c.b16 %v291, %v287
  %v480 = vpack.c.b16 %v292, %v288
  %v481 = vpack.c.b16 %v293, %v289
  %v482 = vpack.c.b16 %v298, %v294
  %v483 = vpack.c.b16 %v299, %v295
  %v484 = vpack.c.b16 %v300, %v296
  %v485 = vpack.c.b16 %v301, %v297
  %v486 = vpack.c.b16 %v306, %v302
  %v487 = vpack.c.b16 %v307, %v303
  %v488 = vpack.c.b16 %v308, %v304
  %v489 = vpack.c.b16 %v309, %v305
  %v490 = vpack.c.b16 %v314, %v310
  %v491 = vpack.c.b16 %v315, %v311
  %v492 = vpack.c.b16 %v316, %v312
  %v493 = vpack.c.b16 %v317, %v313
  %v494 = vpack.c.b16 %v322, %v318
  %v495 = vpack.c.b16 %v323, %v319
  %v496 = vpack.c.b16 %v324, %v320
  %v497 = vpack.c.b16 %v325, %v321
  %v498 = vpack.c.b16 %v330, %v326
  %v499 = vpack.c.b16 %v331, %v327
  %v500 = vpack.c.b16 %v332, %v328
  %v501 = vpack.c.b16 %v333, %v329
  %v502 = vpack.c.b16 %v338, %v334
  %v503 = vpack.c.b16 %v339, %v335
  %v504 = vpack.c.b16 %v340, %v336
  %v505 = vpack.c.b16 %v341, %v337
  %v506 = vpack.c.b16 %v346, %v342
  %v507 = vpack.c.b16 %v347, %v343
  %v508 = vpack.c.b16 %v348, %v344
  %v509 = vpack.c.b16 %v349, %v345
  %v510 = vpack.c.b16 %v354, %v350
  %v511 = vpack.c.b16 %v355, %v351
  %v512 = vpack.c.b16 %v356, %v352
  %v513 = vpack.c.b16 %v357, %v353
  %v514 = vpack.c.b16 %v362, %v358
  %v515 = vpack.c.b16 %v363, %v359
  %v516 = vpack.c.b16 %v364, %v360
  %v517 = vpack.c.b16 %v365, %v361
  %v518 = vpack.c.b16 %v370, %v366
  %v519 = vpack.c.b16 %v371, %v367
  %v520 = vpack.c.b16 %v372, %v368
  %v521 = vpack.c.b16 %v373, %v369
  %v522 = vpack.c.b16 %v378, %v374
  %v523 = vpack.c.b16 %v379, %v375
  %v524 = vpack.c.b16 %v380, %v376
  %v525 = vpack.c.b16 %v381, %v377
  %v526 = vpack.c.b16 %v386, %v382
  %v527 = vpack.c.b16 %v387, %v383
  %v528 = vpack.c.b16 %v388, %v384
  %v529 = vpack.c.b16 %v389, %v385
  %v530 = vpack.c.b16 %v394, %v390
  %v531 = vpack.c.b16 %v395, %v391
  %v532 = vpack.c.b16 %v396, %v392
  %v533 = vpack.c.b16 %v397, %v393
  %v534 = vpack.c.b16 %v402, %v398
  %v535 = vpack.c.b16 %v403, %v399
  %v536 = vpack.c.b16 %v404, %v400
  %v537 = vpack.c.b16 %v405, %v401
  %v538 = vpack.c.b16 %v410, %v406
  %v539 = vpack.c.b16 %v411, %v407
  %v540 = vpack.c.b16 %v412, %v408
  %v541 = vpack.c.b16 %v413, %v409
  %v542 = vpack.c.b16 %v418, %v414
  %v543 = vpack.c.b16 %v419, %v415
  %v544 = vpack.c.b16 %v420, %v416
  %v545 = vpack.c.b16 %v421, %v417
  %v546 = vpack.c.b16 %v426, %v422
  %v547 = vpack.c.b16 %v427, %v423
  %v548 = vpack.c.b16 %v428, %v424
  %v549 = vpack.c.b16 %v429, %v425
  %v550 = vpack.c.b16 %v434, %v430
  %v551 = vpack.c.b16 %v435, %v431
  %v552 = vpack.c.b16 %v436, %v432
  %v553 = vpack.c.b16 %v437, %v433
  %v554 = vpack.c.b16 %v442, %v438
  %v555 = vpack.c.b16 %v443, %v439
  %v556 = vpack.c.b16 %v444, %v440
  %v557 = vpack.c.b16 %v445, %v441
  %v558 = vpack.c.b16 %v450, %v446
  %v559 = vpack.c.b16 %v451, %v447
  %v560 = vpack.c.b16 %v452, %v448
  %v561 = vpack.c.b16 %v453, %v449
  %v562 = vpack.c.b16 %v458, %v454
  %v563 = vpack.c.b16 %v459, %v455
  %v564 = vpack.c.b16 %v460, %v456
  %v565 = vpack.c.b16 %v461, %v457
  %v566 = vpack.c.b16 %v466, %v462
  %v567 = vpack.c.b16 %v467, %v463
  %v568 = vpack.c.b16 %v468, %v464
  %v569 = vpack.c.b16 %v469, %v465
  %v570 = vpack.c.b16 %v474, %v470
  %v571 = vpack.c.b16 %v475, %v471
  %v572 = vpack.c.b16 %v476, %v472
  %v573 = vpack.c.b16 %v477, %v473
  %670 = vmatprep.subr.bf16.mxu0 %v479
  %671 = vmatpush1.bf16.msra.mxu0 %v478
  %672 = vmatprep.subr.bf16.mxu0 %v483
  %673 = vmatpush1.bf16.msra.mxu0 %v482
  %674 = vmatprep.subr.bf16.mxu0 %v487
  %675 = vmatpush1.bf16.msra.mxu0 %v486
  %676 = vmatprep.subr.bf16.mxu0 %v491
  %677 = vmatpush1.bf16.msra.mxu0 %v490
  %678 = vmatprep.subr.bf16.mxu0 %v495
  %679 = vmatpush1.bf16.msra.mxu0 %v494
  %680 = vmatprep.subr.bf16.mxu0 %v499
  %681 = vmatpush1.bf16.msra.mxu0 %v498
  %682 = vmatprep.subr.bf16.mxu0 %v503
  %683 = vmatpush1.bf16.msra.mxu0 %v502
  %684 = vmatprep.subr.bf16.mxu0 %v507
  %685 = vmatpush1.bf16.msra.mxu0 %v506
  %686 = vmatprep.subr.bf16.mxu0 %v511
  %687 = vmatpush1.bf16.msra.mxu0 %v510
  %688 = vmatprep.subr.bf16.mxu0 %v515
  %689 = vmatpush1.bf16.msra.mxu0 %v514
  %690 = vmatprep.subr.bf16.mxu0 %v519
  %691 = vmatpush1.bf16.msra.mxu0 %v518
  %692 = vmatprep.subr.bf16.mxu0 %v523
  %693 = vmatpush1.bf16.msra.mxu0 %v522
  %694 = vmatprep.subr.bf16.mxu0 %v527
  %695 = vmatpush1.bf16.msra.mxu0 %v526
  %696 = vmatprep.subr.bf16.mxu0 %v531
  %697 = vmatpush1.bf16.msra.mxu0 %v530
  %698 = vmatprep.subr.bf16.mxu0 %v535
  %699 = vmatpush1.bf16.msra.mxu0 %v534
  %700 = vmatprep.subr.bf16.mxu0 %v539
  %701 = vmatpush1.bf16.msra.mxu0 %v538
  %702 = vmatprep.mubr.bf16.mxu0 %v167
  %703 = vmatmul.mubr.bf16.gmra.mrb[0].mxu0 %v166
  %v704 = vpop.f32.mrb[0].mxu0
  %v705 = vadd.f32 0.0, %v704
  %v706 = vpop.f32.mrb[0].mxu0
  %v707 = vadd.f32 0.0, %v706
  %v708 = vpop.f32.mrb[0].mxu0
  %v709 = vadd.f32 0.0, %v708
  %v710 = vpop.f32.mrb[0].mxu0
  %v711 = vadd.f32 0.0, %v710
  %712 = vmatprep.mubr.bf16.mxu0 %v170
  %713 = vmatmul.mubr.bf16.gmra.mrb[0].mxu0 %v169
  %v714 = vpop.f32.mrb[0].mxu0
  %v715 = vadd.f32 0.0, %v714
  %v716 = vpop.f32.mrb[0].mxu0
  %v717 = vadd.f32 0.0, %v716
  %v718 = vpop.f32.mrb[0].mxu0
  %v719 = vadd.f32 0.0, %v718
  %v720 = vpop.f32.mrb[0].mxu0
  %v721 = vadd.f32 0.0, %v720
  %722 = vmatprep.mubr.bf16.mxu0 %v173
  %723 = vmatmul.mubr.bf16.gmra.mrb[0].mxu0 %v172
  %v724 = vpop.f32.mrb[0].mxu0
  %v725 = vadd.f32 0.0, %v724
  %v726 = vpop.f32.mrb[0].mxu0
  %v727 = vadd.f32 0.0, %v726
  %v728 = vpop.f32.mrb[0].mxu0
  %v729 = vadd.f32 0.0, %v728
  %v730 = vpop.f32.mrb[0].mxu0
  %v731 = vadd.f32 0.0, %v730
  %732 = vmatprep.mubr.bf16.mxu0 %v176
  %733 = vmatmul.mubr.bf16.gmra.mrb[0].mxu0 %v175
  %v734 = vpop.f32.mrb[0].mxu0
  %v735 = vadd.f32 0.0, %v734
  %v736 = vpop.f32.mrb[0].mxu0
  %v737 = vadd.f32 0.0, %v736
  %v738 = vpop.f32.mrb[0].mxu0
  %v739 = vpop.f32.mrb[0].mxu0
  %740 = vdwg.mxu0
  %741 = vmatprep.subr.bf16.mxu0 %v543
  %742 = vmatpush1.bf16.msra.mxu0 %v542
  %743 = vmatprep.subr.bf16.mxu0 %v547
  %744 = vmatpush1.bf16.msra.mxu0 %v546
  %745 = vmatprep.subr.bf16.mxu0 %v551
  %746 = vmatpush1.bf16.msra.mxu0 %v550
  %747 = vmatprep.subr.bf16.mxu0 %v555
  %748 = vmatpush1.bf16.msra.mxu0 %v554
  %749 = vmatprep.subr.bf16.mxu0 %v559
  %750 = vmatpush1.bf16.msra.mxu0 %v558
  %751 = vmatprep.subr.bf16.mxu0 %v563
  %752 = vmatpush1.bf16.msra.mxu0 %v562
  %753 = vmatprep.subr.bf16.mxu0 %v567
  %754 = vmatpush1.bf16.msra.mxu0 %v566
  %755 = vmatprep.subr.bf16.mxu0 %v571
  %756 = vmatpush1.bf16.msra.mxu0 %v570
  %757 = vmatprep.subr.bf16.mxu0 0
  %758 = vmatpush1.bf16.msra.mxu0 0
  %759 = vmatprep.subr.bf16.mxu0 0
  %760 = vmatpush1.bf16.msra.mxu0 0
  %761 = vmatprep.subr.bf16.mxu0 0
  %762 = vmatpush1.bf16.msra.mxu0 0
  %763 = vmatprep.subr.bf16.mxu0 0
  %764 = vmatpush1.bf16.msra.mxu0 0
  %765 = vmatprep.subr.bf16.mxu0 0
  %766 = vmatpush1.bf16.msra.mxu0 0
  %767 = vmatprep.subr.bf16.mxu0 0
  %768 = vmatpush1.bf16.msra.mxu0 0
  %769 = vmatprep.subr.bf16.mxu0 0
  %770 = vmatpush1.bf16.msra.mxu0 0
  %771 = vmatprep.subr.bf16.mxu0 0
  %772 = vmatpush1.bf16.msra.mxu0 0
  %773 = vmatprep.mubr.bf16.mxu0 0
  %774 = vmatmul.mubr.bf16.gmra.mrb[0].mxu0 %v168
  %v775 = vpop.f32.mrb[0].mxu0
  %v776 = vadd.f32 %v705, %v775
  %v777 = vpop.f32.mrb[0].mxu0
  %v778 = vadd.f32 %v707, %v777
  %v779 = vpop.f32.mrb[0].mxu0
  %v780 = vadd.f32 %v709, %v779
  %v781 = vpop.f32.mrb[0].mxu0
  %v782 = vadd.f32 %v711, %v781
  %783 = vmatprep.mubr.bf16.mxu0 0
  %784 = vmatmul.mubr.bf16.gmra.mrb[0].mxu0 %v171
  %v785 = vpop.f32.mrb[0].mxu0
  %v786 = vadd.f32 %v715, %v785
  %v787 = vpop.f32.mrb[0].mxu0
  %v788 = vadd.f32 %v717, %v787
  %v789 = vpop.f32.mrb[0].mxu0
  %v790 = vadd.f32 %v719, %v789
  %v791 = vpop.f32.mrb[0].mxu0
  %v792 = vadd.f32 %v721, %v791
  %793 = vmatprep.mubr.bf16.mxu0 0
  %794 = vmatmul.mubr.bf16.gmra.mrb[0].mxu0 %v174
  %v795 = vpop.f32.mrb[0].mxu0
  %v796 = vadd.f32 %v725, %v795
  %v797 = vpop.f32.mrb[0].mxu0
  %v798 = vadd.f32 %v727, %v797
  %v799 = vpop.f32.mrb[0].mxu0
  %v800 = vadd.f32 %v729, %v799
  %v801 = vpop.f32.mrb[0].mxu0
  %v802 = vadd.f32 %v731, %v801
  %803 = vmatprep.mubr.bf16.mxu0 0
  %804 = vmatmul.mubr.bf16.gmra.mrb[0].mxu0 %v177
  %v805 = vpop.f32.mrb[0].mxu0
  %v806 = vadd.f32 %v735, %v805
  %v807 = vpop.f32.mrb[0].mxu0
  %v808 = vadd.f32 %v737, %v807
  %v809 = vpop.f32.mrb[0].mxu0
  %v810 = vpop.f32.mrb[0].mxu0
  %811 = vdwg.mxu0
  %812 = vmatprep.subr.bf16.mxu0 %v481
  %813 = vmatpush1.bf16.msra.mxu0 %v480
  %814 = vmatprep.subr.bf16.mxu0 %v485
  %815 = vmatpush1.bf16.msra.mxu0 %v484
  %816 = vmatprep.subr.bf16.mxu0 %v489
  %817 = vmatpush1.bf16.msra.mxu0 %v488
  %818 = vmatprep.subr.bf16.mxu0 %v493
  %819 = vmatpush1.bf16.msra.mxu0 %v492
  %820 = vmatprep.subr.bf16.mxu0 %v497
  %821 = vmatpush1.bf16.msra.mxu0 %v496
  %822 = vmatprep.subr.bf16.mxu0 %v501
  %823 = vmatpush1.bf16.msra.mxu0 %v500
  %824 = vmatprep.subr.bf16.mxu0 %v505
  %825 = vmatpush1.bf16.msra.mxu0 %v504
  %826 = vmatprep.subr.bf16.mxu0 %v509
  %827 = vmatpush1.bf16.msra.mxu0 %v508
  %828 = vmatprep.subr.bf16.mxu0 %v513
  %829 = vmatpush1.bf16.msra.mxu0 %v512
  %830 = vmatprep.subr.bf16.mxu0 %v517
  %831 = vmatpush1.bf16.msra.mxu0 %v516
  %832 = vmatprep.subr.bf16.mxu0 %v521
  %833 = vmatpush1.bf16.msra.mxu0 %v520
  %834 = vmatprep.subr.bf16.mxu0 %v525
  %835 = vmatpush1.bf16.msra.mxu0 %v524
  %836 = vmatprep.subr.bf16.mxu0 %v529
  %837 = vmatpush1.bf16.msra.mxu0 %v528
  %838 = vmatprep.subr.bf16.mxu0 %v533
  %839 = vmatpush1.bf16.msra.mxu0 %v532
  %840 = vmatprep.subr.bf16.mxu0 %v537
  %841 = vmatpush1.bf16.msra.mxu0 %v536
  %842 = vmatprep.subr.bf16.mxu0 %v541
  %843 = vmatpush1.bf16.msra.mxu0 %v540
  %844 = vmatprep.mubr.bf16.mxu0 %v167
  %845 = vmatmul.mubr.bf16.gmra.mrb[0].mxu0 %v166
  %v846 = vpop.f32.mrb[0].mxu0
  %v847 = vadd.f32 0.0, %v846
  %v848 = vpop.f32.mrb[0].mxu0
  %v849 = vadd.f32 0.0, %v848
  %v850 = vpop.f32.mrb[0].mxu0
  %v851 = vadd.f32 0.0, %v850
  %v852 = vpop.f32.mrb[0].mxu0
  %v853 = vadd.f32 0.0, %v852
  %854 = vmatprep.mubr.bf16.mxu0 %v170
  %855 = vmatmul.mubr.bf16.gmra.mrb[0].mxu0 %v169
  %v856 = vpop.f32.mrb[0].mxu0
  %v857 = vadd.f32 0.0, %v856
  %v858 = vpop.f32.mrb[0].mxu0
  %v859 = vadd.f32 0.0, %v858
  %v860 = vpop.f32.mrb[0].mxu0
  %v861 = vadd.f32 0.0, %v860
  %v862 = vpop.f32.mrb[0].mxu0
  %v863 = vadd.f32 0.0, %v862
  %864 = vmatprep.mubr.bf16.mxu0 %v173
  %865 = vmatmul.mubr.bf16.gmra.mrb[0].mxu0 %v172
  %v866 = vpop.f32.mrb[0].mxu0
  %v867 = vadd.f32 0.0, %v866
  %v868 = vpop.f32.mrb[0].mxu0
  %v869 = vadd.f32 0.0, %v868
  %v870 = vpop.f32.mrb[0].mxu0
  %v871 = vadd.f32 0.0, %v870
  %v872 = vpop.f32.mrb[0].mxu0
  %v873 = vadd.f32 0.0, %v872
  %874 = vmatprep.mubr.bf16.mxu0 %v176
  %875 = vmatmul.mubr.bf16.gmra.mrb[0].mxu0 %v175
  %v876 = vpop.f32.mrb[0].mxu0
  %v877 = vadd.f32 0.0, %v876
  %v878 = vpop.f32.mrb[0].mxu0
  %v879 = vadd.f32 0.0, %v878
  %v880 = vpop.f32.mrb[0].mxu0
  %v881 = vpop.f32.mrb[0].mxu0
  %882 = vdwg.mxu0
  %883 = vmatprep.subr.bf16.mxu0 %v545
  %884 = vmatpush1.bf16.msra.mxu0 %v544
  %885 = vmatprep.subr.bf16.mxu0 %v549
  %886 = vmatpush1.bf16.msra.mxu0 %v548
  %887 = vmatprep.subr.bf16.mxu0 %v553
  %888 = vmatpush1.bf16.msra.mxu0 %v552
  %889 = vmatprep.subr.bf16.mxu0 %v557
  %890 = vmatpush1.bf16.msra.mxu0 %v556
  %891 = vmatprep.subr.bf16.mxu0 %v561
  %892 = vmatpush1.bf16.msra.mxu0 %v560
  %893 = vmatprep.subr.bf16.mxu0 %v565
  %894 = vmatpush1.bf16.msra.mxu0 %v564
  %895 = vmatprep.subr.bf16.mxu0 %v569
  %896 = vmatpush1.bf16.msra.mxu0 %v568
  %897 = vmatprep.subr.bf16.mxu0 %v573
  %898 = vmatpush1.bf16.msra.mxu0 %v572
  %899 = vmatprep.subr.bf16.mxu0 0
  %900 = vmatpush1.bf16.msra.mxu0 0
  %901 = vmatprep.subr.bf16.mxu0 0
  %902 = vmatpush1.bf16.msra.mxu0 0
  %903 = vmatprep.subr.bf16.mxu0 0
  %904 = vmatpush1.bf16.msra.mxu0 0
  %905 = vmatprep.subr.bf16.mxu0 0
  %906 = vmatpush1.bf16.msra.mxu0 0
  %907 = vmatprep.subr.bf16.mxu0 0
  %908 = vmatpush1.bf16.msra.mxu0 0
  %909 = vmatprep.subr.bf16.mxu0 0
  %910 = vmatpush1.bf16.msra.mxu0 0
  %911 = vmatprep.subr.bf16.mxu0 0
  %912 = vmatpush1.bf16.msra.mxu0 0
  %913 = vmatprep.subr.bf16.mxu0 0
  %914 = vmatpush1.bf16.msra.mxu0 0
  %915 = vmatprep.mubr.bf16.mxu0 0
  %916 = vmatmul.mubr.bf16.gmra.mrb[0].mxu0 %v168
  %v917 = vpop.f32.mrb[0].mxu0
  %v918 = vadd.f32 %v847, %v917
  %v919 = vpop.f32.mrb[0].mxu0
  %v920 = vadd.f32 %v849, %v919
  %v921 = vpop.f32.mrb[0].mxu0
  %v922 = vadd.f32 %v851, %v921
  %v923 = vpop.f32.mrb[0].mxu0
  %v924 = vadd.f32 %v853, %v923
  %925 = vmatprep.mubr.bf16.mxu0 0
  %926 = vmatmul.mubr.bf16.gmra.mrb[0].mxu0 %v171
  %v927 = vpop.f32.mrb[0].mxu0
  %v928 = vadd.f32 %v857, %v927
  %v929 = vpop.f32.mrb[0].mxu0
  %v930 = vadd.f32 %v859, %v929
  %v931 = vpop.f32.mrb[0].mxu0
  %v932 = vadd.f32 %v861, %v931
  %v933 = vpop.f32.mrb[0].mxu0
  %v934 = vadd.f32 %v863, %v933
  %935 = vmatprep.mubr.bf16.mxu0 0
  %936 = vmatmul.mubr.bf16.gmra.mrb[0].mxu0 %v174
  %v937 = vpop.f32.mrb[0].mxu0
  %v938 = vadd.f32 %v867, %v937
  %v939 = vpop.f32.mrb[0].mxu0
  %v940 = vadd.f32 %v869, %v939
  %v941 = vpop.f32.mrb[0].mxu0
  %v942 = vadd.f32 %v871, %v941
  %v943 = vpop.f32.mrb[0].mxu0
  %v944 = vadd.f32 %v873, %v943
  %945 = vmatprep.mubr.bf16.mxu0 0
  %946 = vmatmul.mubr.bf16.gmra.mrb[0].mxu0 %v177
  %v947 = vpop.f32.mrb[0].mxu0
  %v948 = vadd.f32 %v877, %v947
  %v949 = vpop.f32.mrb[0].mxu0
  %v950 = vadd.f32 %v879, %v949
  %v951 = vpop.f32.mrb[0].mxu0
  %v952 = vpop.f32.mrb[0].mxu0
  %953 = vdwg.mxu0
  %v954 = vld [vmem:[%s4] sm:$0xff]
  %v955 = vld [vmem:[%s4 + $0x8] sm:$0xff]
  %v956 = vld [vmem:[%s4 + $0x10] sm:$0xff]
  %v957 = vld [vmem:[%s4 + $0x18] sm:$0xff]
  %v958 = vld [vmem:[%s4 + $0x20] sm:$0xff]
  %v959 = vld [vmem:[%s4 + $0x28] sm:$0xff]
  %v960 = vld [vmem:[%s4 + $0x30] sm:$0xff]
  %v961 = vld [vmem:[%s4 + $0x38] sm:$0xff]
  %v962 = vld [vmem:[%s4 + $0x40] sm:$0xff]
  %v963 = vld [vmem:[%s4 + $0x48] sm:$0xff]
  %v964 = vld [vmem:[%s4 + $0x50] sm:$0xff]
  %v965 = vld [vmem:[%s4 + $0x58] sm:$0xff]
  %v966 = vld [vmem:[%s4 + $0x60] sm:$0xff]
  %v967 = vld [vmem:[%s4 + $0x68] sm:$0xff]
  %v968 = vld [vmem:[%s4 + $0x70] sm:$0xff]
  %v969 = vld [vmem:[%s4 + $0x78] sm:$0xff]
  %v970 = vld [vmem:[%s4 + $0x80] sm:$0xff]
  %v971 = vld [vmem:[%s4 + $0x88] sm:$0xff]
  %v972 = vld [vmem:[%s4 + $0x90] sm:$0xff]
  %v973 = vld [vmem:[%s4 + $0x98] sm:$0xff]
  %v974 = vld [vmem:[%s4 + $0xa0] sm:$0xff]
  %v975 = vld [vmem:[%s4 + $0xa8] sm:$0xff]
  %v976 = vld [vmem:[%s4 + $0xb0] sm:$0xff]
  %v977 = vld [vmem:[%s4 + $0xb8] sm:$0xff]
  %v978 = vld [vmem:[%s4 + $0xc0] sm:$0xff]
  %v979 = vld [vmem:[%s4 + $0xc8] sm:$0xff]
  %v980 = vld [vmem:[%s4 + $0xd0] sm:$0xff]
  %v981 = vld [vmem:[%s4 + $0xd8] sm:$0xff]
  %v982 = vmul.f32 %v776, %v954
  %v983 = vmul.f32 %v780, %v958
  %v984 = vmul.f32 %v786, %v962
  %v985 = vmul.f32 %v790, %v966
  %v986 = vmul.f32 %v796, %v970
  %v987 = vmul.f32 %v800, %v974
  %v988 = vmul.f32 %v806, %v978
  %v989 = vadd.f32 %v982, %v983
  %v990 = vadd.f32 %v989, %v984
  %v991 = vadd.f32 %v990, %v985
  %v992 = vadd.f32 %v991, %v986
  %v993 = vadd.f32 %v992, %v987
  %v994 = vadd.f32 %v993, %v988
  %v995 = vrot.slane %v994, 4
  %v996 = vadd.f32 %v994, %v995
  %v997 = vrot.slane %v996, 2
  %v998 = vadd.f32 %v996, %v997
  %v999 = vrot.slane %v998, 1
  %v1000 = vadd.f32 %v998, %v999
  %v1001 = vadd.f32 %v1000, 0.0
  %v1002 = vmul.f32 %v778, %v955
  %v1003 = vmul.f32 %v782, %v959
  %v1004 = vmul.f32 %v788, %v963
  %v1005 = vmul.f32 %v792, %v967
  %v1006 = vmul.f32 %v798, %v971
  %v1007 = vmul.f32 %v802, %v975
  %v1008 = vmul.f32 %v808, %v979
  %v1009 = vadd.f32 %v1002, %v1003
  %v1010 = vadd.f32 %v1009, %v1004
  %v1011 = vadd.f32 %v1010, %v1005
  %v1012 = vadd.f32 %v1011, %v1006
  %v1013 = vadd.f32 %v1012, %v1007
  %v1014 = vadd.f32 %v1013, %v1008
  %v1015 = vrot.slane %v1014, 4
  %v1016 = vadd.f32 %v1014, %v1015
  %v1017 = vrot.slane %v1016, 2
  %v1018 = vadd.f32 %v1016, %v1017
  %v1019 = vrot.slane %v1018, 1
  %v1020 = vadd.f32 %v1018, %v1019
  %v1021 = vadd.f32 %v1001, %v1020
  %v1022 = vmul.f32 %v918, %v956
  %v1023 = vmul.f32 %v922, %v960
  %v1024 = vmul.f32 %v928, %v964
  %v1025 = vmul.f32 %v932, %v968
  %v1026 = vmul.f32 %v938, %v972
  %v1027 = vmul.f32 %v942, %v976
  %v1028 = vmul.f32 %v948, %v980
  %v1029 = vadd.f32 %v1022, %v1023
  %v1030 = vadd.f32 %v1029, %v1024
  %v1031 = vadd.f32 %v1030, %v1025
  %v1032 = vadd.f32 %v1031, %v1026
  %v1033 = vadd.f32 %v1032, %v1027
  %v1034 = vadd.f32 %v1033, %v1028
  %v1035 = vrot.slane %v1034, 4
  %v1036 = vadd.f32 %v1034, %v1035
  %v1037 = vrot.slane %v1036, 2
  %v1038 = vadd.f32 %v1036, %v1037
  %v1039 = vrot.slane %v1038, 1
  %v1040 = vadd.f32 %v1038, %v1039
  %v1041 = vadd.f32 %v1021, %v1040
  %v1042 = vmul.f32 %v920, %v957
  %v1043 = vmul.f32 %v924, %v961
  %v1044 = vmul.f32 %v930, %v965
  %v1045 = vmul.f32 %v934, %v969
  %v1046 = vmul.f32 %v940, %v973
  %v1047 = vmul.f32 %v944, %v977
  %v1048 = vmul.f32 %v950, %v981
  %v1049 = vadd.f32 %v1042, %v1043
  %v1050 = vadd.f32 %v1049, %v1044
  %v1051 = vadd.f32 %v1050, %v1045
  %v1052 = vadd.f32 %v1051, %v1046
  %v1053 = vadd.f32 %v1052, %v1047
  %v1054 = vadd.f32 %v1053, %v1048
  %v1055 = vrot.slane %v1054, 4
  %v1056 = vadd.f32 %v1054, %v1055
  %v1057 = vrot.slane %v1056, 2
  %v1058 = vadd.f32 %v1056, %v1057
  %v1059 = vrot.slane %v1058, 1
  %v1060 = vadd.f32 %v1058, %v1059
  %v1061 = vadd.f32 %v1041, %v1060
  %v1062 = vmul.f32 %v1061, 0.0078125
  %v1063 = vsub.f32 %v776, %v1062
  %v1064 = vsub.f32 %v780, %v1062
  %v1065 = vsub.f32 %v786, %v1062
  %v1066 = vsub.f32 %v790, %v1062
  %v1067 = vsub.f32 %v796, %v1062
  %v1068 = vsub.f32 %v800, %v1062
  %v1069 = vsub.f32 %v806, %v1062
  %v1070 = vmul.f32 %v1063, %v954
  %v1071 = vmul.f32 %v1064, %v958
  %v1072 = vmul.f32 %v1065, %v962
  %v1073 = vmul.f32 %v1066, %v966
  %v1074 = vmul.f32 %v1067, %v970
  %v1075 = vmul.f32 %v1068, %v974
  %v1076 = vmul.f32 %v1069, %v978
  %v1077 = vmul.f32 %v1070, %v1070
  %v1078 = vmul.f32 %v1071, %v1071
  %v1079 = vmul.f32 %v1072, %v1072
  %v1080 = vmul.f32 %v1073, %v1073
  %v1081 = vmul.f32 %v1074, %v1074
  %v1082 = vmul.f32 %v1075, %v1075
  %v1083 = vmul.f32 %v1076, %v1076
  %v1084 = vadd.f32 %v1077, %v1078
  %v1085 = vadd.f32 %v1084, %v1079
  %v1086 = vadd.f32 %v1085, %v1080
  %v1087 = vadd.f32 %v1086, %v1081
  %v1088 = vadd.f32 %v1087, %v1082
  %v1089 = vadd.f32 %v1088, %v1083
  %v1090 = vrot.slane %v1089, 4
  %v1091 = vadd.f32 %v1089, %v1090
  %v1092 = vrot.slane %v1091, 2
  %v1093 = vadd.f32 %v1091, %v1092
  %v1094 = vrot.slane %v1093, 1
  %v1095 = vadd.f32 %v1093, %v1094
  %v1096 = vadd.f32 %v1095, 0.0
  %v1097 = vsub.f32 %v778, %v1062
  %v1098 = vsub.f32 %v782, %v1062
  %v1099 = vsub.f32 %v788, %v1062
  %v1100 = vsub.f32 %v792, %v1062
  %v1101 = vsub.f32 %v798, %v1062
  %v1102 = vsub.f32 %v802, %v1062
  %v1103 = vsub.f32 %v808, %v1062
  %v1104 = vmul.f32 %v1097, %v955
  %v1105 = vmul.f32 %v1098, %v959
  %v1106 = vmul.f32 %v1099, %v963
  %v1107 = vmul.f32 %v1100, %v967
  %v1108 = vmul.f32 %v1101, %v971
  %v1109 = vmul.f32 %v1102, %v975
  %v1110 = vmul.f32 %v1103, %v979
  %v1111 = vmul.f32 %v1104, %v1104
  %v1112 = vmul.f32 %v1105, %v1105
  %v1113 = vmul.f32 %v1106, %v1106
  %v1114 = vmul.f32 %v1107, %v1107
  %v1115 = vmul.f32 %v1108, %v1108
  %v1116 = vmul.f32 %v1109, %v1109
  %v1117 = vmul.f32 %v1110, %v1110
  %v1118 = vadd.f32 %v1111, %v1112
  %v1119 = vadd.f32 %v1118, %v1113
  %v1120 = vadd.f32 %v1119, %v1114
  %v1121 = vadd.f32 %v1120, %v1115
  %v1122 = vadd.f32 %v1121, %v1116
  %v1123 = vadd.f32 %v1122, %v1117
  %v1124 = vrot.slane %v1123, 4
  %v1125 = vadd.f32 %v1123, %v1124
  %v1126 = vrot.slane %v1125, 2
  %v1127 = vadd.f32 %v1125, %v1126
  %v1128 = vrot.slane %v1127, 1
  %v1129 = vadd.f32 %v1127, %v1128
  %v1130 = vadd.f32 %v1096, %v1129
  %v1131 = vsub.f32 %v918, %v1062
  %v1132 = vsub.f32 %v922, %v1062
  %v1133 = vsub.f32 %v928, %v1062
  %v1134 = vsub.f32 %v932, %v1062
  %v1135 = vsub.f32 %v938, %v1062
  %v1136 = vsub.f32 %v942, %v1062
  %v1137 = vsub.f32 %v948, %v1062
  %v1138 = vmul.f32 %v1131, %v956
  %v1139 = vmul.f32 %v1132, %v960
  %v1140 = vmul.f32 %v1133, %v964
  %v1141 = vmul.f32 %v1134, %v968
  %v1142 = vmul.f32 %v1135, %v972
  %v1143 = vmul.f32 %v1136, %v976
  %v1144 = vmul.f32 %v1137, %v980
  %v1145 = vmul.f32 %v1138, %v1138
  %v1146 = vmul.f32 %v1139, %v1139
  %v1147 = vmul.f32 %v1140, %v1140
  %v1148 = vmul.f32 %v1141, %v1141
  %v1149 = vmul.f32 %v1142, %v1142
  %v1150 = vmul.f32 %v1143, %v1143
  %v1151 = vmul.f32 %v1144, %v1144
  %v1152 = vadd.f32 %v1145, %v1146
  %v1153 = vadd.f32 %v1152, %v1147
  %v1154 = vadd.f32 %v1153, %v1148
  %v1155 = vadd.f32 %v1154, %v1149
  %v1156 = vadd.f32 %v1155, %v1150
  %v1157 = vadd.f32 %v1156, %v1151
  %v1158 = vrot.slane %v1157, 4
  %v1159 = vadd.f32 %v1157, %v1158
  %v1160 = vrot.slane %v1159, 2
  %v1161 = vadd.f32 %v1159, %v1160
  %v1162 = vrot.slane %v1161, 1
  %v1163 = vadd.f32 %v1161, %v1162
  %v1164 = vadd.f32 %v1130, %v1163
  %v1165 = vsub.f32 %v920, %v1062
  %v1166 = vsub.f32 %v924, %v1062
  %v1167 = vsub.f32 %v930, %v1062
  %v1168 = vsub.f32 %v934, %v1062
  %v1169 = vsub.f32 %v940, %v1062
  %v1170 = vsub.f32 %v944, %v1062
  %v1171 = vsub.f32 %v950, %v1062
  %v1172 = vmul.f32 %v1165, %v957
  %v1173 = vmul.f32 %v1166, %v961
  %v1174 = vmul.f32 %v1167, %v965
  %v1175 = vmul.f32 %v1168, %v969
  %v1176 = vmul.f32 %v1169, %v973
  %v1177 = vmul.f32 %v1170, %v977
  %v1178 = vmul.f32 %v1171, %v981
  %v1179 = vmul.f32 %v1172, %v1172
  %v1180 = vmul.f32 %v1173, %v1173
  %v1181 = vmul.f32 %v1174, %v1174
  %v1182 = vmul.f32 %v1175, %v1175
  %v1183 = vmul.f32 %v1176, %v1176
  %v1184 = vmul.f32 %v1177, %v1177
  %v1185 = vmul.f32 %v1178, %v1178
  %v1186 = vadd.f32 %v1179, %v1180
  %v1187 = vadd.f32 %v1186, %v1181
  %v1188 = vadd.f32 %v1187, %v1182
  %v1189 = vadd.f32 %v1188, %v1183
  %v1190 = vadd.f32 %v1189, %v1184
  %v1191 = vadd.f32 %v1190, %v1185
  %v1192 = vrot.slane %v1191, 4
  %v1193 = vadd.f32 %v1191, %v1192
  %v1194 = vrot.slane %v1193, 2
  %v1195 = vadd.f32 %v1193, %v1194
  %v1196 = vrot.slane %v1195, 1
  %v1197 = vadd.f32 %v1195, %v1196
  %v1198 = vadd.f32 %v1164, %v1197
  %v1199 = vmul.f32 %v1198, 0.0078125
  %v1200 = vld [vmem:[%s2] sm:$0x1]
  %v1201 = vadd.f32 %v1199, 1e-05
  %v1202 = vrsqrt.pop %v1201
  %v1203 = vmul.f32 %v1200, %v1202
  %v1204 = vld [vmem:[%s3] sm:$0x1]
  %v1205 = vmul.f32 %v1062, %v1203
  %v1206 = vsub.f32 %v1204, %v1205
  %v1208 = vlaneseq
  %v1209 = vshrl.u32 %v1208, 7
  %v1210 = vsub.s32 0, %v1209
  %v1211 = vrot.slane %v1203, %v1210
  %v1213 = vmul.f32 %v776, %v1211
  %v1214 = vmul.f32 %v780, %v1211
  %v1215 = vmul.f32 %v786, %v1211
  %v1216 = vmul.f32 %v790, %v1211
  %v1217 = vmul.f32 %v796, %v1211
  %v1218 = vmul.f32 %v800, %v1211
  %v1219 = vmul.f32 %v806, %v1211
  %v1221 = vlaneseq
  %v1222 = vshrl.u32 %v1221, 7
  %v1223 = vsub.s32 0, %v1222
  %v1224 = vrot.slane %v1206, %v1223
  %v1226 = vadd.f32 %v1213, %v1224
  %v1227 = vadd.f32 %v1214, %v1224
  %v1228 = vadd.f32 %v1215, %v1224
  %v1229 = vadd.f32 %v1216, %v1224
  %v1230 = vadd.f32 %v1217, %v1224
  %v1231 = vadd.f32 %v1218, %v1224
  %v1232 = vadd.f32 %v1219, %v1224
  %v1233 = vmax.f32 %v1226, 0.0
  %v1234 = vmax.f32 %v1227, 0.0
  %v1235 = vmax.f32 %v1228, 0.0
  %v1236 = vmax.f32 %v1229, 0.0
  %v1237 = vmax.f32 %v1230, 0.0
  %v1238 = vmax.f32 %v1231, 0.0
  %v1239 = vmax.f32 %v1232, 0.0
  %1240 = vst [vmem:[%s5] sm:$0xff] %v1233
  %1241 = vst [vmem:[%s5 + $0x20] sm:$0xff] %v1234
  %1242 = vst [vmem:[%s5 + $0x40] sm:$0xff] %v1235
  %1243 = vst [vmem:[%s5 + $0x60] sm:$0xff] %v1236
  %1244 = vst [vmem:[%s5 + $0x80] sm:$0xff] %v1237
  %1245 = vst [vmem:[%s5 + $0xa0] sm:$0xff] %v1238
  %1246 = vst [vmem:[%s5 + $0xc0] sm:$0xff] %v1239
  %v1247 = vmul.f32 %v778, %v1211
  %v1248 = vmul.f32 %v782, %v1211
  %v1249 = vmul.f32 %v788, %v1211
  %v1250 = vmul.f32 %v792, %v1211
  %v1251 = vmul.f32 %v798, %v1211
  %v1252 = vmul.f32 %v802, %v1211
  %v1253 = vmul.f32 %v808, %v1211
  %v1254 = vadd.f32 %v1247, %v1224
  %v1255 = vadd.f32 %v1248, %v1224
  %v1256 = vadd.f32 %v1249, %v1224
  %v1257 = vadd.f32 %v1250, %v1224
  %v1258 = vadd.f32 %v1251, %v1224
  %v1259 = vadd.f32 %v1252, %v1224
  %v1260 = vadd.f32 %v1253, %v1224
  %v1261 = vmax.f32 %v1254, 0.0
  %v1262 = vmax.f32 %v1255, 0.0
  %v1263 = vmax.f32 %v1256, 0.0
  %v1264 = vmax.f32 %v1257, 0.0
  %v1265 = vmax.f32 %v1258, 0.0
  %v1266 = vmax.f32 %v1259, 0.0
  %v1267 = vmax.f32 %v1260, 0.0
  %1268 = vst [vmem:[%s5 + $0x8] sm:$0xff] %v1261
  %1269 = vst [vmem:[%s5 + $0x28] sm:$0xff] %v1262
  %1270 = vst [vmem:[%s5 + $0x48] sm:$0xff] %v1263
  %1271 = vst [vmem:[%s5 + $0x68] sm:$0xff] %v1264
  %1272 = vst [vmem:[%s5 + $0x88] sm:$0xff] %v1265
  %1273 = vst [vmem:[%s5 + $0xa8] sm:$0xff] %v1266
  %1274 = vst [vmem:[%s5 + $0xc8] sm:$0xff] %v1267
  %v1275 = vmul.f32 %v918, %v1211
  %v1276 = vmul.f32 %v922, %v1211
  %v1277 = vmul.f32 %v928, %v1211
  %v1278 = vmul.f32 %v932, %v1211
  %v1279 = vmul.f32 %v938, %v1211
  %v1280 = vmul.f32 %v942, %v1211
  %v1281 = vmul.f32 %v948, %v1211
  %v1282 = vadd.f32 %v1275, %v1224
  %v1283 = vadd.f32 %v1276, %v1224
  %v1284 = vadd.f32 %v1277, %v1224
  %v1285 = vadd.f32 %v1278, %v1224
  %v1286 = vadd.f32 %v1279, %v1224
  %v1287 = vadd.f32 %v1280, %v1224
  %v1288 = vadd.f32 %v1281, %v1224
  %v1289 = vmax.f32 %v1282, 0.0
  %v1290 = vmax.f32 %v1283, 0.0
  %v1291 = vmax.f32 %v1284, 0.0
  %v1292 = vmax.f32 %v1285, 0.0
  %v1293 = vmax.f32 %v1286, 0.0
  %v1294 = vmax.f32 %v1287, 0.0
  %v1295 = vmax.f32 %v1288, 0.0
  %1296 = vst [vmem:[%s5 + $0x10] sm:$0xff] %v1289
  %1297 = vst [vmem:[%s5 + $0x30] sm:$0xff] %v1290
  %1298 = vst [vmem:[%s5 + $0x50] sm:$0xff] %v1291
  %1299 = vst [vmem:[%s5 + $0x70] sm:$0xff] %v1292
  %1300 = vst [vmem:[%s5 + $0x90] sm:$0xff] %v1293
  %1301 = vst [vmem:[%s5 + $0xb0] sm:$0xff] %v1294
  %1302 = vst [vmem:[%s5 + $0xd0] sm:$0xff] %v1295
  %v1303 = vmul.f32 %v920, %v1211
  %v1304 = vmul.f32 %v924, %v1211
  %v1305 = vmul.f32 %v930, %v1211
  %v1306 = vmul.f32 %v934, %v1211
  %v1307 = vmul.f32 %v940, %v1211
  %v1308 = vmul.f32 %v944, %v1211
  %v1309 = vmul.f32 %v950, %v1211
  %v1310 = vadd.f32 %v1303, %v1224
  %v1311 = vadd.f32 %v1304, %v1224
  %v1312 = vadd.f32 %v1305, %v1224
  %v1313 = vadd.f32 %v1306, %v1224
  %v1314 = vadd.f32 %v1307, %v1224
  %v1315 = vadd.f32 %v1308, %v1224
  %v1316 = vadd.f32 %v1309, %v1224
  %v1317 = vmax.f32 %v1310, 0.0
  %v1318 = vmax.f32 %v1311, 0.0
  %v1319 = vmax.f32 %v1312, 0.0
  %v1320 = vmax.f32 %v1313, 0.0
  %v1321 = vmax.f32 %v1314, 0.0
  %v1322 = vmax.f32 %v1315, 0.0
  %v1323 = vmax.f32 %v1316, 0.0
  %1324 = vst [vmem:[%s5 + $0x18] sm:$0xff] %v1317
  %1325 = vst [vmem:[%s5 + $0x38] sm:$0xff] %v1318
  %1326 = vst [vmem:[%s5 + $0x58] sm:$0xff] %v1319
  %1327 = vst [vmem:[%s5 + $0x78] sm:$0xff] %v1320
  %1328 = vst [vmem:[%s5 + $0x98] sm:$0xff] %v1321
  %1329 = vst [vmem:[%s5 + $0xb8] sm:$0xff] %v1322
  %1330 = vst [vmem:[%s5 + $0xd8] sm:$0xff] %v1323
  // Predicated region
  $region22: #{_lambda_.10} parent=0 // pred_check
    _
  $region23: #{_lambda_.10} parent=0 // pred_check_branch
    %1332 = sbr.rel (0) target = $region25
  $region24: #{_lambda_.10} parent=0 // pred_region
    _
  $region25: #{_lambda_.10} parent=0 // pred_fallthru
    _
  // Predicated region
  $region26: #{_lambda_.10} parent=0 // pred_check
    _
  $region27: #{_lambda_.10} parent=0 // pred_check_branch
    %1334 = sbr.rel (0) target = $region29
  $region28: #{_lambda_.10} parent=0 // pred_region
    _
  $region29: #{_lambda_.10} parent=0 // pred_fallthru
    _

// kernel: tile.8
$region0: #{tile.8}
  #allocation0 [shape = 's32[1]{0}', space=sflag, size = 0x4, scoped, tag = 'scoped memory for tile.8']
  %s0 = inlined_call_operand.vmem [shape: f32[3], index: 0, kind: input, shape index: {}]
  %s1 = inlined_call_operand.vmem [shape: f32[4,3], index: 1, kind: output, shape index: {}]
  // Predicated region
  $region2: #{tile.8} parent=0 // pred_check
    _
  $region3: #{tile.8} parent=0 // pred_check_branch
    %3 = sbr.rel (0) target = $region5
  $region4: #{tile.8} parent=0 // pred_region
    _
  $region5: #{tile.8} parent=0 // pred_fallthru
    _
  %v4 = vld [vmem:[%s0] ss:$0 sm:$0xff]
  %5 = vst [vmem:[%s1] sm:$0xf] %v4

// kernel: tile.9
$region0: #{tile.9}
  %s0 = inlined_call_operand.vmem [shape: f32[4,3], index: 0, kind: input, shape index: {}]
  %s1 = inlined_call_operand.vmem [shape: f32[1,12], index: 1, kind: output, shape index: {}]
  $region1: #{tile.9} parent=0
    #allocation0 [shape = 'u8[4096]{0}', space=vmem, size = 0x1000, scoped, tag = 'scoped mem for output reshape']
    #allocation1 [shape = 'u8[4096]{0}', space=vmem, size = 0x1000, scoped, tag = 'scoped mem for input reshape']
    %s3 = sshllo.u32 0, 4
    %v4 = vld [vmem:[%s0] sm:%s3]
    %5 = vst [vmem:[#allocation1] sm:%s3] %v4
    %v6 = vld [vmem:[#allocation1] sm:$0x1]
    %vm7 = vcmask 23552
    %8 = vst.msk [vmem:[#allocation0] sm:$0x1] %vm7, %v6
    %s9 = scalar_lea.vmem [#allocation1], 3
    %v10 = vld [vmem:[%s9] sm:$0x1]
    %11 = vrot.lane.b32.xlu0 %v10, 9
    %v12 = vpop.permute.xlu0 %11
    %vm13 = vcmask 97352
    %14 = vst.msk [vmem:[#allocation0] sm:$0x1] %vm13, %v12
    %s15 = scalar_lea.vmem [#allocation1], 2
    %v16 = vld [vmem:[%s15] sm:$0x1]
    %17 = vrot.lane.b32.xlu0 %v16, 6
    %v18 = vpop.permute.xlu0 %17
    %vm19 = vcmask 72752
    %20 = vst.msk [vmem:[#allocation0] sm:$0x1] %vm19, %v18
    %s21 = scalar_lea.vmem [#allocation1], 1
    %v22 = vld [vmem:[%s21] sm:$0x1]
    %23 = vrot.lane.b32.xlu0 %v22, 3
    %v24 = vpop.permute.xlu0 %23
    %vm25 = vcmask 48152
    %26 = vst.msk [vmem:[#allocation0] sm:$0x1] %vm25, %v24
    %s28 = sshllo.u32 0, 1
    %v30 = vld [vmem:[#allocation0] sm:%s28]
    %s31 = sshllo.u32 0, 1
    %32 = vst [vmem:[%s1] sm:%s31] %v30

// kernel: _lambda_.11
$region0: #{_lambda_.11}
  #allocation0 [shape = 'u32[]', space=smem, size = 0x4, offset = 0x4, fixed_abs, tag = 'smem constant byte address 0x4 - core index']
  #allocation1 [shape = 'u32[144,128]{1,0:T(1,128)}', space=vmem, size = 0x12000, scoped, tag = 'internal scratch']
  %s0 = inlined_call_operand.vmem [shape: bf16[168,128], index: 0, kind: input, shape index: {}]
  %s1 = inlined_call_operand.vmem [shape: bf16[128,128], index: 1, kind: input, shape index: {}]
  %s2 = inlined_call_operand.vmem [shape: f32[1,128], index: 2, kind: input, shape index: {}]
  %s3 = inlined_call_operand.vmem [shape: f32[1,128], index: 3, kind: input, shape index: {}]
  %s4 = inlined_call_operand.vmem [shape: f32[168,128], index: 4, kind: output, shape index: {}]
  %s5 = sld [smem:[#allocation0]]
  $region26: #{_lambda_.11} parent=0
    _
  %s7 = ssub.s32 1, %s5
  %s8 = scalar_select 0, %s7, %s5
  // Predicated region
  $region2: #{_lambda_.11} parent=0 // pred_check
    _
  $region3: #{_lambda_.11} parent=0 // pred_check_branch
    %10 = sbr.rel (0) target = $region5
  $region4: #{_lambda_.11} parent=0 // pred_region
    _
  $region5: #{_lambda_.11} parent=0 // pred_fallthru
    _
  // Predicated region
  $region6: #{_lambda_.11} parent=0 // pred_check
    _
  $region7: #{_lambda_.11} parent=0 // pred_check_branch
    %12 = sbr.rel (0) target = $region9
  $region8: #{_lambda_.11} parent=0 // pred_region
    _
  $region9: #{_lambda_.11} parent=0 // pred_fallthru
    _
  // Predicated region
  $region10: #{_lambda_.11} parent=0 // pred_check
    _
  $region11: #{_lambda_.11} parent=0 // pred_check_branch
    %14 = sbr.rel (0) target = $region13
  $region12: #{_lambda_.11} parent=0 // pred_region
    _
  $region13: #{_lambda_.11} parent=0 // pred_fallthru
    _
  // Predicated region
  $region14: #{_lambda_.11} parent=0 // pred_check
    _
  $region15: #{_lambda_.11} parent=0 // pred_check_branch
    %16 = sbr.rel (0) target = $region17
  $region16: #{_lambda_.11} parent=0 // pred_region
    _
  $region17: #{_lambda_.11} parent=0 // pred_fallthru
    _
  %v18 = vld [vmem:[%s0] sm:$0xf]
  %v19 = vld [vmem:[%s0 + $0x4] sm:$0xf]
  %v20 = vld [vmem:[%s0 + $0x8] sm:$0xf]
  %v21 = vld [vmem:[%s0 + $0xc] sm:$0xf]
  %v22 = vld [vmem:[%s0 + $0x10] sm:$0xf]
  %v23 = vld [vmem:[%s0 + $0x14] sm:$0xf]
  %v24 = vld [vmem:[%s0 + $0x18] sm:$0xf]
  %v25 = vld [vmem:[%s0 + $0x1c] sm:$0xf]
  %v26 = vld [vmem:[%s0 + $0x20] sm:$0xf]
  %v27 = vld [vmem:[%s0 + $0x24] sm:$0xf]
  %v28 = vld [vmem:[%s0 + $0x28] sm:$0xf]
  %v29 = vld [vmem:[%s0 + $0x2c] sm:$0xf]
  %v30 = vld [vmem:[%s0 + $0x30] sm:$0xf]
  %v31 = vld [vmem:[%s0 + $0x34] sm:$0xf]
  %v32 = vld [vmem:[%s0 + $0x38] sm:$0xf]
  %v33 = vld [vmem:[%s0 + $0x3c] sm:$0xf]
  %v34 = vld [vmem:[%s0 + $0x40] sm:$0xf]
  %v35 = vld [vmem:[%s0 + $0x44] sm:$0xf]
  %v36 = vld [vmem:[%s0 + $0x48] sm:$0xf]
  %v37 = vld [vmem:[%s0 + $0x4c] sm:$0xf]
  %v38 = vld [vmem:[%s0 + $0x50] sm:$0xf]
  %v39 = vld [vmem:[%s1] sm:$0xf]
  %v40 = vld [vmem:[%s1 + $0x4] sm:$0xf]
  %v41 = vld [vmem:[%s1 + $0x8] sm:$0xf]
  %v42 = vld [vmem:[%s1 + $0xc] sm:$0xf]
  %v43 = vld [vmem:[%s1 + $0x10] sm:$0xf]
  %v44 = vld [vmem:[%s1 + $0x14] sm:$0xf]
  %v45 = vld [vmem:[%s1 + $0x18] sm:$0xf]
  %v46 = vld [vmem:[%s1 + $0x1c] sm:$0xf]
  %v47 = vld [vmem:[%s1 + $0x20] sm:$0xf]
  %v48 = vld [vmem:[%s1 + $0x24] sm:$0xf]
  %v49 = vld [vmem:[%s1 + $0x28] sm:$0xf]
  %v50 = vld [vmem:[%s1 + $0x2c] sm:$0xf]
  %v51 = vld [vmem:[%s1 + $0x30] sm:$0xf]
  %v52 = vld [vmem:[%s1 + $0x34] sm:$0xf]
  %v53 = vld [vmem:[%s1 + $0x38] sm:$0xf]
  %v54 = vld [vmem:[%s1 + $0x3c] sm:$0xf]
  %v76 = vunpack.c.l.b16 %v18
  %v77 = vunpack.c.l.b16 %v19
  %v78 = vunpack.c.l.b16 %v20
  %v79 = vunpack.c.l.b16 %v21
  %v80 = vunpack.c.l.b16 %v22
  %v81 = vunpack.c.l.b16 %v23
  %v82 = vunpack.c.l.b16 %v24
  %v83 = vunpack.c.l.b16 %v25
  %v84 = vunpack.c.l.b16 %v26
  %v85 = vunpack.c.l.b16 %v27
  %v86 = vunpack.c.l.b16 %v28
  %v87 = vunpack.c.l.b16 %v29
  %v88 = vunpack.c.l.b16 %v30
  %v89 = vunpack.c.l.b16 %v31
  %v90 = vunpack.c.l.b16 %v32
  %v91 = vunpack.c.l.b16 %v33
  %v92 = vunpack.c.l.b16 %v34
  %v93 = vunpack.c.l.b16 %v35
  %v94 = vunpack.c.l.b16 %v36
  %v95 = vunpack.c.l.b16 %v37
  %v96 = vunpack.c.l.b16 %v38
  %v97 = vpack.c.b16 %v77, %v76
  %v98 = vpack.c.b16 %v79, %v78
  %v99 = vpack.c.b16 %v81, %v80
  %v100 = vpack.c.b16 %v83, %v82
  %v101 = vpack.c.b16 %v85, %v84
  %v102 = vpack.c.b16 %v87, %v86
  %v103 = vpack.c.b16 %v89, %v88
  %v104 = vpack.c.b16 %v91, %v90
  %v105 = vpack.c.b16 %v93, %v92
  %v106 = vpack.c.b16 %v95, %v94
  %v107 = vpack.c.b16 %v96, %v96
  %v135 = vunpack.c.l.b16 %v39
  %v136 = vunpack.c.l.b16 %v40
  %v137 = vunpack.c.l.b16 %v41
  %v138 = vunpack.c.l.b16 %v42
  %v139 = vunpack.c.l.b16 %v43
  %v140 = vunpack.c.l.b16 %v44
  %v141 = vunpack.c.l.b16 %v45
  %v142 = vunpack.c.l.b16 %v46
  %v143 = vunpack.c.l.b16 %v47
  %v144 = vunpack.c.l.b16 %v48
  %v145 = vunpack.c.l.b16 %v49
  %v146 = vunpack.c.l.b16 %v50
  %v147 = vunpack.c.l.b16 %v51
  %v148 = vunpack.c.l.b16 %v52
  %v149 = vunpack.c.l.b16 %v53
  %v150 = vunpack.c.l.b16 %v54
  %v151 = vpack.c.b16 %v136, %v135
  %v152 = vpack.c.b16 %v138, %v137
  %v153 = vpack.c.b16 %v140, %v139
  %v154 = vpack.c.b16 %v142, %v141
  %v155 = vpack.c.b16 %v144, %v143
  %v156 = vpack.c.b16 %v146, %v145
  %v157 = vpack.c.b16 %v148, %v147
  %v158 = vpack.c.b16 %v150, %v149
  %167 = vmatprep.subr.bf16.mxu0 0
  %168 = vmatpush1.bf16.msra.mxu0 %v151
  %169 = vmatprep.subr.bf16.mxu0 0
  %170 = vmatpush1.bf16.msra.mxu0 %v152
  %171 = vmatprep.subr.bf16.mxu0 0
  %172 = vmatpush1.bf16.msra.mxu0 %v153
  %173 = vmatprep.subr.bf16.mxu0 0
  %174 = vmatpush1.bf16.msra.mxu0 %v154
  %175 = vmatprep.subr.bf16.mxu0 0
  %176 = vmatpush1.bf16.msra.mxu0 %v155
  %177 = vmatprep.subr.bf16.mxu0 0
  %178 = vmatpush1.bf16.msra.mxu0 %v156
  %179 = vmatprep.subr.bf16.mxu0 0
  %180 = vmatpush1.bf16.msra.mxu0 %v157
  %181 = vmatprep.subr.bf16.mxu0 0
  %182 = vmatpush1.bf16.msra.mxu0 %v158
  %183 = vmatprep.subr.bf16.mxu0 0
  %184 = vmatpush1.bf16.msra.mxu0 0
  %185 = vmatprep.subr.bf16.mxu0 0
  %186 = vmatpush1.bf16.msra.mxu0 0
  %187 = vmatprep.subr.bf16.mxu0 0
  %188 = vmatpush1.bf16.msra.mxu0 0
  %189 = vmatprep.subr.bf16.mxu0 0
  %190 = vmatpush1.bf16.msra.mxu0 0
  %191 = vmatprep.subr.bf16.mxu0 0
  %192 = vmatpush1.bf16.msra.mxu0 0
  %193 = vmatprep.subr.bf16.mxu0 0
  %194 = vmatpush1.bf16.msra.mxu0 0
  %195 = vmatprep.subr.bf16.mxu0 0
  %196 = vmatpush1.bf16.msra.mxu0 0
  %197 = vmatprep.subr.bf16.mxu0 0
  %198 = vmatpush1.bf16.msra.mxu0 0
  %199 = vmatprep.mubr.bf16.mxu0 0
  %200 = vmatmul.mubr.bf16.gmra.mrb[0].mxu0 %v97
  %v201 = vpop.f32.mrb[0].mxu0
  %v202 = vadd.f32 0.0, %v201
  %v203 = vpop.f32.mrb[0].mxu0
  %v204 = vpop.f32.mrb[0].mxu0
  %v205 = vadd.f32 0.0, %v204
  %v206 = vpop.f32.mrb[0].mxu0
  %207 = vmatprep.mubr.bf16.mxu0 0
  %208 = vmatmul.mubr.bf16.gmra.mrb[0].mxu0 %v98
  %v209 = vpop.f32.mrb[0].mxu0
  %v210 = vadd.f32 0.0, %v209
  %v211 = vpop.f32.mrb[0].mxu0
  %v212 = vpop.f32.mrb[0].mxu0
  %v213 = vadd.f32 0.0, %v212
  %v214 = vpop.f32.mrb[0].mxu0
  %215 = vmatprep.mubr.bf16.mxu0 0
  %216 = vmatmul.mubr.bf16.gmra.mrb[0].mxu0 %v99
  %v217 = vpop.f32.mrb[0].mxu0
  %v218 = vadd.f32 0.0, %v217
  %v219 = vpop.f32.mrb[0].mxu0
  %v220 = vpop.f32.mrb[0].mxu0
  %v221 = vadd.f32 0.0, %v220
  %v222 = vpop.f32.mrb[0].mxu0
  %223 = vmatprep.mubr.bf16.mxu0 0
  %224 = vmatmul.mubr.bf16.gmra.mrb[0].mxu0 %v100
  %v225 = vpop.f32.mrb[0].mxu0
  %v226 = vadd.f32 0.0, %v225
  %v227 = vpop.f32.mrb[0].mxu0
  %v228 = vpop.f32.mrb[0].mxu0
  %v229 = vadd.f32 0.0, %v228
  %v230 = vpop.f32.mrb[0].mxu0
  %231 = vmatprep.mubr.bf16.mxu0 0
  %232 = vmatmul.mubr.bf16.gmra.mrb[0].mxu0 %v101
  %v233 = vpop.f32.mrb[0].mxu0
  %v234 = vadd.f32 0.0, %v233
  %v235 = vpop.f32.mrb[0].mxu0
  %v236 = vpop.f32.mrb[0].mxu0
  %v237 = vadd.f32 0.0, %v236
  %v238 = vpop.f32.mrb[0].mxu0
  %239 = vmatprep.mubr.bf16.mxu0 0
  %240 = vmatmul.mubr.bf16.gmra.mrb[0].mxu0 %v102
  %v241 = vpop.f32.mrb[0].mxu0
  %v242 = vadd.f32 0.0, %v241
  %v243 = vpop.f32.mrb[0].mxu0
  %v244 = vpop.f32.mrb[0].mxu0
  %v245 = vadd.f32 0.0, %v244
  %v246 = vpop.f32.mrb[0].mxu0
  %247 = vmatprep.mubr.bf16.mxu0 0
  %248 = vmatmul.mubr.bf16.gmra.mrb[0].mxu0 %v103
  %v249 = vpop.f32.mrb[0].mxu0
  %v250 = vadd.f32 0.0, %v249
  %v251 = vpop.f32.mrb[0].mxu0
  %v252 = vpop.f32.mrb[0].mxu0
  %v253 = vadd.f32 0.0, %v252
  %v254 = vpop.f32.mrb[0].mxu0
  %255 = vmatprep.mubr.bf16.mxu0 0
  %256 = vmatmul.mubr.bf16.gmra.mrb[0].mxu0 %v104
  %v257 = vpop.f32.mrb[0].mxu0
  %v258 = vadd.f32 0.0, %v257
  %v259 = vpop.f32.mrb[0].mxu0
  %v260 = vpop.f32.mrb[0].mxu0
  %v261 = vadd.f32 0.0, %v260
  %v262 = vpop.f32.mrb[0].mxu0
  %263 = vmatprep.mubr.bf16.mxu0 0
  %264 = vmatmul.mubr.bf16.gmra.mrb[0].mxu0 %v105
  %v265 = vpop.f32.mrb[0].mxu0
  %v266 = vadd.f32 0.0, %v265
  %v267 = vpop.f32.mrb[0].mxu0
  %v268 = vpop.f32.mrb[0].mxu0
  %v269 = vadd.f32 0.0, %v268
  %v270 = vpop.f32.mrb[0].mxu0
  %271 = vmatprep.mubr.bf16.mxu0 0
  %272 = vmatmul.mubr.bf16.gmra.mrb[0].mxu0 %v106
  %v273 = vpop.f32.mrb[0].mxu0
  %v274 = vadd.f32 0.0, %v273
  %v275 = vpop.f32.mrb[0].mxu0
  %v276 = vpop.f32.mrb[0].mxu0
  %v277 = vadd.f32 0.0, %v276
  %v278 = vpop.f32.mrb[0].mxu0
  %279 = vmatprep.mubr.bf16.mxu0 0
  %280 = vmatmul.mubr.bf16.gmra.mrb[0].mxu0 %v107
  %v281 = vpop.f32.mrb[0].mxu0
  %v282 = vadd.f32 0.0, %v281
  %v283 = vpop.f32.mrb[0].mxu0
  %v284 = vpop.f32.mrb[0].mxu0
  %v285 = vpop.f32.mrb[0].mxu0
  %286 = vdwg.mxu0
  %v287 = vld [vmem:[%s2] sm:$0x1]
  %v289 = vlaneseq
  %v290 = vshrl.u32 %v289, 7
  %v291 = vsub.s32 0, %v290
  %v292 = vrot.slane %v287, %v291
  %v294 = vmul.f32 %v202, %v292
  %v295 = vmul.f32 %v205, %v292
  %v296 = vmul.f32 %v210, %v292
  %v297 = vmul.f32 %v213, %v292
  %v298 = vmul.f32 %v218, %v292
  %v299 = vmul.f32 %v221, %v292
  %v300 = vmul.f32 %v226, %v292
  %v301 = vmul.f32 %v229, %v292
  %v302 = vmul.f32 %v234, %v292
  %v303 = vmul.f32 %v237, %v292
  %v304 = vmul.f32 %v242, %v292
  %v305 = vmul.f32 %v245, %v292
  %v306 = vmul.f32 %v250, %v292
  %v307 = vmul.f32 %v253, %v292
  %v308 = vmul.f32 %v258, %v292
  %v309 = vmul.f32 %v261, %v292
  %v310 = vmul.f32 %v266, %v292
  %v311 = vmul.f32 %v269, %v292
  %v312 = vmul.f32 %v274, %v292
  %v313 = vmul.f32 %v277, %v292
  %v314 = vmul.f32 %v282, %v292
  %v315 = vld [vmem:[%s3] sm:$0x1]
  %v317 = vlaneseq
  %v318 = vshrl.u32 %v317, 7
  %v319 = vsub.s32 0, %v318
  %v320 = vrot.slane %v315, %v319
  %v322 = vadd.f32 %v294, %v320
  %v323 = vadd.f32 %v295, %v320
  %v324 = vadd.f32 %v296, %v320
  %v325 = vadd.f32 %v297, %v320
  %v326 = vadd.f32 %v298, %v320
  %v327 = vadd.f32 %v299, %v320
  %v328 = vadd.f32 %v300, %v320
  %v329 = vadd.f32 %v301, %v320
  %v330 = vadd.f32 %v302, %v320
  %v331 = vadd.f32 %v303, %v320
  %v332 = vadd.f32 %v304, %v320
  %v333 = vadd.f32 %v305, %v320
  %v334 = vadd.f32 %v306, %v320
  %v335 = vadd.f32 %v307, %v320
  %v336 = vadd.f32 %v308, %v320
  %v337 = vadd.f32 %v309, %v320
  %v338 = vadd.f32 %v310, %v320
  %v339 = vadd.f32 %v311, %v320
  %v340 = vadd.f32 %v312, %v320
  %v341 = vadd.f32 %v313, %v320
  %v342 = vadd.f32 %v314, %v320
  %v343 = vtanh.pop %v322
  %v344 = vtanh.pop %v323
  %v345 = vtanh.pop %v324
  %v346 = vtanh.pop %v325
  %v347 = vtanh.pop %v326
  %v348 = vtanh.pop %v327
  %v349 = vtanh.pop %v328
  %v350 = vtanh.pop %v329
  %v351 = vtanh.pop %v330
  %v352 = vtanh.pop %v331
  %v353 = vtanh.pop %v332
  %v354 = vtanh.pop %v333
  %v355 = vtanh.pop %v334
  %v356 = vtanh.pop %v335
  %v357 = vtanh.pop %v336
  %v358 = vtanh.pop %v337
  %v359 = vtanh.pop %v338
  %v360 = vtanh.pop %v339
  %v361 = vtanh.pop %v340
  %v362 = vtanh.pop %v341
  %v363 = vtanh.pop %v342
  %364 = vst [vmem:[%s4] sm:$0xff] %v343
  %365 = vst [vmem:[%s4 + $0x8] sm:$0xff] %v344
  %366 = vst [vmem:[%s4 + $0x10] sm:$0xff] %v345
  %367 = vst [vmem:[%s4 + $0x18] sm:$0xff] %v346
  %368 = vst [vmem:[%s4 + $0x20] sm:$0xff] %v347
  %369 = vst [vmem:[%s4 + $0x28] sm:$0xff] %v348
  %370 = vst [vmem:[%s4 + $0x30] sm:$0xff] %v349
  %371 = vst [vmem:[%s4 + $0x38] sm:$0xff] %v350
  %372 = vst [vmem:[%s4 + $0x40] sm:$0xff] %v351
  %373 = vst [vmem:[%s4 + $0x48] sm:$0xff] %v352
  %374 = vst [vmem:[%s4 + $0x50] sm:$0xff] %v353
  %375 = vst [vmem:[%s4 + $0x58] sm:$0xff] %v354
  %376 = vst [vmem:[%s4 + $0x60] sm:$0xff] %v355
  %377 = vst [vmem:[%s4 + $0x68] sm:$0xff] %v356
  %378 = vst [vmem:[%s4 + $0x70] sm:$0xff] %v357
  %379 = vst [vmem:[%s4 + $0x78] sm:$0xff] %v358
  %380 = vst [vmem:[%s4 + $0x80] sm:$0xff] %v359
  %381 = vst [vmem:[%s4 + $0x88] sm:$0xff] %v360
  %382 = vst [vmem:[%s4 + $0x90] sm:$0xff] %v361
  %383 = vst [vmem:[%s4 + $0x98] sm:$0xff] %v362
  %384 = vst [vmem:[%s4 + $0xa0] sm:$0xff] %v363
  // Predicated region
  $region18: #{_lambda_.11} parent=0 // pred_check
    _
  $region19: #{_lambda_.11} parent=0 // pred_check_branch
    %386 = sbr.rel (0) target = $region21
  $region20: #{_lambda_.11} parent=0 // pred_region
    _
  $region21: #{_lambda_.11} parent=0 // pred_fallthru
    _
  // Predicated region
  $region22: #{_lambda_.11} parent=0 // pred_check
    _
  $region23: #{_lambda_.11} parent=0 // pred_check_branch
    %388 = sbr.rel (0) target = $region25
  $region24: #{_lambda_.11} parent=0 // pred_region
    _
  $region25: #{_lambda_.11} parent=0 // pred_fallthru
    _

</llo_original>
